<compile_context>
chip_gen: v7x
topology: tpu7x:2x2x1
jax: 0.10.0
libtpu: 0.0.40
codegen_flags: <defaults>
</compile_context>

<pallas_src>
import functools

import jax
import jax.numpy as jnp
from jax import lax
from jax.experimental import pallas as pl
from jax.experimental.pallas import tpu as pltpu


# ----------------------------------------------------------------------------
# Fused kernel.
#
# Packing conventions (built at parameter-prep time, see pack_params):
#   direction order   : [word_fwd, pos_fwd, word_bwd, pos_bwd]  (each H wide)
#   packed hidden h,c : (B, GWP)  GWP = 4H rounded up to 128; lanes [4H, GWP)
#                       are zero-padded and stay exactly 0 through the loop
#   gate columns      : gate-major [i | f | o | g], each block GWP wide
#   wih_big           : (4E, 4*GWP) rows = [x_w(t)|x_p(t)|x_w(T-1-t)|x_p(T-1-t)]
#   whh_big           : (GWP, 4*GWP) rows = packed h
#   b_big             : (1, 4*GWP)   (b_ih + b_hh)
# ----------------------------------------------------------------------------
def fused_kernel(x_ref, meta_ref,
                 wih_ref, whh_ref, b_ref,
                 meta_w_ref, meta_b_ref,
                 fc1_w_ref, fc1_b_ref,
                 fc2_w_ref, fc2_b_ref,
                 out_ref, attn_ref,
                 gx_scr, rnn_scr,
                 *, gf):
    T, B, GWP = rnn_scr.shape
    GATES = gx_scr.shape[-1]                   # 4 * GWP

    # ---- (1) input projection, hoisted + batched over time ------------------
    # one (T*B, 4E) x (4E, 4*GWP) matmul; bias added once, outside the loop.
    gx_scr[...] = (jnp.dot(x_ref[...], wih_ref[...],
                           preferred_element_type=jnp.float32) + b_ref[...])

    # ---- (2) fused serial recurrence for all 4 directions --------------------
    # h / c are fori_loop carries (vregs); the only per-step VMEM traffic is
    # one (B, GATES) gx read and the rnn_scr hidden-state stores.
    whh = whh_ref[...]

    def step(t, carry):
        h, c = carry
        row = pl.multiple_of(t * B, B)
        gates = gx_scr[pl.ds(row, B), :] + jnp.dot(
            h, whh, preferred_element_type=jnp.float32)
        # gate-major packing [i | f | o | g] -> one sigmoid + one tanh per step;
        # each gate block is a full 128-lane tile.
        sg = jax.nn.sigmoid(gates[:, :3 * GWP])
        i_g = sg[:, 0 * GWP:1 * GWP]
        f_g = sg[:, 1 * GWP:2 * GWP]
        o_g = sg[:, 2 * GWP:3 * GWP]
        g_g = jnp.tanh(gates[:, 3 * GWP:])
        c = f_g * c + i_g * g_g
        h = o_g * jnp.tanh(c)
        # forward dirs (lanes [0, gf)) produced input position t; backward dirs
        # (+ the zero pad lanes) produced input position T-1-t.
        rnn_scr[t, :, :gf] = h[:, :gf]
        rnn_scr[T - 1 - t, :, gf:] = h[:, gf:]
        return (h, c)

    zeros = jnp.zeros((B, GWP), jnp.float32)
    h_fin, _ = lax.fori_loop(0, T, step, (zeros, zeros), unroll=True)

    # ---- (3) attention over time (softmax over T) ----------------------------
    merged = h_fin                                 # final hiddens of all 4 dirs
    rnn = rnn_scr[...]                             # (T, B, GWP), position order
    scores = jnp.sum(rnn * merged[None, :, :], axis=-1, keepdims=True)  # (T,B,1)
    scores = scores - jnp.max(scores, axis=0, keepdims=True)
    e = jnp.exp(scores)
    w = e * pl.reciprocal(jnp.sum(e, axis=0, keepdims=True), approx=True)
    attn_out = jnp.sum(rnn * w, axis=0)            # (B, GWP), pad lanes = 0
    attn_ref[...] = attn_out

    # ---- (4) meta branch + MLP head (fc1 fused into one matmul) -------------
    meta_out = jnp.maximum(
        jnp.dot(meta_ref[...], meta_w_ref[...],
                preferred_element_type=jnp.float32) + meta_b_ref[...], 0.0)
    head_in = jnp.concatenate([attn_out, meta_out], axis=-1)   # (B, GWP + 128)
    h1 = jnp.maximum(
        jnp.dot(head_in, fc1_w_ref[...],
                preferred_element_type=jnp.float32) + fc1_b_ref[...], 0.0)
    logits = (jnp.dot(h1, fc2_w_ref[...],
                      preferred_element_type=jnp.float32) + fc2_b_ref[...])
    # final softmax keeps the exact divide for strict parity with PyTorch
    logits = logits - jnp.max(logits, axis=1, keepdims=True)
    ez = jnp.exp(logits)
    out_ref[...] = ez / jnp.sum(ez, axis=1, keepdims=True)


def run_fused(x_flat, meta, p, T, B):
    GWP, GATES = p["whh_big"].shape
    fc1_out = p["fc1_w"].shape[1]
    n_out = p["fc2_w"].shape[1]
    e4 = x_flat.shape[1]
    vm = pl.BlockSpec(memory_space=pltpu.MemorySpace.VMEM)

    flops = (2 * T * B * e4 * GATES            # batched input projection
             + 2 * T * B * GWP * GATES         # serial gate matmuls
             + 4 * T * B * GWP                 # attention scores + weighted sum
             + 2 * B * (meta.shape[1] * p["meta_w"].shape[1]
                        + p["fc1_w"].shape[0] * fc1_out
                        + fc1_out * n_out))
    transc = 5 * T * B * GWP + T * B + B * n_out
    bytes_acc = 4 * (x_flat.size + meta.size + p["wih_big"].size
                     + p["whh_big"].size + p["b_big"].size + p["meta_w"].size
                     + p["meta_b"].size + p["fc1_w"].size + p["fc1_b"].size
                     + p["fc2_w"].size + p["fc2_b"].size + B * (n_out + GWP))

    kernel = functools.partial(fused_kernel, gf=p["gf"])
    return pl.pallas_call(
        kernel,
        out_shape=(jax.ShapeDtypeStruct((B, n_out), jnp.float32),
                   jax.ShapeDtypeStruct((B, GWP), jnp.float32)),
        in_specs=[vm] * 11,
        out_specs=(vm, vm),
        scratch_shapes=[
            pltpu.VMEM((T * B, GATES), jnp.float32),   # hoisted x-projection gates
            pltpu.VMEM((T, B, GWP), jnp.float32),      # per-position hidden states
        ],
        cost_estimate=pl.CostEstimate(
            flops=int(flops), transcendentals=int(transc),
            bytes_accessed=int(bytes_acc)),
    )(x_flat, meta,
      p["wih_big"], p["whh_big"], p["b_big"],
      p["meta_w"], p["meta_b"],
      p["fc1_w"], p["fc1_b"],
      p["fc2_w"], p["fc2_b"])


# ----------------------------------------------------------------------------
# Model glue: embedding gather, time-major transpose and direction input
# packing only.  All matmuls, recurrences, attention and softmaxes run inside
# the single Pallas kernel.
# ----------------------------------------------------------------------------
def hybrid_attention_lstm_forward(params, X, POS, Meta):
    # TODO(synk): embedding index gather + transpose + direction packing kept in
    # plain JAX (gather glue); could move in-kernel via PrefetchScalarGridSpec
    # + pl.Element row index_maps once T/B/E grow.
    emb_x = jnp.transpose(jnp.take(params["word_emb"], X, axis=0), (1, 0, 2))
    emb_p = jnp.transpose(jnp.take(params["pos_emb"], POS, axis=0), (1, 0, 2))
    # recurrence step t consumes [x_w(t) | x_p(t) | x_w(T-1-t) | x_p(T-1-t)]
    x_cat = jnp.concatenate(
        [emb_x, emb_p, jnp.flip(emb_x, axis=0), jnp.flip(emb_p, axis=0)],
        axis=-1)                                                     # (T, B, 4E)
    T, B = x_cat.shape[0], x_cat.shape[1]
    x_flat = x_cat.reshape(T * B, x_cat.shape[2])
    return run_fused(x_flat, Meta, params, T, B)


# ----------------------------------------------------------------------------
# Parameter construction (PyTorch layout) + packing into the fused layout.
# ----------------------------------------------------------------------------
# Kernel gate order is (i, f, o, g); PyTorch stores (i, f, g, o).
_GATE_PERM = (0, 1, 3, 2)


def _kernel_feature_perm(H):
    # kernel attention-feature order [wf|pf|wb|pb] -> PyTorch order [wf|wb|pf|pb]
    return jnp.concatenate([jnp.arange(0, H), jnp.arange(2 * H, 3 * H),
                            jnp.arange(H, 2 * H), jnp.arange(3 * H, 4 * H)])


def make_raw_params(key, vocab, pos_vocab, E, H, meta_dim, fc1_out, n_out):
    D4 = 4 * H
    ks = jax.random.split(key, 12)
    s = 0.1

    def dir_p(k):
        k1, k2, k3 = jax.random.split(k, 3)
        return {"wih": s * jax.random.normal(k1, (E, 4 * H), jnp.float32),
                "whh": s * jax.random.normal(k2, (H, 4 * H), jnp.float32),
                "b": s * jax.random.normal(k3, (1, 4 * H), jnp.float32)}

    return {
        "word_emb": s * jax.random.normal(ks[0], (vocab, E), jnp.float32),
        "pos_emb": s * jax.random.normal(ks[1], (pos_vocab, E), jnp.float32),
        "word_fwd": dir_p(ks[2]), "word_bwd": dir_p(ks[3]),
        "pos_fwd": dir_p(ks[4]), "pos_bwd": dir_p(ks[5]),
        "meta_w": s * jax.random.normal(ks[6], (meta_dim, 64), jnp.float32),
        "meta_b": s * jax.random.normal(ks[7], (1, 64), jnp.float32),
        "fc1_w": s * jax.random.normal(ks[8], (D4 + 64, fc1_out), jnp.float32),
        "fc1_b": s * jax.random.normal(ks[9], (1, fc1_out), jnp.float32),
        "fc2_w": s * jax.random.normal(ks[10], (fc1_out, n_out), jnp.float32),
        "fc2_b": s * jax.random.normal(ks[11], (1, n_out), jnp.float32),
    }


def pack_params(raw, E, H):
    D4 = 4 * H
    GWP = max(128, ((D4 + 127) // 128) * 128)      # lane-padded hidden width
    GATES = 4 * GWP
    dirs = [raw["word_fwd"], raw["pos_fwd"], raw["word_bwd"], raw["pos_bwd"]]

    wih = jnp.zeros((4 * E, GATES), jnp.float32)
    whh = jnp.zeros((GWP, GATES), jnp.float32)
    b = jnp.zeros((1, GATES), jnp.float32)
    for d, dp in enumerate(dirs):
        for k, pk in enumerate(_GATE_PERM):
            cs = k * GWP + d * H
            wih = wih.at[d * E:(d + 1) * E, cs:cs + H].set(
                dp["wih"][:, pk * H:(pk + 1) * H])
            whh = whh.at[d * H:(d + 1) * H, cs:cs + H].set(
                dp["whh"][:, pk * H:(pk + 1) * H])
            b = b.at[:, cs:cs + H].set(dp["b"][:, pk * H:(pk + 1) * H])

    # fc1: PyTorch rows [attn (wf|wb|pf|pb) ; meta 64] -> kernel rows
    #      [attn in kernel order, zero-padded to GWP ; meta, zero-padded to 128]
    fc1_out = raw["fc1_w"].shape[1]
    perm = _kernel_feature_perm(H)
    fc1_wa = jnp.zeros((GWP, fc1_out), jnp.float32).at[:D4].set(
        raw["fc1_w"][:D4][perm])
    fc1_wb = jnp.zeros((128, fc1_out), jnp.float32).at[:64].set(
        raw["fc1_w"][D4:])
    fc1_w = jnp.concatenate([fc1_wa, fc1_wb], axis=0)

    meta_dim = raw["meta_w"].shape[0]
    meta_w = jnp.zeros((meta_dim, 128), jnp.float32).at[:, :64].set(raw["meta_w"])
    meta_b = jnp.zeros((1, 128), jnp.float32).at[:, :64].set(raw["meta_b"])

    return {
        "word_emb": raw["word_emb"], "pos_emb": raw["pos_emb"],
        "wih_big": wih, "whh_big": whh, "b_big": b,
        "meta_w": meta_w, "meta_b": meta_b,
        "fc1_w": fc1_w, "fc1_b": raw["fc1_b"],
        "fc2_w": raw["fc2_w"], "fc2_b": raw["fc2_b"],
        "gf": 2 * H,          # lane boundary between fwd and bwd directions
    }


# ----------------------------------------------------------------------------
# Pure-JAX reference (original PyTorch layout) used as the parity check.
# ----------------------------------------------------------------------------
def _lstm_dir(x_tbe, p, reverse):
    T, B, _ = x_tbe.shape
    H = p["whh"].shape[0]
    h = jnp.zeros((B, H), jnp.float32)
    c = jnp.zeros((B, H), jnp.float32)
    ys = [None] * T
    order = range(T - 1, -1, -1) if reverse else range(T)
    for t in order:
        g = x_tbe[t] @ p["wih"] + h @ p["whh"] + p["b"]   # gate order i,f,g,o
        i = jax.nn.sigmoid(g[:, :H])
        f = jax.nn.sigmoid(g[:, H:2 * H])
        gg = jnp.tanh(g[:, 2 * H:3 * H])
        o = jax.nn.sigmoid(g[:, 3 * H:])
        c = f * c + i * gg
        h = o * jnp.tanh(c)
        ys[t] = h
    return jnp.stack(ys, axis=0), h


def reference_forward(raw, X, POS, Meta):
    emb_x = jnp.transpose(jnp.take(raw["word_emb"], X, axis=0), (1, 0, 2))
    emb_p = jnp.transpose(jnp.take(raw["pos_emb"], POS, axis=0), (1, 0, 2))
    yfw, hfw = _lstm_dir(emb_x, raw["word_fwd"], False)
    ybw, hbw = _lstm_dir(emb_x, raw["word_bwd"], True)
    yfp, hfp = _lstm_dir(emb_p, raw["pos_fwd"], False)
    ybp, hbp = _lstm_dir(emb_p, raw["pos_bwd"], True)
    rnn = jnp.concatenate([yfw, ybw, yfp, ybp], axis=-1)       # (T,B,4H)
    merged = jnp.concatenate([hfw, hbw, hfp, hbp], axis=-1)    # (B,4H)
    scores = jnp.einsum("tbf,bf->bt", rnn, merged)
    w = jax.nn.softmax(scores, axis=1)
    attn = jnp.einsum("tbf,bt->bf", rnn, w)                    # (B,4H)
    meta_out = jax.nn.relu(Meta @ raw["meta_w"] + raw["meta_b"])
    h1 = jax.nn.relu(jnp.concatenate([attn, meta_out], axis=1)
                     @ raw["fc1_w"] + raw["fc1_b"])
    logits = h1 @ raw["fc2_w"] + raw["fc2_b"]
    return jax.nn.softmax(logits, axis=1), attn


if __name__ == "__main__":
    # Small shapes consistent with the module (lstm_hidden H = hidden_size//2,
    # fc1 in = hidden_size*2 + 64).  B=8 keeps (T*B, .) views tile aligned.
    B, T = 8, 8
    VOCAB, POS_VOCAB = 50, 20
    E = 32            # embedding_dim  -> 4E = 128 input-projection rows
    H = 16            # lstm_hidden_size -> hidden_size = 2H = 32
    META_DIM = 84
    FC1_OUT = 100
    N_OUT = 6

    key = jax.random.PRNGKey(0)
    k_param, k_x, k_pos, k_meta = jax.random.split(key, 4)

    raw = make_raw_params(k_param, VOCAB, POS_VOCAB, E, H, META_DIM, FC1_OUT, N_OUT)
    params = pack_params(raw, E, H)

    X = jax.random.randint(k_x, (B, T), 0, VOCAB, dtype=jnp.int32)
    POS = jax.random.randint(k_pos, (B, T), 0, POS_VOCAB, dtype=jnp.int32)
    Meta = jax.random.normal(k_meta, (B, META_DIM), jnp.float32)

    fwd = jax.jit(functools.partial(hybrid_attention_lstm_forward, params))
    probs, attn_k = fwd(X, POS, Meta)
    jax.block_until_ready((probs, attn_k))

    ref_probs, ref_attn = jax.jit(functools.partial(reference_forward, raw))(
        X, POS, Meta)
    jax.block_until_ready((ref_probs, ref_attn))

    D4 = 4 * H
    perm = _kernel_feature_perm(H)
    assert probs.shape == (B, N_OUT)
    assert bool(jnp.all(jnp.isfinite(probs)))
    # rows of the final softmax must sum to 1 (exact divide used there)
    assert bool(jnp.allclose(jnp.sum(probs, axis=1), 1.0, atol=1e-5))
    # LSTM + attention path parity (kernel lane order vs PyTorch order)
    assert bool(jnp.allclose(attn_k[:, :D4], ref_attn[:, perm],
                             atol=1e-3, rtol=1e-2))
    assert bool(jnp.allclose(attn_k[:, D4:], 0.0, atol=1e-6))
    # end-to-end probabilities (approx reciprocal in attention softmax allowed)
    assert bool(jnp.allclose(probs, ref_probs, atol=5e-3))
    print("KERNEL_OK")
</pallas_src>

<mosaic_0001>
module attributes {stable_mosaic.version = 11 : i64} {
  func.func @fused_kernel(%arg0: memref<64x128xf32, #tpu.memory_space<vmem>>, %arg1: memref<8x84xf32, #tpu.memory_space<vmem>>, %arg2: memref<128x512xf32, #tpu.memory_space<vmem>>, %arg3: memref<128x512xf32, #tpu.memory_space<vmem>>, %arg4: memref<1x512xf32, #tpu.memory_space<vmem>>, %arg5: memref<84x128xf32, #tpu.memory_space<vmem>>, %arg6: memref<1x128xf32, #tpu.memory_space<vmem>>, %arg7: memref<256x100xf32, #tpu.memory_space<vmem>>, %arg8: memref<1x100xf32, #tpu.memory_space<vmem>>, %arg9: memref<100x6xf32, #tpu.memory_space<vmem>>, %arg10: memref<1x6xf32, #tpu.memory_space<vmem>>, %arg11: memref<8x6xf32, #tpu.memory_space<vmem>>, %arg12: memref<8x128xf32, #tpu.memory_space<vmem>>, %arg13: memref<64x512xf32, #tpu.memory_space<vmem>>, %arg14: memref<8x8x128xf32, #tpu.memory_space<vmem>>) attributes {dimension_semantics = [], scalar_prefetch = 0 : i64, scratch_operands = 2 : i64, tpu.core_type = #tpu.core_type<tc>} {
    %c0 = arith.constant 0 : index
    %c0_0 = arith.constant 0 : index
    %0 = vector.load %arg0[%c0, %c0_0] : memref<64x128xf32, #tpu.memory_space<vmem>>, vector<64x128xf32>
    %c0_1 = arith.constant 0 : index
    %c0_2 = arith.constant 0 : index
    %1 = vector.load %arg2[%c0_1, %c0_2] : memref<128x512xf32, #tpu.memory_space<vmem>>, vector<128x512xf32>
    %cst = arith.constant dense<0.000000e+00> : vector<64x512xf32>
    %2 = tpu.matmul %0, %1, %cst {dimension_numbers = #tpu.dot_dimension_numbers<[1], [0], [0], [1], [0, 0, 1, 1], [], []>} : vector<64x128xf32>, vector<128x512xf32>, vector<64x512xf32> -> vector<64x512xf32>
    %c0_3 = arith.constant 0 : index
    %c0_4 = arith.constant 0 : index
    %3 = vector.load %arg4[%c0_3, %c0_4] : memref<1x512xf32, #tpu.memory_space<vmem>>, vector<1x512xf32>
    %4 = vector.broadcast %3 : vector<1x512xf32> to vector<64x512xf32>
    %5 = arith.addf %2, %4 : vector<64x512xf32>
    %c0_5 = arith.constant 0 : index
    %c0_6 = arith.constant 0 : index
    %6 = vector.load %arg13[%c0_5, %c0_6] : memref<64x512xf32, #tpu.memory_space<vmem>>, vector<64x512xf32>
    tpu.vector_store %arg13[%c0_5, %c0_6], %5 {strides = array<i32>} : memref<64x512xf32, #tpu.memory_space<vmem>>, vector<64x512xf32>,
    %c0_7 = arith.constant 0 : index
    %c0_8 = arith.constant 0 : index
    %7 = vector.load %arg3[%c0_7, %c0_8] : memref<128x512xf32, #tpu.memory_space<vmem>>, vector<128x512xf32>
    %cst_9 = arith.constant 0.000000e+00 : f32
    %8 = vector.broadcast %cst_9 : f32 to vector<8x128xf32>
    %c0_i32 = arith.constant 0 : i32
    %c8_i32 = arith.constant 8 : i32
    %9 = arith.muli %c0_i32, %c8_i32 : i32
    %10 = tpu.assume_multiple %9, 8 : i32
    %11 = arith.index_cast %10 : i32 to index
    %c0_10 = arith.constant 0 : index
    %12 = vector.load %arg13[%11, %c0_10] : memref<64x512xf32, #tpu.memory_space<vmem>>, vector<8x512xf32>
    %cst_11 = arith.constant dense<0.000000e+00> : vector<8x512xf32>
    %13 = tpu.matmul %8, %7, %cst_11 {dimension_numbers = #tpu.dot_dimension_numbers<[1], [0], [0], [1], [0, 0, 1, 1], [], []>} : vector<8x128xf32>, vector<128x512xf32>, vector<8x512xf32> -> vector<8x512xf32>
    %14 = arith.addf %12, %13 : vector<8x512xf32>
    %15 = vector.extract_strided_slice %14 {offsets = [0, 0], sizes = [8, 384], strides = [1, 1]} : vector<8x512xf32> to vector<8x384xf32>
    %16 = arith.negf %15 : vector<8x384xf32>
    %17 = math.exp %16 : vector<8x384xf32>
    %cst_12 = arith.constant 1.000000e+00 : f32
    %18 = vector.broadcast %cst_12 : f32 to vector<8x384xf32>
    %19 = arith.addf %18, %17 : vector<8x384xf32>
    %20 = arith.divf %18, %19 : vector<8x384xf32>
    %21 = vector.extract_strided_slice %20 {offsets = [0, 0], sizes = [8, 128], strides = [1, 1]} : vector<8x384xf32> to vector<8x128xf32>
    %22 = vector.extract_strided_slice %20 {offsets = [0, 128], sizes = [8, 128], strides = [1, 1]} : vector<8x384xf32> to vector<8x128xf32>
    %23 = vector.extract_strided_slice %20 {offsets = [0, 256], sizes = [8, 128], strides = [1, 1]} : vector<8x384xf32> to vector<8x128xf32>
    %24 = vector.extract_strided_slice %14 {offsets = [0, 384], sizes = [8, 128], strides = [1, 1]} : vector<8x512xf32> to vector<8x128xf32>
    %25 = math.tanh %24 : vector<8x128xf32>
    %26 = arith.mulf %22, %8 : vector<8x128xf32>
    %27 = arith.mulf %21, %25 : vector<8x128xf32>
    %28 = arith.addf %26, %27 : vector<8x128xf32>
    %29 = math.tanh %28 : vector<8x128xf32>
    %30 = arith.mulf %23, %29 : vector<8x128xf32>
    %31 = vector.extract_strided_slice %30 {offsets = [0, 0], sizes = [8, 32], strides = [1, 1]} : vector<8x128xf32> to vector<8x32xf32>
    %32 = arith.index_cast %c0_i32 : i32 to index
    %c0_13 = arith.constant 0 : index
    %c0_14 = arith.constant 0 : index
    %33 = vector.load %arg14[%32, %c0_13, %c0_14] : memref<8x8x128xf32, #tpu.memory_space<vmem>>, vector<1x8x32xf32>
    %34 = vector.shape_cast %33 : vector<1x8x32xf32> to vector<8x32xf32>
    %35 = vector.shape_cast %31 : vector<8x32xf32> to vector<1x8x32xf32>
    tpu.vector_store %arg14[%32, %c0_13, %c0_14], %35 {strides = array<i32>} : memref<8x8x128xf32, #tpu.memory_space<vmem>>, vector<1x8x32xf32>,
    %36 = vector.extract_strided_slice %30 {offsets = [0, 32], sizes = [8, 96], strides = [1, 1]} : vector<8x128xf32> to vector<8x96xf32>
    %c7_i32 = arith.constant 7 : i32
    %37 = arith.subi %c7_i32, %c0_i32 : i32
    %38 = arith.index_cast %37 : i32 to index
    %c0_15 = arith.constant 0 : index
    %c32 = arith.constant 32 : index
    %39 = vector.load %arg14[%38, %c0_15, %c32] : memref<8x8x128xf32, #tpu.memory_space<vmem>>, vector<1x8x96xf32>
    %40 = vector.shape_cast %39 : vector<1x8x96xf32> to vector<8x96xf32>
    %41 = vector.shape_cast %36 : vector<8x96xf32> to vector<1x8x96xf32>
    tpu.vector_store %arg14[%38, %c0_15, %c32], %41 {strides = array<i32>} : memref<8x8x128xf32, #tpu.memory_space<vmem>>, vector<1x8x96xf32>,
    %c1_i32 = arith.constant 1 : i32
    %c8_i32_16 = arith.constant 8 : i32
    %42 = arith.muli %c1_i32, %c8_i32_16 : i32
    %43 = tpu.assume_multiple %42, 8 : i32
    %44 = arith.index_cast %43 : i32 to index
    %c0_17 = arith.constant 0 : index
    %45 = vector.load %arg13[%44, %c0_17] : memref<64x512xf32, #tpu.memory_space<vmem>>, vector<8x512xf32>
    %cst_18 = arith.constant dense<0.000000e+00> : vector<8x512xf32>
    %46 = tpu.matmul %30, %7, %cst_18 {dimension_numbers = #tpu.dot_dimension_numbers<[1], [0], [0], [1], [0, 0, 1, 1], [], []>} : vector<8x128xf32>, vector<128x512xf32>, vector<8x512xf32> -> vector<8x512xf32>
    %47 = arith.addf %45, %46 : vector<8x512xf32>
    %48 = vector.extract_strided_slice %47 {offsets = [0, 0], sizes = [8, 384], strides = [1, 1]} : vector<8x512xf32> to vector<8x384xf32>
    %49 = arith.negf %48 : vector<8x384xf32>
    %50 = math.exp %49 : vector<8x384xf32>
    %cst_19 = arith.constant 1.000000e+00 : f32
    %51 = vector.broadcast %cst_19 : f32 to vector<8x384xf32>
    %52 = arith.addf %51, %50 : vector<8x384xf32>
    %53 = arith.divf %51, %52 : vector<8x384xf32>
    %54 = vector.extract_strided_slice %53 {offsets = [0, 0], sizes = [8, 128], strides = [1, 1]} : vector<8x384xf32> to vector<8x128xf32>
    %55 = vector.extract_strided_slice %53 {offsets = [0, 128], sizes = [8, 128], strides = [1, 1]} : vector<8x384xf32> to vector<8x128xf32>
    %56 = vector.extract_strided_slice %53 {offsets = [0, 256], sizes = [8, 128], strides = [1, 1]} : vector<8x384xf32> to vector<8x128xf32>
    %57 = vector.extract_strided_slice %47 {offsets = [0, 384], sizes = [8, 128], strides = [1, 1]} : vector<8x512xf32> to vector<8x128xf32>
    %58 = math.tanh %57 : vector<8x128xf32>
    %59 = arith.mulf %55, %28 : vector<8x128xf32>
    %60 = arith.mulf %54, %58 : vector<8x128xf32>
    %61 = arith.addf %59, %60 : vector<8x128xf32>
    %62 = math.tanh %61 : vector<8x128xf32>
    %63 = arith.mulf %56, %62 : vector<8x128xf32>
    %64 = vector.extract_strided_slice %63 {offsets = [0, 0], sizes = [8, 32], strides = [1, 1]} : vector<8x128xf32> to vector<8x32xf32>
    %65 = arith.index_cast %c1_i32 : i32 to index
    %c0_20 = arith.constant 0 : index
    %c0_21 = arith.constant 0 : index
    %66 = vector.load %arg14[%65, %c0_20, %c0_21] : memref<8x8x128xf32, #tpu.memory_space<vmem>>, vector<1x8x32xf32>
    %67 = vector.shape_cast %66 : vector<1x8x32xf32> to vector<8x32xf32>
    %68 = vector.shape_cast %64 : vector<8x32xf32> to vector<1x8x32xf32>
    tpu.vector_store %arg14[%65, %c0_20, %c0_21], %68 {strides = array<i32>} : memref<8x8x128xf32, #tpu.memory_space<vmem>>, vector<1x8x32xf32>,
    %69 = vector.extract_strided_slice %63 {offsets = [0, 32], sizes = [8, 96], strides = [1, 1]} : vector<8x128xf32> to vector<8x96xf32>
    %c7_i32_22 = arith.constant 7 : i32
    %70 = arith.subi %c7_i32_22, %c1_i32 : i32
    %71 = arith.index_cast %70 : i32 to index
    %c0_23 = arith.constant 0 : index
    %c32_24 = arith.constant 32 : index
    %72 = vector.load %arg14[%71, %c0_23, %c32_24] : memref<8x8x128xf32, #tpu.memory_space<vmem>>, vector<1x8x96xf32>
    %73 = vector.shape_cast %72 : vector<1x8x96xf32> to vector<8x96xf32>
    %74 = vector.shape_cast %69 : vector<8x96xf32> to vector<1x8x96xf32>
    tpu.vector_store %arg14[%71, %c0_23, %c32_24], %74 {strides = array<i32>} : memref<8x8x128xf32, #tpu.memory_space<vmem>>, vector<1x8x96xf32>,
    %c2_i32 = arith.constant 2 : i32
    %c8_i32_25 = arith.constant 8 : i32
    %75 = arith.muli %c2_i32, %c8_i32_25 : i32
    %76 = tpu.assume_multiple %75, 8 : i32
    %77 = arith.index_cast %76 : i32 to index
    %c0_26 = arith.constant 0 : index
    %78 = vector.load %arg13[%77, %c0_26] : memref<64x512xf32, #tpu.memory_space<vmem>>, vector<8x512xf32>
    %cst_27 = arith.constant dense<0.000000e+00> : vector<8x512xf32>
    %79 = tpu.matmul %63, %7, %cst_27 {dimension_numbers = #tpu.dot_dimension_numbers<[1], [0], [0], [1], [0, 0, 1, 1], [], []>} : vector<8x128xf32>, vector<128x512xf32>, vector<8x512xf32> -> vector<8x512xf32>
    %80 = arith.addf %78, %79 : vector<8x512xf32>
    %81 = vector.extract_strided_slice %80 {offsets = [0, 0], sizes = [8, 384], strides = [1, 1]} : vector<8x512xf32> to vector<8x384xf32>
    %82 = arith.negf %81 : vector<8x384xf32>
    %83 = math.exp %82 : vector<8x384xf32>
    %cst_28 = arith.constant 1.000000e+00 : f32
    %84 = vector.broadcast %cst_28 : f32 to vector<8x384xf32>
    %85 = arith.addf %84, %83 : vector<8x384xf32>
    %86 = arith.divf %84, %85 : vector<8x384xf32>
    %87 = vector.extract_strided_slice %86 {offsets = [0, 0], sizes = [8, 128], strides = [1, 1]} : vector<8x384xf32> to vector<8x128xf32>
    %88 = vector.extract_strided_slice %86 {offsets = [0, 128], sizes = [8, 128], strides = [1, 1]} : vector<8x384xf32> to vector<8x128xf32>
    %89 = vector.extract_strided_slice %86 {offsets = [0, 256], sizes = [8, 128], strides = [1, 1]} : vector<8x384xf32> to vector<8x128xf32>
    %90 = vector.extract_strided_slice %80 {offsets = [0, 384], sizes = [8, 128], strides = [1, 1]} : vector<8x512xf32> to vector<8x128xf32>
    %91 = math.tanh %90 : vector<8x128xf32>
    %92 = arith.mulf %88, %61 : vector<8x128xf32>
    %93 = arith.mulf %87, %91 : vector<8x128xf32>
    %94 = arith.addf %92, %93 : vector<8x128xf32>
    %95 = math.tanh %94 : vector<8x128xf32>
    %96 = arith.mulf %89, %95 : vector<8x128xf32>
    %97 = vector.extract_strided_slice %96 {offsets = [0, 0], sizes = [8, 32], strides = [1, 1]} : vector<8x128xf32> to vector<8x32xf32>
    %98 = arith.index_cast %c2_i32 : i32 to index
    %c0_29 = arith.constant 0 : index
    %c0_30 = arith.constant 0 : index
    %99 = vector.load %arg14[%98, %c0_29, %c0_30] : memref<8x8x128xf32, #tpu.memory_space<vmem>>, vector<1x8x32xf32>
    %100 = vector.shape_cast %99 : vector<1x8x32xf32> to vector<8x32xf32>
    %101 = vector.shape_cast %97 : vector<8x32xf32> to vector<1x8x32xf32>
    tpu.vector_store %arg14[%98, %c0_29, %c0_30], %101 {strides = array<i32>} : memref<8x8x128xf32, #tpu.memory_space<vmem>>, vector<1x8x32xf32>,
    %102 = vector.extract_strided_slice %96 {offsets = [0, 32], sizes = [8, 96], strides = [1, 1]} : vector<8x128xf32> to vector<8x96xf32>
    %c7_i32_31 = arith.constant 7 : i32
    %103 = arith.subi %c7_i32_31, %c2_i32 : i32
    %104 = arith.index_cast %103 : i32 to index
    %c0_32 = arith.constant 0 : index
    %c32_33 = arith.constant 32 : index
    %105 = vector.load %arg14[%104, %c0_32, %c32_33] : memref<8x8x128xf32, #tpu.memory_space<vmem>>, vector<1x8x96xf32>
    %106 = vector.shape_cast %105 : vector<1x8x96xf32> to vector<8x96xf32>
    %107 = vector.shape_cast %102 : vector<8x96xf32> to vector<1x8x96xf32>
    tpu.vector_store %arg14[%104, %c0_32, %c32_33], %107 {strides = array<i32>} : memref<8x8x128xf32, #tpu.memory_space<vmem>>, vector<1x8x96xf32>,
    %c3_i32 = arith.constant 3 : i32
    %c8_i32_34 = arith.constant 8 : i32
    %108 = arith.muli %c3_i32, %c8_i32_34 : i32
    %109 = tpu.assume_multiple %108, 8 : i32
    %110 = arith.index_cast %109 : i32 to index
    %c0_35 = arith.constant 0 : index
    %111 = vector.load %arg13[%110, %c0_35] : memref<64x512xf32, #tpu.memory_space<vmem>>, vector<8x512xf32>
    %cst_36 = arith.constant dense<0.000000e+00> : vector<8x512xf32>
    %112 = tpu.matmul %96, %7, %cst_36 {dimension_numbers = #tpu.dot_dimension_numbers<[1], [0], [0], [1], [0, 0, 1, 1], [], []>} : vector<8x128xf32>, vector<128x512xf32>, vector<8x512xf32> -> vector<8x512xf32>
    %113 = arith.addf %111, %112 : vector<8x512xf32>
    %114 = vector.extract_strided_slice %113 {offsets = [0, 0], sizes = [8, 384], strides = [1, 1]} : vector<8x512xf32> to vector<8x384xf32>
    %115 = arith.negf %114 : vector<8x384xf32>
    %116 = math.exp %115 : vector<8x384xf32>
    %cst_37 = arith.constant 1.000000e+00 : f32
    %117 = vector.broadcast %cst_37 : f32 to vector<8x384xf32>
    %118 = arith.addf %117, %116 : vector<8x384xf32>
    %119 = arith.divf %117, %118 : vector<8x384xf32>
    %120 = vector.extract_strided_slice %119 {offsets = [0, 0], sizes = [8, 128], strides = [1, 1]} : vector<8x384xf32> to vector<8x128xf32>
    %121 = vector.extract_strided_slice %119 {offsets = [0, 128], sizes = [8, 128], strides = [1, 1]} : vector<8x384xf32> to vector<8x128xf32>
    %122 = vector.extract_strided_slice %119 {offsets = [0, 256], sizes = [8, 128], strides = [1, 1]} : vector<8x384xf32> to vector<8x128xf32>
    %123 = vector.extract_strided_slice %113 {offsets = [0, 384], sizes = [8, 128], strides = [1, 1]} : vector<8x512xf32> to vector<8x128xf32>
    %124 = math.tanh %123 : vector<8x128xf32>
    %125 = arith.mulf %121, %94 : vector<8x128xf32>
    %126 = arith.mulf %120, %124 : vector<8x128xf32>
    %127 = arith.addf %125, %126 : vector<8x128xf32>
    %128 = math.tanh %127 : vector<8x128xf32>
    %129 = arith.mulf %122, %128 : vector<8x128xf32>
    %130 = vector.extract_strided_slice %129 {offsets = [0, 0], sizes = [8, 32], strides = [1, 1]} : vector<8x128xf32> to vector<8x32xf32>
    %131 = arith.index_cast %c3_i32 : i32 to index
    %c0_38 = arith.constant 0 : index
    %c0_39 = arith.constant 0 : index
    %132 = vector.load %arg14[%131, %c0_38, %c0_39] : memref<8x8x128xf32, #tpu.memory_space<vmem>>, vector<1x8x32xf32>
    %133 = vector.shape_cast %132 : vector<1x8x32xf32> to vector<8x32xf32>
    %134 = vector.shape_cast %130 : vector<8x32xf32> to vector<1x8x32xf32>
    tpu.vector_store %arg14[%131, %c0_38, %c0_39], %134 {strides = array<i32>} : memref<8x8x128xf32, #tpu.memory_space<vmem>>, vector<1x8x32xf32>,
    %135 = vector.extract_strided_slice %129 {offsets = [0, 32], sizes = [8, 96], strides = [1, 1]} : vector<8x128xf32> to vector<8x96xf32>
    %c7_i32_40 = arith.constant 7 : i32
    %136 = arith.subi %c7_i32_40, %c3_i32 : i32
    %137 = arith.index_cast %136 : i32 to index
    %c0_41 = arith.constant 0 : index
    %c32_42 = arith.constant 32 : index
    %138 = vector.load %arg14[%137, %c0_41, %c32_42] : memref<8x8x128xf32, #tpu.memory_space<vmem>>, vector<1x8x96xf32>
    %139 = vector.shape_cast %138 : vector<1x8x96xf32> to vector<8x96xf32>
    %140 = vector.shape_cast %135 : vector<8x96xf32> to vector<1x8x96xf32>
    tpu.vector_store %arg14[%137, %c0_41, %c32_42], %140 {strides = array<i32>} : memref<8x8x128xf32, #tpu.memory_space<vmem>>, vector<1x8x96xf32>,
    %c4_i32 = arith.constant 4 : i32
    %c8_i32_43 = arith.constant 8 : i32
    %141 = arith.muli %c4_i32, %c8_i32_43 : i32
    %142 = tpu.assume_multiple %141, 8 : i32
    %143 = arith.index_cast %142 : i32 to index
    %c0_44 = arith.constant 0 : index
    %144 = vector.load %arg13[%143, %c0_44] : memref<64x512xf32, #tpu.memory_space<vmem>>, vector<8x512xf32>
    %cst_45 = arith.constant dense<0.000000e+00> : vector<8x512xf32>
    %145 = tpu.matmul %129, %7, %cst_45 {dimension_numbers = #tpu.dot_dimension_numbers<[1], [0], [0], [1], [0, 0, 1, 1], [], []>} : vector<8x128xf32>, vector<128x512xf32>, vector<8x512xf32> -> vector<8x512xf32>
    %146 = arith.addf %144, %145 : vector<8x512xf32>
    %147 = vector.extract_strided_slice %146 {offsets = [0, 0], sizes = [8, 384], strides = [1, 1]} : vector<8x512xf32> to vector<8x384xf32>
    %148 = arith.negf %147 : vector<8x384xf32>
    %149 = math.exp %148 : vector<8x384xf32>
    %cst_46 = arith.constant 1.000000e+00 : f32
    %150 = vector.broadcast %cst_46 : f32 to vector<8x384xf32>
    %151 = arith.addf %150, %149 : vector<8x384xf32>
    %152 = arith.divf %150, %151 : vector<8x384xf32>
    %153 = vector.extract_strided_slice %152 {offsets = [0, 0], sizes = [8, 128], strides = [1, 1]} : vector<8x384xf32> to vector<8x128xf32>
    %154 = vector.extract_strided_slice %152 {offsets = [0, 128], sizes = [8, 128], strides = [1, 1]} : vector<8x384xf32> to vector<8x128xf32>
    %155 = vector.extract_strided_slice %152 {offsets = [0, 256], sizes = [8, 128], strides = [1, 1]} : vector<8x384xf32> to vector<8x128xf32>
    %156 = vector.extract_strided_slice %146 {offsets = [0, 384], sizes = [8, 128], strides = [1, 1]} : vector<8x512xf32> to vector<8x128xf32>
    %157 = math.tanh %156 : vector<8x128xf32>
    %158 = arith.mulf %154, %127 : vector<8x128xf32>
    %159 = arith.mulf %153, %157 : vector<8x128xf32>
    %160 = arith.addf %158, %159 : vector<8x128xf32>
    %161 = math.tanh %160 : vector<8x128xf32>
    %162 = arith.mulf %155, %161 : vector<8x128xf32>
    %163 = vector.extract_strided_slice %162 {offsets = [0, 0], sizes = [8, 32], strides = [1, 1]} : vector<8x128xf32> to vector<8x32xf32>
    %164 = arith.index_cast %c4_i32 : i32 to index
    %c0_47 = arith.constant 0 : index
    %c0_48 = arith.constant 0 : index
    %165 = vector.load %arg14[%164, %c0_47, %c0_48] : memref<8x8x128xf32, #tpu.memory_space<vmem>>, vector<1x8x32xf32>
    %166 = vector.shape_cast %165 : vector<1x8x32xf32> to vector<8x32xf32>
    %167 = vector.shape_cast %163 : vector<8x32xf32> to vector<1x8x32xf32>
    tpu.vector_store %arg14[%164, %c0_47, %c0_48], %167 {strides = array<i32>} : memref<8x8x128xf32, #tpu.memory_space<vmem>>, vector<1x8x32xf32>,
    %168 = vector.extract_strided_slice %162 {offsets = [0, 32], sizes = [8, 96], strides = [1, 1]} : vector<8x128xf32> to vector<8x96xf32>
    %c7_i32_49 = arith.constant 7 : i32
    %169 = arith.subi %c7_i32_49, %c4_i32 : i32
    %170 = arith.index_cast %169 : i32 to index
    %c0_50 = arith.constant 0 : index
    %c32_51 = arith.constant 32 : index
    %171 = vector.load %arg14[%170, %c0_50, %c32_51] : memref<8x8x128xf32, #tpu.memory_space<vmem>>, vector<1x8x96xf32>
    %172 = vector.shape_cast %171 : vector<1x8x96xf32> to vector<8x96xf32>
    %173 = vector.shape_cast %168 : vector<8x96xf32> to vector<1x8x96xf32>
    tpu.vector_store %arg14[%170, %c0_50, %c32_51], %173 {strides = array<i32>} : memref<8x8x128xf32, #tpu.memory_space<vmem>>, vector<1x8x96xf32>,
    %c5_i32 = arith.constant 5 : i32
    %c8_i32_52 = arith.constant 8 : i32
    %174 = arith.muli %c5_i32, %c8_i32_52 : i32
    %175 = tpu.assume_multiple %174, 8 : i32
    %176 = arith.index_cast %175 : i32 to index
    %c0_53 = arith.constant 0 : index
    %177 = vector.load %arg13[%176, %c0_53] : memref<64x512xf32, #tpu.memory_space<vmem>>, vector<8x512xf32>
    %cst_54 = arith.constant dense<0.000000e+00> : vector<8x512xf32>
    %178 = tpu.matmul %162, %7, %cst_54 {dimension_numbers = #tpu.dot_dimension_numbers<[1], [0], [0], [1], [0, 0, 1, 1], [], []>} : vector<8x128xf32>, vector<128x512xf32>, vector<8x512xf32> -> vector<8x512xf32>
    %179 = arith.addf %177, %178 : vector<8x512xf32>
    %180 = vector.extract_strided_slice %179 {offsets = [0, 0], sizes = [8, 384], strides = [1, 1]} : vector<8x512xf32> to vector<8x384xf32>
    %181 = arith.negf %180 : vector<8x384xf32>
    %182 = math.exp %181 : vector<8x384xf32>
    %cst_55 = arith.constant 1.000000e+00 : f32
    %183 = vector.broadcast %cst_55 : f32 to vector<8x384xf32>
    %184 = arith.addf %183, %182 : vector<8x384xf32>
    %185 = arith.divf %183, %184 : vector<8x384xf32>
    %186 = vector.extract_strided_slice %185 {offsets = [0, 0], sizes = [8, 128], strides = [1, 1]} : vector<8x384xf32> to vector<8x128xf32>
    %187 = vector.extract_strided_slice %185 {offsets = [0, 128], sizes = [8, 128], strides = [1, 1]} : vector<8x384xf32> to vector<8x128xf32>
    %188 = vector.extract_strided_slice %185 {offsets = [0, 256], sizes = [8, 128], strides = [1, 1]} : vector<8x384xf32> to vector<8x128xf32>
    %189 = vector.extract_strided_slice %179 {offsets = [0, 384], sizes = [8, 128], strides = [1, 1]} : vector<8x512xf32> to vector<8x128xf32>
    %190 = math.tanh %189 : vector<8x128xf32>
    %191 = arith.mulf %187, %160 : vector<8x128xf32>
    %192 = arith.mulf %186, %190 : vector<8x128xf32>
    %193 = arith.addf %191, %192 : vector<8x128xf32>
    %194 = math.tanh %193 : vector<8x128xf32>
    %195 = arith.mulf %188, %194 : vector<8x128xf32>
    %196 = vector.extract_strided_slice %195 {offsets = [0, 0], sizes = [8, 32], strides = [1, 1]} : vector<8x128xf32> to vector<8x32xf32>
    %197 = arith.index_cast %c5_i32 : i32 to index
    %c0_56 = arith.constant 0 : index
    %c0_57 = arith.constant 0 : index
    %198 = vector.load %arg14[%197, %c0_56, %c0_57] : memref<8x8x128xf32, #tpu.memory_space<vmem>>, vector<1x8x32xf32>
    %199 = vector.shape_cast %198 : vector<1x8x32xf32> to vector<8x32xf32>
    %200 = vector.shape_cast %196 : vector<8x32xf32> to vector<1x8x32xf32>
    tpu.vector_store %arg14[%197, %c0_56, %c0_57], %200 {strides = array<i32>} : memref<8x8x128xf32, #tpu.memory_space<vmem>>, vector<1x8x32xf32>,
    %201 = vector.extract_strided_slice %195 {offsets = [0, 32], sizes = [8, 96], strides = [1, 1]} : vector<8x128xf32> to vector<8x96xf32>
    %c7_i32_58 = arith.constant 7 : i32
    %202 = arith.subi %c7_i32_58, %c5_i32 : i32
    %203 = arith.index_cast %202 : i32 to index
    %c0_59 = arith.constant 0 : index
    %c32_60 = arith.constant 32 : index
    %204 = vector.load %arg14[%203, %c0_59, %c32_60] : memref<8x8x128xf32, #tpu.memory_space<vmem>>, vector<1x8x96xf32>
    %205 = vector.shape_cast %204 : vector<1x8x96xf32> to vector<8x96xf32>
    %206 = vector.shape_cast %201 : vector<8x96xf32> to vector<1x8x96xf32>
    tpu.vector_store %arg14[%203, %c0_59, %c32_60], %206 {strides = array<i32>} : memref<8x8x128xf32, #tpu.memory_space<vmem>>, vector<1x8x96xf32>,
    %c6_i32 = arith.constant 6 : i32
    %c8_i32_61 = arith.constant 8 : i32
    %207 = arith.muli %c6_i32, %c8_i32_61 : i32
    %208 = tpu.assume_multiple %207, 8 : i32
    %209 = arith.index_cast %208 : i32 to index
    %c0_62 = arith.constant 0 : index
    %210 = vector.load %arg13[%209, %c0_62] : memref<64x512xf32, #tpu.memory_space<vmem>>, vector<8x512xf32>
    %cst_63 = arith.constant dense<0.000000e+00> : vector<8x512xf32>
    %211 = tpu.matmul %195, %7, %cst_63 {dimension_numbers = #tpu.dot_dimension_numbers<[1], [0], [0], [1], [0, 0, 1, 1], [], []>} : vector<8x128xf32>, vector<128x512xf32>, vector<8x512xf32> -> vector<8x512xf32>
    %212 = arith.addf %210, %211 : vector<8x512xf32>
    %213 = vector.extract_strided_slice %212 {offsets = [0, 0], sizes = [8, 384], strides = [1, 1]} : vector<8x512xf32> to vector<8x384xf32>
    %214 = arith.negf %213 : vector<8x384xf32>
    %215 = math.exp %214 : vector<8x384xf32>
    %cst_64 = arith.constant 1.000000e+00 : f32
    %216 = vector.broadcast %cst_64 : f32 to vector<8x384xf32>
    %217 = arith.addf %216, %215 : vector<8x384xf32>
    %218 = arith.divf %216, %217 : vector<8x384xf32>
    %219 = vector.extract_strided_slice %218 {offsets = [0, 0], sizes = [8, 128], strides = [1, 1]} : vector<8x384xf32> to vector<8x128xf32>
    %220 = vector.extract_strided_slice %218 {offsets = [0, 128], sizes = [8, 128], strides = [1, 1]} : vector<8x384xf32> to vector<8x128xf32>
    %221 = vector.extract_strided_slice %218 {offsets = [0, 256], sizes = [8, 128], strides = [1, 1]} : vector<8x384xf32> to vector<8x128xf32>
    %222 = vector.extract_strided_slice %212 {offsets = [0, 384], sizes = [8, 128], strides = [1, 1]} : vector<8x512xf32> to vector<8x128xf32>
    %223 = math.tanh %222 : vector<8x128xf32>
    %224 = arith.mulf %220, %193 : vector<8x128xf32>
    %225 = arith.mulf %219, %223 : vector<8x128xf32>
    %226 = arith.addf %224, %225 : vector<8x128xf32>
    %227 = math.tanh %226 : vector<8x128xf32>
    %228 = arith.mulf %221, %227 : vector<8x128xf32>
    %229 = vector.extract_strided_slice %228 {offsets = [0, 0], sizes = [8, 32], strides = [1, 1]} : vector<8x128xf32> to vector<8x32xf32>
    %230 = arith.index_cast %c6_i32 : i32 to index
    %c0_65 = arith.constant 0 : index
    %c0_66 = arith.constant 0 : index
    %231 = vector.load %arg14[%230, %c0_65, %c0_66] : memref<8x8x128xf32, #tpu.memory_space<vmem>>, vector<1x8x32xf32>
    %232 = vector.shape_cast %231 : vector<1x8x32xf32> to vector<8x32xf32>
    %233 = vector.shape_cast %229 : vector<8x32xf32> to vector<1x8x32xf32>
    tpu.vector_store %arg14[%230, %c0_65, %c0_66], %233 {strides = array<i32>} : memref<8x8x128xf32, #tpu.memory_space<vmem>>, vector<1x8x32xf32>,
    %234 = vector.extract_strided_slice %228 {offsets = [0, 32], sizes = [8, 96], strides = [1, 1]} : vector<8x128xf32> to vector<8x96xf32>
    %c7_i32_67 = arith.constant 7 : i32
    %235 = arith.subi %c7_i32_67, %c6_i32 : i32
    %236 = arith.index_cast %235 : i32 to index
    %c0_68 = arith.constant 0 : index
    %c32_69 = arith.constant 32 : index
    %237 = vector.load %arg14[%236, %c0_68, %c32_69] : memref<8x8x128xf32, #tpu.memory_space<vmem>>, vector<1x8x96xf32>
    %238 = vector.shape_cast %237 : vector<1x8x96xf32> to vector<8x96xf32>
    %239 = vector.shape_cast %234 : vector<8x96xf32> to vector<1x8x96xf32>
    tpu.vector_store %arg14[%236, %c0_68, %c32_69], %239 {strides = array<i32>} : memref<8x8x128xf32, #tpu.memory_space<vmem>>, vector<1x8x96xf32>,
    %c7_i32_70 = arith.constant 7 : i32
    %c8_i32_71 = arith.constant 8 : i32
    %240 = arith.muli %c7_i32_70, %c8_i32_71 : i32
    %241 = tpu.assume_multiple %240, 8 : i32
    %242 = arith.index_cast %241 : i32 to index
    %c0_72 = arith.constant 0 : index
    %243 = vector.load %arg13[%242, %c0_72] : memref<64x512xf32, #tpu.memory_space<vmem>>, vector<8x512xf32>
    %cst_73 = arith.constant dense<0.000000e+00> : vector<8x512xf32>
    %244 = tpu.matmul %228, %7, %cst_73 {dimension_numbers = #tpu.dot_dimension_numbers<[1], [0], [0], [1], [0, 0, 1, 1], [], []>} : vector<8x128xf32>, vector<128x512xf32>, vector<8x512xf32> -> vector<8x512xf32>
    %245 = arith.addf %243, %244 : vector<8x512xf32>
    %246 = vector.extract_strided_slice %245 {offsets = [0, 0], sizes = [8, 384], strides = [1, 1]} : vector<8x512xf32> to vector<8x384xf32>
    %247 = arith.negf %246 : vector<8x384xf32>
    %248 = math.exp %247 : vector<8x384xf32>
    %cst_74 = arith.constant 1.000000e+00 : f32
    %249 = vector.broadcast %cst_74 : f32 to vector<8x384xf32>
    %250 = arith.addf %249, %248 : vector<8x384xf32>
    %251 = arith.divf %249, %250 : vector<8x384xf32>
    %252 = vector.extract_strided_slice %251 {offsets = [0, 0], sizes = [8, 128], strides = [1, 1]} : vector<8x384xf32> to vector<8x128xf32>
    %253 = vector.extract_strided_slice %251 {offsets = [0, 128], sizes = [8, 128], strides = [1, 1]} : vector<8x384xf32> to vector<8x128xf32>
    %254 = vector.extract_strided_slice %251 {offsets = [0, 256], sizes = [8, 128], strides = [1, 1]} : vector<8x384xf32> to vector<8x128xf32>
    %255 = vector.extract_strided_slice %245 {offsets = [0, 384], sizes = [8, 128], strides = [1, 1]} : vector<8x512xf32> to vector<8x128xf32>
    %256 = math.tanh %255 : vector<8x128xf32>
    %257 = arith.mulf %253, %226 : vector<8x128xf32>
    %258 = arith.mulf %252, %256 : vector<8x128xf32>
    %259 = arith.addf %257, %258 : vector<8x128xf32>
    %260 = math.tanh %259 : vector<8x128xf32>
    %261 = arith.mulf %254, %260 : vector<8x128xf32>
    %262 = vector.extract_strided_slice %261 {offsets = [0, 0], sizes = [8, 32], strides = [1, 1]} : vector<8x128xf32> to vector<8x32xf32>
    %263 = arith.index_cast %c7_i32_70 : i32 to index
    %c0_75 = arith.constant 0 : index
    %c0_76 = arith.constant 0 : index
    %264 = vector.load %arg14[%263, %c0_75, %c0_76] : memref<8x8x128xf32, #tpu.memory_space<vmem>>, vector<1x8x32xf32>
    %265 = vector.shape_cast %264 : vector<1x8x32xf32> to vector<8x32xf32>
    %266 = vector.shape_cast %262 : vector<8x32xf32> to vector<1x8x32xf32>
    tpu.vector_store %arg14[%263, %c0_75, %c0_76], %266 {strides = array<i32>} : memref<8x8x128xf32, #tpu.memory_space<vmem>>, vector<1x8x32xf32>,
    %267 = vector.extract_strided_slice %261 {offsets = [0, 32], sizes = [8, 96], strides = [1, 1]} : vector<8x128xf32> to vector<8x96xf32>
    %c7_i32_77 = arith.constant 7 : i32
    %268 = arith.subi %c7_i32_77, %c7_i32_70 : i32
    %269 = arith.index_cast %268 : i32 to index
    %c0_78 = arith.constant 0 : index
    %c32_79 = arith.constant 32 : index
    %270 = vector.load %arg14[%269, %c0_78, %c32_79] : memref<8x8x128xf32, #tpu.memory_space<vmem>>, vector<1x8x96xf32>
    %271 = vector.shape_cast %270 : vector<1x8x96xf32> to vector<8x96xf32>
    %272 = vector.shape_cast %267 : vector<8x96xf32> to vector<1x8x96xf32>
    tpu.vector_store %arg14[%269, %c0_78, %c32_79], %272 {strides = array<i32>} : memref<8x8x128xf32, #tpu.memory_space<vmem>>, vector<1x8x96xf32>,
    %c8_i32_80 = arith.constant 8 : i32
    %c0_81 = arith.constant 0 : index
    %c0_82 = arith.constant 0 : index
    %c0_83 = arith.constant 0 : index
    %273 = vector.load %arg14[%c0_81, %c0_82, %c0_83] : memref<8x8x128xf32, #tpu.memory_space<vmem>>, vector<8x8x128xf32>
    %274 = vector.shape_cast %261 : vector<8x128xf32> to vector<1x8x128xf32>
    %275 = vector.broadcast %274 : vector<1x8x128xf32> to vector<8x8x128xf32>
    %276 = arith.mulf %273, %275 : vector<8x8x128xf32>
    %cst_84 = arith.constant dense<0.000000e+00> : vector<8x8xf32>
    %277 = vector.multi_reduction <add>, %276, %cst_84 [2] : vector<8x8x128xf32> to vector<8x8xf32>
    %278 = vector.shape_cast %277 : vector<8x8xf32> to vector<8x8x1xf32>
    %cst_85 = arith.constant dense<0xFF800000> : vector<8x1xf32>
    %279 = vector.multi_reduction <maximumf>, %278, %cst_85 [0] : vector<8x8x1xf32> to vector<8x1xf32>
    %280 = vector.shape_cast %279 : vector<8x1xf32> to vector<1x8x1xf32>
    %281 = vector.broadcast %280 : vector<1x8x1xf32> to vector<8x8x1xf32>
    %282 = arith.subf %278, %281 : vector<8x8x1xf32>
    %283 = math.exp %282 : vector<8x8x1xf32>
    %cst_86 = arith.constant dense<0.000000e+00> : vector<8x1xf32>
    %284 = vector.multi_reduction <add>, %283, %cst_86 [0] : vector<8x8x1xf32> to vector<8x1xf32>
    %285 = vector.shape_cast %284 : vector<8x1xf32> to vector<1x8x1xf32>
    %286 = tpu.reciprocal %285 {approx = true} : vector<1x8x1xf32> -> vector<1x8x1xf32>
    %287 = vector.broadcast %286 : vector<1x8x1xf32> to vector<8x8x1xf32>
    %288 = arith.mulf %283, %287 : vector<8x8x1xf32>
    %289 = vector.broadcast %288 : vector<8x8x1xf32> to vector<8x8x128xf32>
    %290 = arith.mulf %273, %289 : vector<8x8x128xf32>
    %cst_87 = arith.constant dense<0.000000e+00> : vector<8x128xf32>
    %291 = vector.multi_reduction <add>, %290, %cst_87 [0] : vector<8x8x128xf32> to vector<8x128xf32>
    %c0_88 = arith.constant 0 : index
    %c0_89 = arith.constant 0 : index
    %292 = vector.load %arg12[%c0_88, %c0_89] : memref<8x128xf32, #tpu.memory_space<vmem>>, vector<8x128xf32>
    tpu.vector_store %arg12[%c0_88, %c0_89], %291 {strides = array<i32>} : memref<8x128xf32, #tpu.memory_space<vmem>>, vector<8x128xf32>,
    %c0_90 = arith.constant 0 : index
    %c0_91 = arith.constant 0 : index
    %293 = vector.load %arg1[%c0_90, %c0_91] : memref<8x84xf32, #tpu.memory_space<vmem>>, vector<8x84xf32>
    %c0_92 = arith.constant 0 : index
    %c0_93 = arith.constant 0 : index
    %294 = vector.load %arg5[%c0_92, %c0_93] : memref<84x128xf32, #tpu.memory_space<vmem>>, vector<84x128xf32>
    %cst_94 = arith.constant dense<0.000000e+00> : vector<8x128xf32>
    %295 = tpu.matmul %293, %294, %cst_94 {dimension_numbers = #tpu.dot_dimension_numbers<[1], [0], [0], [1], [0, 0, 1, 1], [], []>} : vector<8x84xf32>, vector<84x128xf32>, vector<8x128xf32> -> vector<8x128xf32>
    %c0_95 = arith.constant 0 : index
    %c0_96 = arith.constant 0 : index
    %296 = vector.load %arg6[%c0_95, %c0_96] : memref<1x128xf32, #tpu.memory_space<vmem>>, vector<1x128xf32>
    %297 = vector.broadcast %296 : vector<1x128xf32> to vector<8x128xf32>
    %298 = arith.addf %295, %297 : vector<8x128xf32>
    %cst_97 = arith.constant 0.000000e+00 : f32
    %299 = vector.broadcast %cst_97 : f32 to vector<8x128xf32>
    %300 = arith.maximumf %298, %299 : vector<8x128xf32>
    %301 = tpu.concatenate %291, %300 in 1 : vector<8x128xf32>, vector<8x128xf32> -> vector<8x256xf32>
    %c0_98 = arith.constant 0 : index
    %c0_99 = arith.constant 0 : index
    %302 = vector.load %arg7[%c0_98, %c0_99] : memref<256x100xf32, #tpu.memory_space<vmem>>, vector<256x100xf32>
    %cst_100 = arith.constant dense<0.000000e+00> : vector<8x100xf32>
    %303 = tpu.matmul %301, %302, %cst_100 {dimension_numbers = #tpu.dot_dimension_numbers<[1], [0], [0], [1], [0, 0, 1, 1], [], []>} : vector<8x256xf32>, vector<256x100xf32>, vector<8x100xf32> -> vector<8x100xf32>
    %c0_101 = arith.constant 0 : index
    %c0_102 = arith.constant 0 : index
    %304 = vector.load %arg8[%c0_101, %c0_102] : memref<1x100xf32, #tpu.memory_space<vmem>>, vector<1x100xf32>
    %305 = vector.broadcast %304 : vector<1x100xf32> to vector<8x100xf32>
    %306 = arith.addf %303, %305 : vector<8x100xf32>
    %cst_103 = arith.constant 0.000000e+00 : f32
    %307 = vector.broadcast %cst_103 : f32 to vector<8x100xf32>
    %308 = arith.maximumf %306, %307 : vector<8x100xf32>
    %c0_104 = arith.constant 0 : index
    %c0_105 = arith.constant 0 : index
    %309 = vector.load %arg9[%c0_104, %c0_105] : memref<100x6xf32, #tpu.memory_space<vmem>>, vector<100x6xf32>
    %cst_106 = arith.constant dense<0.000000e+00> : vector<8x6xf32>
    %310 = tpu.matmul %308, %309, %cst_106 {dimension_numbers = #tpu.dot_dimension_numbers<[1], [0], [0], [1], [0, 0, 1, 1], [], []>} : vector<8x100xf32>, vector<100x6xf32>, vector<8x6xf32> -> vector<8x6xf32>
    %c0_107 = arith.constant 0 : index
    %c0_108 = arith.constant 0 : index
    %311 = vector.load %arg10[%c0_107, %c0_108] : memref<1x6xf32, #tpu.memory_space<vmem>>, vector<1x6xf32>
    %312 = vector.broadcast %311 : vector<1x6xf32> to vector<8x6xf32>
    %313 = arith.addf %310, %312 : vector<8x6xf32>
    %cst_109 = arith.constant dense<0xFF800000> : vector<8xf32>
    %314 = vector.multi_reduction <maximumf>, %313, %cst_109 [1] : vector<8x6xf32> to vector<8xf32>
    %315 = vector.shape_cast %314 : vector<8xf32> to vector<8x1xf32>
    %316 = vector.broadcast %315 : vector<8x1xf32> to vector<8x6xf32>
    %317 = arith.subf %313, %316 : vector<8x6xf32>
    %318 = math.exp %317 : vector<8x6xf32>
    %cst_110 = arith.constant dense<0.000000e+00> : vector<8xf32>
    %319 = vector.multi_reduction <add>, %318, %cst_110 [1] : vector<8x6xf32> to vector<8xf32>
    %320 = vector.shape_cast %319 : vector<8xf32> to vector<8x1xf32>
    %321 = vector.broadcast %320 : vector<8x1xf32> to vector<8x6xf32>
    %322 = arith.divf %318, %321 : vector<8x6xf32>
    %c0_111 = arith.constant 0 : index
    %c0_112 = arith.constant 0 : index
    %323 = vector.load %arg11[%c0_111, %c0_112] : memref<8x6xf32, #tpu.memory_space<vmem>>, vector<8x6xf32>
    tpu.vector_store %arg11[%c0_111, %c0_112], %322 {strides = array<i32>} : memref<8x6xf32, #tpu.memory_space<vmem>>, vector<8x6xf32>,
    return
  }
}

</mosaic_0001>

<llo_original>
// kernel: hybrid_attention_lstm_forward.1
$region0: #{hybrid_attention_lstm_forward.1}
  #allocation0 [shape = 'u32[]', space=smem, size = 0x4, offset = 0x4, fixed_abs, tag = 'smem constant byte address 0x4 - core index']
  #allocation1 [shape = 'u32[144,128]{1,0:T(1,128)}', space=vmem, size = 0x12000, scoped, tag = 'internal scratch']
  #allocation2 [shape = 'f32[64,512]{1,0:T(8,128)}', space=vmem, size = 0x20000, scoped, tag = 'scratch operand']
  #allocation3 [shape = 'f32[8,8,128]{2,1,0:T(8,128)}', space=vmem, size = 0x8000, scoped, tag = 'scratch operand']
  %s0 = inlined_call_operand.vmem [shape: f32[64,128], index: 0, kind: input, shape index: {}]
  %s1 = inlined_call_operand.vmem [shape: f32[8,84], index: 1, kind: input, shape index: {}]
  %s2 = inlined_call_operand.vmem [shape: f32[128,512], index: 2, kind: input, shape index: {}]
  %s3 = inlined_call_operand.vmem [shape: f32[128,512], index: 3, kind: input, shape index: {}]
  %s4 = inlined_call_operand.vmem [shape: f32[1,512], index: 4, kind: input, shape index: {}]
  %s5 = inlined_call_operand.vmem [shape: f32[84,128], index: 5, kind: input, shape index: {}]
  %s6 = inlined_call_operand.vmem [shape: f32[1,128], index: 6, kind: input, shape index: {}]
  %s7 = inlined_call_operand.vmem [shape: f32[256,100], index: 7, kind: input, shape index: {}]
  %s8 = inlined_call_operand.vmem [shape: f32[1,100], index: 8, kind: input, shape index: {}]
  %s9 = inlined_call_operand.vmem [shape: f32[100,6], index: 9, kind: input, shape index: {}]
  %s10 = inlined_call_operand.vmem [shape: f32[1,6], index: 10, kind: input, shape index: {}]
  %s11 = inlined_call_operand.hbm [shape: f32[8,6], index: 11, kind: output, shape index: {0}]
  %s12 = inlined_call_operand.hbm [shape: f32[8,128], index: 12, kind: output, shape index: {1}]
  %13 = xla_tuple %s11, %s12
  %s14 = sld [smem:[#allocation0]]
  $region62: #{hybrid_attention_lstm_forward.1} parent=0
    _
  %s16 = ssub.s32 1, %s14
  %s17 = scalar_select 0, %s16, %s14
  $region1: #{hybrid_attention_lstm_forward.1} parent=0
    #allocation4 [shape = 'u8[4096]{0}', space=vmem, size = 0x1000, scoped, tag = 'output window, operand 0, single buffered']
    #allocation5 [shape = 's32[1]{0}', space=sflag, size = 0x4, scoped, tag = 'scoped memory for hybrid_attention_lstm_forward.1']
    #allocation6 [shape = 'u8[4096]{0}', space=vmem, size = 0x1000, scoped, tag = 'output window, operand 1, single buffered']
    #allocation7 [shape = 's32[1]{0}', space=sflag, size = 0x4, scoped, tag = 'scoped memory for hybrid_attention_lstm_forward.1']
    %18 = vsyncpa [#allocation5], 0
    %19 = vsyncpa [#allocation7], 0
    // Predicated region
    $region2: #{hybrid_attention_lstm_forward.1} parent=1 // pred_check
      _
    $region3: #{hybrid_attention_lstm_forward.1} parent=1 // pred_check_branch
      %21 = sbr.rel (0) target = $region5
    $region4: #{hybrid_attention_lstm_forward.1} parent=1 // pred_region
      _
    $region5: #{hybrid_attention_lstm_forward.1} parent=1 // pred_fallthru
      _
    // Predicated region
    $region6: #{hybrid_attention_lstm_forward.1} parent=1 // pred_check
      _
    $region7: #{hybrid_attention_lstm_forward.1} parent=1 // pred_check_branch
      %23 = sbr.rel (0) target = $region9
    $region8: #{hybrid_attention_lstm_forward.1} parent=1 // pred_region
      _
    $region9: #{hybrid_attention_lstm_forward.1} parent=1 // pred_fallthru
      _
    // Predicated region
    $region10: #{hybrid_attention_lstm_forward.1} parent=1 // pred_check
      _
    $region11: #{hybrid_attention_lstm_forward.1} parent=1 // pred_check_branch
      %25 = sbr.rel (0) target = $region13
    $region12: #{hybrid_attention_lstm_forward.1} parent=1 // pred_region
      _
    $region13: #{hybrid_attention_lstm_forward.1} parent=1 // pred_fallthru
      _
    // Predicated region
    $region14: #{hybrid_attention_lstm_forward.1} parent=1 // pred_check
      _
    $region15: #{hybrid_attention_lstm_forward.1} parent=1 // pred_check_branch
      %27 = sbr.rel (0) target = $region17
    $region16: #{hybrid_attention_lstm_forward.1} parent=1 // pred_region
      _
    $region17: #{hybrid_attention_lstm_forward.1} parent=1 // pred_fallthru
      _
    // Predicated region
    $region18: #{hybrid_attention_lstm_forward.1} parent=1 // pred_check
      _
    $region19: #{hybrid_attention_lstm_forward.1} parent=1 // pred_check_branch
      %29 = sbr.rel (0) target = $region21
    $region20: #{hybrid_attention_lstm_forward.1} parent=1 // pred_region
      _
    $region21: #{hybrid_attention_lstm_forward.1} parent=1 // pred_fallthru
      _
    // Predicated region
    $region22: #{hybrid_attention_lstm_forward.1} parent=1 // pred_check
      _
    $region23: #{hybrid_attention_lstm_forward.1} parent=1 // pred_check_branch
      %31 = sbr.rel (0) target = $region25
    $region24: #{hybrid_attention_lstm_forward.1} parent=1 // pred_region
      _
    $region25: #{hybrid_attention_lstm_forward.1} parent=1 // pred_fallthru
      _
    // Predicated region
    $region26: #{hybrid_attention_lstm_forward.1} parent=1 // pred_check
      _
    $region27: #{hybrid_attention_lstm_forward.1} parent=1 // pred_check_branch
      %33 = sbr.rel (0) target = $region29
    $region28: #{hybrid_attention_lstm_forward.1} parent=1 // pred_region
      _
    $region29: #{hybrid_attention_lstm_forward.1} parent=1 // pred_fallthru
      _
    // Predicated region
    $region30: #{hybrid_attention_lstm_forward.1} parent=1 // pred_check
      _
    $region31: #{hybrid_attention_lstm_forward.1} parent=1 // pred_check_branch
      %35 = sbr.rel (0) target = $region33
    $region32: #{hybrid_attention_lstm_forward.1} parent=1 // pred_region
      _
    $region33: #{hybrid_attention_lstm_forward.1} parent=1 // pred_fallthru
      _
    // Predicated region
    $region34: #{hybrid_attention_lstm_forward.1} parent=1 // pred_check
      _
    $region35: #{hybrid_attention_lstm_forward.1} parent=1 // pred_check_branch
      %37 = sbr.rel (0) target = $region37
    $region36: #{hybrid_attention_lstm_forward.1} parent=1 // pred_region
      _
    $region37: #{hybrid_attention_lstm_forward.1} parent=1 // pred_fallthru
      _
    // Predicated region
    $region38: #{hybrid_attention_lstm_forward.1} parent=1 // pred_check
      _
    $region39: #{hybrid_attention_lstm_forward.1} parent=1 // pred_check_branch
      %39 = sbr.rel (0) target = $region41
    $region40: #{hybrid_attention_lstm_forward.1} parent=1 // pred_region
      _
    $region41: #{hybrid_attention_lstm_forward.1} parent=1 // pred_fallthru
      _
    // Predicated region
    $region42: #{hybrid_attention_lstm_forward.1} parent=1 // pred_check
      _
    $region43: #{hybrid_attention_lstm_forward.1} parent=1 // pred_check_branch
      %41 = sbr.rel (0) target = $region45
    $region44: #{hybrid_attention_lstm_forward.1} parent=1 // pred_region
      _
    $region45: #{hybrid_attention_lstm_forward.1} parent=1 // pred_fallthru
      _
    %v42 = vld [vmem:[%s0] sm:$0xff]
    %v43 = vld [vmem:[%s0 + $0x8] sm:$0xff]
    %v44 = vld [vmem:[%s0 + $0x10] sm:$0xff]
    %v45 = vld [vmem:[%s0 + $0x18] sm:$0xff]
    %v46 = vld [vmem:[%s0 + $0x20] sm:$0xff]
    %v47 = vld [vmem:[%s0 + $0x28] sm:$0xff]
    %v48 = vld [vmem:[%s0 + $0x30] sm:$0xff]
    %v49 = vld [vmem:[%s0 + $0x38] sm:$0xff]
    %v50 = vld [vmem:[%s2] sm:$0xff]
    %v51 = vld [vmem:[%s2 + $0x8] sm:$0xff]
    %v52 = vld [vmem:[%s2 + $0x10] sm:$0xff]
    %v53 = vld [vmem:[%s2 + $0x18] sm:$0xff]
    %v54 = vld [vmem:[%s2 + $0x20] sm:$0xff]
    %v55 = vld [vmem:[%s2 + $0x28] sm:$0xff]
    %v56 = vld [vmem:[%s2 + $0x30] sm:$0xff]
    %v57 = vld [vmem:[%s2 + $0x38] sm:$0xff]
    %v58 = vld [vmem:[%s2 + $0x40] sm:$0xff]
    %v59 = vld [vmem:[%s2 + $0x48] sm:$0xff]
    %v60 = vld [vmem:[%s2 + $0x50] sm:$0xff]
    %v61 = vld [vmem:[%s2 + $0x58] sm:$0xff]
    %v62 = vld [vmem:[%s2 + $0x60] sm:$0xff]
    %v63 = vld [vmem:[%s2 + $0x68] sm:$0xff]
    %v64 = vld [vmem:[%s2 + $0x70] sm:$0xff]
    %v65 = vld [vmem:[%s2 + $0x78] sm:$0xff]
    %v66 = vld [vmem:[%s2 + $0x80] sm:$0xff]
    %v67 = vld [vmem:[%s2 + $0x88] sm:$0xff]
    %v68 = vld [vmem:[%s2 + $0x90] sm:$0xff]
    %v69 = vld [vmem:[%s2 + $0x98] sm:$0xff]
    %v70 = vld [vmem:[%s2 + $0xa0] sm:$0xff]
    %v71 = vld [vmem:[%s2 + $0xa8] sm:$0xff]
    %v72 = vld [vmem:[%s2 + $0xb0] sm:$0xff]
    %v73 = vld [vmem:[%s2 + $0xb8] sm:$0xff]
    %v74 = vld [vmem:[%s2 + $0xc0] sm:$0xff]
    %v75 = vld [vmem:[%s2 + $0xc8] sm:$0xff]
    %v76 = vld [vmem:[%s2 + $0xd0] sm:$0xff]
    %v77 = vld [vmem:[%s2 + $0xd8] sm:$0xff]
    %v78 = vld [vmem:[%s2 + $0xe0] sm:$0xff]
    %v79 = vld [vmem:[%s2 + $0xe8] sm:$0xff]
    %v80 = vld [vmem:[%s2 + $0xf0] sm:$0xff]
    %v81 = vld [vmem:[%s2 + $0xf8] sm:$0xff]
    %v82 = vld [vmem:[%s2 + $0x100] sm:$0xff]
    %v83 = vld [vmem:[%s2 + $0x108] sm:$0xff]
    %v84 = vld [vmem:[%s2 + $0x110] sm:$0xff]
    %v85 = vld [vmem:[%s2 + $0x118] sm:$0xff]
    %v86 = vld [vmem:[%s2 + $0x120] sm:$0xff]
    %v87 = vld [vmem:[%s2 + $0x128] sm:$0xff]
    %v88 = vld [vmem:[%s2 + $0x130] sm:$0xff]
    %v89 = vld [vmem:[%s2 + $0x138] sm:$0xff]
    %v90 = vld [vmem:[%s2 + $0x140] sm:$0xff]
    %v91 = vld [vmem:[%s2 + $0x148] sm:$0xff]
    %v92 = vld [vmem:[%s2 + $0x150] sm:$0xff]
    %v93 = vld [vmem:[%s2 + $0x158] sm:$0xff]
    %v94 = vld [vmem:[%s2 + $0x160] sm:$0xff]
    %v95 = vld [vmem:[%s2 + $0x168] sm:$0xff]
    %v96 = vld [vmem:[%s2 + $0x170] sm:$0xff]
    %v97 = vld [vmem:[%s2 + $0x178] sm:$0xff]
    %v98 = vld [vmem:[%s2 + $0x180] sm:$0xff]
    %v99 = vld [vmem:[%s2 + $0x188] sm:$0xff]
    %v100 = vld [vmem:[%s2 + $0x190] sm:$0xff]
    %v101 = vld [vmem:[%s2 + $0x198] sm:$0xff]
    %v102 = vld [vmem:[%s2 + $0x1a0] sm:$0xff]
    %v103 = vld [vmem:[%s2 + $0x1a8] sm:$0xff]
    %v104 = vld [vmem:[%s2 + $0x1b0] sm:$0xff]
    %v105 = vld [vmem:[%s2 + $0x1b8] sm:$0xff]
    %v106 = vld [vmem:[%s2 + $0x1c0] sm:$0xff]
    %v107 = vld [vmem:[%s2 + $0x1c8] sm:$0xff]
    %v108 = vld [vmem:[%s2 + $0x1d0] sm:$0xff]
    %v109 = vld [vmem:[%s2 + $0x1d8] sm:$0xff]
    %v110 = vld [vmem:[%s2 + $0x1e0] sm:$0xff]
    %v111 = vld [vmem:[%s2 + $0x1e8] sm:$0xff]
    %v112 = vld [vmem:[%s2 + $0x1f0] sm:$0xff]
    %v113 = vld [vmem:[%s2 + $0x1f8] sm:$0xff]
    %v114 = vld [vmem:[%s4] sm:$0xf]
    %v116 = vlaneseq
    %v117 = vshrl.u32 %v116, 7
    %v118 = vsub.s32 0, %v117
    %v119 = vrot.slane %v114, %v118
    %v120 = vlaneseq
    %v121 = vshrl.u32 %v120, 7
    %v122 = vsub.s32 1, %v121
    %v123 = vrot.slane %v114, %v122
    %v124 = vlaneseq
    %v125 = vshrl.u32 %v124, 7
    %v126 = vsub.s32 2, %v125
    %v127 = vrot.slane %v114, %v126
    %v128 = vlaneseq
    %v129 = vshrl.u32 %v128, 7
    %v130 = vsub.s32 3, %v129
    %v131 = vrot.slane %v114, %v130
    %136 = vmatprep.subr.mxu0 %v51
    %137 = vmatpush1.msra.mxu0 %v50
    %138 = vmatprep.subr.mxu0 %v55
    %139 = vmatpush1.msra.mxu0 %v54
    %140 = vmatprep.subr.mxu0 %v59
    %141 = vmatpush1.msra.mxu0 %v58
    %142 = vmatprep.subr.mxu0 %v63
    %143 = vmatpush1.msra.mxu0 %v62
    %144 = vmatprep.subr.mxu0 %v67
    %145 = vmatpush1.msra.mxu0 %v66
    %146 = vmatprep.subr.mxu0 %v71
    %147 = vmatpush1.msra.mxu0 %v70
    %148 = vmatprep.subr.mxu0 %v75
    %149 = vmatpush1.msra.mxu0 %v74
    %150 = vmatprep.subr.mxu0 %v79
    %151 = vmatpush1.msra.mxu0 %v78
    %152 = vmatprep.subr.mxu0 %v83
    %153 = vmatpush1.msra.mxu0 %v82
    %154 = vmatprep.subr.mxu0 %v87
    %155 = vmatpush1.msra.mxu0 %v86
    %156 = vmatprep.subr.mxu0 %v91
    %157 = vmatpush1.msra.mxu0 %v90
    %158 = vmatprep.subr.mxu0 %v95
    %159 = vmatpush1.msra.mxu0 %v94
    %160 = vmatprep.subr.mxu0 %v99
    %161 = vmatpush1.msra.mxu0 %v98
    %162 = vmatprep.subr.mxu0 %v103
    %163 = vmatpush1.msra.mxu0 %v102
    %164 = vmatprep.subr.mxu0 %v107
    %165 = vmatpush1.msra.mxu0 %v106
    %166 = vmatprep.subr.mxu0 %v111
    %167 = vmatpush1.msra.mxu0 %v110
    %168 = vmatprep.subr.mxu0 0.0
    %169 = vmatpush1.msra.mxu0 0.0
    %170 = vmatprep.subr.mxu0 0.0
    %171 = vmatpush1.msra.mxu0 0.0
    %172 = vmatprep.subr.mxu0 0.0
    %173 = vmatpush1.msra.mxu0 0.0
    %174 = vmatprep.subr.mxu0 0.0
    %175 = vmatpush1.msra.mxu0 0.0
    %176 = vmatprep.subr.mxu0 0.0
    %177 = vmatpush1.msra.mxu0 0.0
    %178 = vmatprep.subr.mxu0 0.0
    %179 = vmatpush1.msra.mxu0 0.0
    %180 = vmatprep.subr.mxu0 0.0
    %181 = vmatpush1.msra.mxu0 0.0
    %182 = vmatprep.subr.mxu0 0.0
    %183 = vmatpush1.msra.mxu0 0.0
    %184 = vmatprep.subr.mxu0 0.0
    %185 = vmatpush1.msra.mxu0 0.0
    %186 = vmatprep.subr.mxu0 0.0
    %187 = vmatpush1.msra.mxu0 0.0
    %188 = vmatprep.subr.mxu0 0.0
    %189 = vmatpush1.msra.mxu0 0.0
    %190 = vmatprep.subr.mxu0 0.0
    %191 = vmatpush1.msra.mxu0 0.0
    %192 = vmatprep.subr.mxu0 0.0
    %193 = vmatpush1.msra.mxu0 0.0
    %194 = vmatprep.subr.mxu0 0.0
    %195 = vmatpush1.msra.mxu0 0.0
    %196 = vmatprep.subr.mxu0 0.0
    %197 = vmatpush1.msra.mxu0 0.0
    %198 = vmatprep.subr.mxu0 0.0
    %199 = vmatpush1.msra.mxu0 0.0
    %200 = vmatprep.mubr.f32.mxu0 0.0
    %201 = vmatmul.mubr.f32.gmra.mrb[0].mxu0 %v42
    %v202 = vpop.f32.mrb[0].mxu0
    %v203 = vadd.f32 %v119, %v202
    %v204 = vpop.f32.mrb[0].mxu0
    %v205 = vadd.f32 %v123, %v204
    %206 = vmatprep.mubr.f32.mxu0 0.0
    %207 = vmatmul.mubr.f32.gmra.mrb[0].mxu0 %v43
    %v208 = vpop.f32.mrb[0].mxu0
    %v209 = vadd.f32 %v119, %v208
    %v210 = vpop.f32.mrb[0].mxu0
    %v211 = vadd.f32 %v123, %v210
    %212 = vmatprep.mubr.f32.mxu0 0.0
    %213 = vmatmul.mubr.f32.gmra.mrb[0].mxu0 %v44
    %v214 = vpop.f32.mrb[0].mxu0
    %v215 = vadd.f32 %v119, %v214
    %v216 = vpop.f32.mrb[0].mxu0
    %v217 = vadd.f32 %v123, %v216
    %218 = vmatprep.mubr.f32.mxu0 0.0
    %219 = vmatmul.mubr.f32.gmra.mrb[0].mxu0 %v45
    %v220 = vpop.f32.mrb[0].mxu0
    %v221 = vadd.f32 %v119, %v220
    %v222 = vpop.f32.mrb[0].mxu0
    %v223 = vadd.f32 %v123, %v222
    %224 = vmatprep.mubr.f32.mxu0 0.0
    %225 = vmatmul.mubr.f32.gmra.mrb[0].mxu0 %v46
    %v226 = vpop.f32.mrb[0].mxu0
    %v227 = vadd.f32 %v119, %v226
    %v228 = vpop.f32.mrb[0].mxu0
    %v229 = vadd.f32 %v123, %v228
    %230 = vmatprep.mubr.f32.mxu0 0.0
    %231 = vmatmul.mubr.f32.gmra.mrb[0].mxu0 %v47
    %v232 = vpop.f32.mrb[0].mxu0
    %v233 = vadd.f32 %v119, %v232
    %v234 = vpop.f32.mrb[0].mxu0
    %v235 = vadd.f32 %v123, %v234
    %236 = vmatprep.mubr.f32.mxu0 0.0
    %237 = vmatmul.mubr.f32.gmra.mrb[0].mxu0 %v48
    %v238 = vpop.f32.mrb[0].mxu0
    %v239 = vadd.f32 %v119, %v238
    %v240 = vpop.f32.mrb[0].mxu0
    %v241 = vadd.f32 %v123, %v240
    %242 = vmatprep.mubr.f32.mxu0 0.0
    %243 = vmatmul.mubr.f32.gmra.mrb[0].mxu0 %v49
    %v244 = vpop.f32.mrb[0].mxu0
    %v245 = vadd.f32 %v119, %v244
    %v246 = vpop.f32.mrb[0].mxu0
    %v247 = vadd.f32 %v123, %v246
    %248 = vdwg.mxu0
    %249 = vmatprep.subr.mxu0 %v53
    %250 = vmatpush1.msra.mxu0 %v52
    %251 = vmatprep.subr.mxu0 %v57
    %252 = vmatpush1.msra.mxu0 %v56
    %253 = vmatprep.subr.mxu0 %v61
    %254 = vmatpush1.msra.mxu0 %v60
    %255 = vmatprep.subr.mxu0 %v65
    %256 = vmatpush1.msra.mxu0 %v64
    %257 = vmatprep.subr.mxu0 %v69
    %258 = vmatpush1.msra.mxu0 %v68
    %259 = vmatprep.subr.mxu0 %v73
    %260 = vmatpush1.msra.mxu0 %v72
    %261 = vmatprep.subr.mxu0 %v77
    %262 = vmatpush1.msra.mxu0 %v76
    %263 = vmatprep.subr.mxu0 %v81
    %264 = vmatpush1.msra.mxu0 %v80
    %265 = vmatprep.subr.mxu0 %v85
    %266 = vmatpush1.msra.mxu0 %v84
    %267 = vmatprep.subr.mxu0 %v89
    %268 = vmatpush1.msra.mxu0 %v88
    %269 = vmatprep.subr.mxu0 %v93
    %270 = vmatpush1.msra.mxu0 %v92
    %271 = vmatprep.subr.mxu0 %v97
    %272 = vmatpush1.msra.mxu0 %v96
    %273 = vmatprep.subr.mxu0 %v101
    %274 = vmatpush1.msra.mxu0 %v100
    %275 = vmatprep.subr.mxu0 %v105
    %276 = vmatpush1.msra.mxu0 %v104
    %277 = vmatprep.subr.mxu0 %v109
    %278 = vmatpush1.msra.mxu0 %v108
    %279 = vmatprep.subr.mxu0 %v113
    %280 = vmatpush1.msra.mxu0 %v112
    %281 = vmatprep.subr.mxu0 0.0
    %282 = vmatpush1.msra.mxu0 0.0
    %283 = vmatprep.subr.mxu0 0.0
    %284 = vmatpush1.msra.mxu0 0.0
    %285 = vmatprep.subr.mxu0 0.0
    %286 = vmatpush1.msra.mxu0 0.0
    %287 = vmatprep.subr.mxu0 0.0
    %288 = vmatpush1.msra.mxu0 0.0
    %289 = vmatprep.subr.mxu0 0.0
    %290 = vmatpush1.msra.mxu0 0.0
    %291 = vmatprep.subr.mxu0 0.0
    %292 = vmatpush1.msra.mxu0 0.0
    %293 = vmatprep.subr.mxu0 0.0
    %294 = vmatpush1.msra.mxu0 0.0
    %295 = vmatprep.subr.mxu0 0.0
    %296 = vmatpush1.msra.mxu0 0.0
    %297 = vmatprep.subr.mxu0 0.0
    %298 = vmatpush1.msra.mxu0 0.0
    %299 = vmatprep.subr.mxu0 0.0
    %300 = vmatpush1.msra.mxu0 0.0
    %301 = vmatprep.subr.mxu0 0.0
    %302 = vmatpush1.msra.mxu0 0.0
    %303 = vmatprep.subr.mxu0 0.0
    %304 = vmatpush1.msra.mxu0 0.0
    %305 = vmatprep.subr.mxu0 0.0
    %306 = vmatpush1.msra.mxu0 0.0
    %307 = vmatprep.subr.mxu0 0.0
    %308 = vmatpush1.msra.mxu0 0.0
    %309 = vmatprep.subr.mxu0 0.0
    %310 = vmatpush1.msra.mxu0 0.0
    %311 = vmatprep.subr.mxu0 0.0
    %312 = vmatpush1.msra.mxu0 0.0
    %313 = vmatprep.mubr.f32.mxu0 0.0
    %314 = vmatmul.mubr.f32.gmra.mrb[0].mxu0 %v42
    %v315 = vpop.f32.mrb[0].mxu0
    %v316 = vadd.f32 %v127, %v315
    %v317 = vpop.f32.mrb[0].mxu0
    %v318 = vadd.f32 %v131, %v317
    %319 = vmatprep.mubr.f32.mxu0 0.0
    %320 = vmatmul.mubr.f32.gmra.mrb[0].mxu0 %v43
    %v321 = vpop.f32.mrb[0].mxu0
    %v322 = vadd.f32 %v127, %v321
    %v323 = vpop.f32.mrb[0].mxu0
    %v324 = vadd.f32 %v131, %v323
    %325 = vmatprep.mubr.f32.mxu0 0.0
    %326 = vmatmul.mubr.f32.gmra.mrb[0].mxu0 %v44
    %v327 = vpop.f32.mrb[0].mxu0
    %v328 = vadd.f32 %v127, %v327
    %v329 = vpop.f32.mrb[0].mxu0
    %v330 = vadd.f32 %v131, %v329
    %331 = vmatprep.mubr.f32.mxu0 0.0
    %332 = vmatmul.mubr.f32.gmra.mrb[0].mxu0 %v45
    %v333 = vpop.f32.mrb[0].mxu0
    %v334 = vadd.f32 %v127, %v333
    %v335 = vpop.f32.mrb[0].mxu0
    %v336 = vadd.f32 %v131, %v335
    %337 = vmatprep.mubr.f32.mxu0 0.0
    %338 = vmatmul.mubr.f32.gmra.mrb[0].mxu0 %v46
    %v339 = vpop.f32.mrb[0].mxu0
    %v340 = vadd.f32 %v127, %v339
    %v341 = vpop.f32.mrb[0].mxu0
    %v342 = vadd.f32 %v131, %v341
    %343 = vmatprep.mubr.f32.mxu0 0.0
    %344 = vmatmul.mubr.f32.gmra.mrb[0].mxu0 %v47
    %v345 = vpop.f32.mrb[0].mxu0
    %v346 = vadd.f32 %v127, %v345
    %v347 = vpop.f32.mrb[0].mxu0
    %v348 = vadd.f32 %v131, %v347
    %349 = vmatprep.mubr.f32.mxu0 0.0
    %350 = vmatmul.mubr.f32.gmra.mrb[0].mxu0 %v48
    %v351 = vpop.f32.mrb[0].mxu0
    %v352 = vadd.f32 %v127, %v351
    %v353 = vpop.f32.mrb[0].mxu0
    %v354 = vadd.f32 %v131, %v353
    %355 = vmatprep.mubr.f32.mxu0 0.0
    %356 = vmatmul.mubr.f32.gmra.mrb[0].mxu0 %v49
    %v357 = vpop.f32.mrb[0].mxu0
    %v358 = vadd.f32 %v127, %v357
    %v359 = vpop.f32.mrb[0].mxu0
    %v360 = vadd.f32 %v131, %v359
    %361 = vdwg.mxu0
    %362 = vst [vmem:[#allocation2] sm:$0xff] %v203
    %363 = vst [vmem:[#allocation2 + $0x8] sm:$0xff] %v205
    %364 = vst [vmem:[#allocation2 + $0x10] sm:$0xff] %v316
    %365 = vst [vmem:[#allocation2 + $0x18] sm:$0xff] %v318
    %366 = vst [vmem:[#allocation2 + $0x20] sm:$0xff] %v209
    %367 = vst [vmem:[#allocation2 + $0x28] sm:$0xff] %v211
    %368 = vst [vmem:[#allocation2 + $0x30] sm:$0xff] %v322
    %369 = vst [vmem:[#allocation2 + $0x38] sm:$0xff] %v324
    %370 = vst [vmem:[#allocation2 + $0x40] sm:$0xff] %v215
    %371 = vst [vmem:[#allocation2 + $0x48] sm:$0xff] %v217
    %372 = vst [vmem:[#allocation2 + $0x50] sm:$0xff] %v328
    %373 = vst [vmem:[#allocation2 + $0x58] sm:$0xff] %v330
    %374 = vst [vmem:[#allocation2 + $0x60] sm:$0xff] %v221
    %375 = vst [vmem:[#allocation2 + $0x68] sm:$0xff] %v223
    %376 = vst [vmem:[#allocation2 + $0x70] sm:$0xff] %v334
    %377 = vst [vmem:[#allocation2 + $0x78] sm:$0xff] %v336
    %378 = vst [vmem:[#allocation2 + $0x80] sm:$0xff] %v227
    %379 = vst [vmem:[#allocation2 + $0x88] sm:$0xff] %v229
    %380 = vst [vmem:[#allocation2 + $0x90] sm:$0xff] %v340
    %381 = vst [vmem:[#allocation2 + $0x98] sm:$0xff] %v342
    %382 = vst [vmem:[#allocation2 + $0xa0] sm:$0xff] %v233
    %383 = vst [vmem:[#allocation2 + $0xa8] sm:$0xff] %v235
    %384 = vst [vmem:[#allocation2 + $0xb0] sm:$0xff] %v346
    %385 = vst [vmem:[#allocation2 + $0xb8] sm:$0xff] %v348
    %386 = vst [vmem:[#allocation2 + $0xc0] sm:$0xff] %v239
    %387 = vst [vmem:[#allocation2 + $0xc8] sm:$0xff] %v241
    %388 = vst [vmem:[#allocation2 + $0xd0] sm:$0xff] %v352
    %389 = vst [vmem:[#allocation2 + $0xd8] sm:$0xff] %v354
    %390 = vst [vmem:[#allocation2 + $0xe0] sm:$0xff] %v245
    %391 = vst [vmem:[#allocation2 + $0xe8] sm:$0xff] %v247
    %392 = vst [vmem:[#allocation2 + $0xf0] sm:$0xff] %v358
    %393 = vst [vmem:[#allocation2 + $0xf8] sm:$0xff] %v360
    %v394 = vld [vmem:[%s3] sm:$0xff]
    %v395 = vld [vmem:[%s3 + $0x8] sm:$0xff]
    %v396 = vld [vmem:[%s3 + $0x10] sm:$0xff]
    %v397 = vld [vmem:[%s3 + $0x18] sm:$0xff]
    %v398 = vld [vmem:[%s3 + $0x20] sm:$0xff]
    %v399 = vld [vmem:[%s3 + $0x28] sm:$0xff]
    %v400 = vld [vmem:[%s3 + $0x30] sm:$0xff]
    %v401 = vld [vmem:[%s3 + $0x38] sm:$0xff]
    %v402 = vld [vmem:[%s3 + $0x40] sm:$0xff]
    %v403 = vld [vmem:[%s3 + $0x48] sm:$0xff]
    %v404 = vld [vmem:[%s3 + $0x50] sm:$0xff]
    %v405 = vld [vmem:[%s3 + $0x58] sm:$0xff]
    %v406 = vld [vmem:[%s3 + $0x60] sm:$0xff]
    %v407 = vld [vmem:[%s3 + $0x68] sm:$0xff]
    %v408 = vld [vmem:[%s3 + $0x70] sm:$0xff]
    %v409 = vld [vmem:[%s3 + $0x78] sm:$0xff]
    %v410 = vld [vmem:[%s3 + $0x80] sm:$0xff]
    %v411 = vld [vmem:[%s3 + $0x88] sm:$0xff]
    %v412 = vld [vmem:[%s3 + $0x90] sm:$0xff]
    %v413 = vld [vmem:[%s3 + $0x98] sm:$0xff]
    %v414 = vld [vmem:[%s3 + $0xa0] sm:$0xff]
    %v415 = vld [vmem:[%s3 + $0xa8] sm:$0xff]
    %v416 = vld [vmem:[%s3 + $0xb0] sm:$0xff]
    %v417 = vld [vmem:[%s3 + $0xb8] sm:$0xff]
    %v418 = vld [vmem:[%s3 + $0xc0] sm:$0xff]
    %v419 = vld [vmem:[%s3 + $0xc8] sm:$0xff]
    %v420 = vld [vmem:[%s3 + $0xd0] sm:$0xff]
    %v421 = vld [vmem:[%s3 + $0xd8] sm:$0xff]
    %v422 = vld [vmem:[%s3 + $0xe0] sm:$0xff]
    %v423 = vld [vmem:[%s3 + $0xe8] sm:$0xff]
    %v424 = vld [vmem:[%s3 + $0xf0] sm:$0xff]
    %v425 = vld [vmem:[%s3 + $0xf8] sm:$0xff]
    %v426 = vld [vmem:[%s3 + $0x100] sm:$0xff]
    %v427 = vld [vmem:[%s3 + $0x108] sm:$0xff]
    %v428 = vld [vmem:[%s3 + $0x110] sm:$0xff]
    %v429 = vld [vmem:[%s3 + $0x118] sm:$0xff]
    %v430 = vld [vmem:[%s3 + $0x120] sm:$0xff]
    %v431 = vld [vmem:[%s3 + $0x128] sm:$0xff]
    %v432 = vld [vmem:[%s3 + $0x130] sm:$0xff]
    %v433 = vld [vmem:[%s3 + $0x138] sm:$0xff]
    %v434 = vld [vmem:[%s3 + $0x140] sm:$0xff]
    %v435 = vld [vmem:[%s3 + $0x148] sm:$0xff]
    %v436 = vld [vmem:[%s3 + $0x150] sm:$0xff]
    %v437 = vld [vmem:[%s3 + $0x158] sm:$0xff]
    %v438 = vld [vmem:[%s3 + $0x160] sm:$0xff]
    %v439 = vld [vmem:[%s3 + $0x168] sm:$0xff]
    %v440 = vld [vmem:[%s3 + $0x170] sm:$0xff]
    %v441 = vld [vmem:[%s3 + $0x178] sm:$0xff]
    %v442 = vld [vmem:[%s3 + $0x180] sm:$0xff]
    %v443 = vld [vmem:[%s3 + $0x188] sm:$0xff]
    %v444 = vld [vmem:[%s3 + $0x190] sm:$0xff]
    %v445 = vld [vmem:[%s3 + $0x198] sm:$0xff]
    %v446 = vld [vmem:[%s3 + $0x1a0] sm:$0xff]
    %v447 = vld [vmem:[%s3 + $0x1a8] sm:$0xff]
    %v448 = vld [vmem:[%s3 + $0x1b0] sm:$0xff]
    %v449 = vld [vmem:[%s3 + $0x1b8] sm:$0xff]
    %v450 = vld [vmem:[%s3 + $0x1c0] sm:$0xff]
    %v451 = vld [vmem:[%s3 + $0x1c8] sm:$0xff]
    %v452 = vld [vmem:[%s3 + $0x1d0] sm:$0xff]
    %v453 = vld [vmem:[%s3 + $0x1d8] sm:$0xff]
    %v454 = vld [vmem:[%s3 + $0x1e0] sm:$0xff]
    %v455 = vld [vmem:[%s3 + $0x1e8] sm:$0xff]
    %v456 = vld [vmem:[%s3 + $0x1f0] sm:$0xff]
    %v457 = vld [vmem:[%s3 + $0x1f8] sm:$0xff]
    %s458 = smul.u32 0, 4
    %s459 = smul.addr %s458, 8
    %s460 = scalar_lea.vmem [#allocation2], %s459
    %v461 = vld [vmem:[%s460] sm:$0xff]
    %v462 = vld [vmem:[%s460 + $0x8] sm:$0xff]
    %v463 = vld [vmem:[%s460 + $0x10] sm:$0xff]
    %v464 = vld [vmem:[%s460 + $0x18] sm:$0xff]
    %465 = vmatprep.subr.mxu0 %v395
    %466 = vmatpush1.msra.mxu0 %v394
    %467 = vmatprep.subr.mxu0 %v399
    %468 = vmatpush1.msra.mxu0 %v398
    %469 = vmatprep.subr.mxu0 %v403
    %470 = vmatpush1.msra.mxu0 %v402
    %471 = vmatprep.subr.mxu0 %v407
    %472 = vmatpush1.msra.mxu0 %v406
    %473 = vmatprep.subr.mxu0 %v411
    %474 = vmatpush1.msra.mxu0 %v410
    %475 = vmatprep.subr.mxu0 %v415
    %476 = vmatpush1.msra.mxu0 %v414
    %477 = vmatprep.subr.mxu0 %v419
    %478 = vmatpush1.msra.mxu0 %v418
    %479 = vmatprep.subr.mxu0 %v423
    %480 = vmatpush1.msra.mxu0 %v422
    %481 = vmatprep.subr.mxu0 %v427
    %482 = vmatpush1.msra.mxu0 %v426
    %483 = vmatprep.subr.mxu0 %v431
    %484 = vmatpush1.msra.mxu0 %v430
    %485 = vmatprep.subr.mxu0 %v435
    %486 = vmatpush1.msra.mxu0 %v434
    %487 = vmatprep.subr.mxu0 %v439
    %488 = vmatpush1.msra.mxu0 %v438
    %489 = vmatprep.subr.mxu0 %v443
    %490 = vmatpush1.msra.mxu0 %v442
    %491 = vmatprep.subr.mxu0 %v447
    %492 = vmatpush1.msra.mxu0 %v446
    %493 = vmatprep.subr.mxu0 %v451
    %494 = vmatpush1.msra.mxu0 %v450
    %495 = vmatprep.subr.mxu0 %v455
    %496 = vmatpush1.msra.mxu0 %v454
    %497 = vmatprep.subr.mxu0 0.0
    %498 = vmatpush1.msra.mxu0 0.0
    %499 = vmatprep.subr.mxu0 0.0
    %500 = vmatpush1.msra.mxu0 0.0
    %501 = vmatprep.subr.mxu0 0.0
    %502 = vmatpush1.msra.mxu0 0.0
    %503 = vmatprep.subr.mxu0 0.0
    %504 = vmatpush1.msra.mxu0 0.0
    %505 = vmatprep.subr.mxu0 0.0
    %506 = vmatpush1.msra.mxu0 0.0
    %507 = vmatprep.subr.mxu0 0.0
    %508 = vmatpush1.msra.mxu0 0.0
    %509 = vmatprep.subr.mxu0 0.0
    %510 = vmatpush1.msra.mxu0 0.0
    %511 = vmatprep.subr.mxu0 0.0
    %512 = vmatpush1.msra.mxu0 0.0
    %513 = vmatprep.subr.mxu0 0.0
    %514 = vmatpush1.msra.mxu0 0.0
    %515 = vmatprep.subr.mxu0 0.0
    %516 = vmatpush1.msra.mxu0 0.0
    %517 = vmatprep.subr.mxu0 0.0
    %518 = vmatpush1.msra.mxu0 0.0
    %519 = vmatprep.subr.mxu0 0.0
    %520 = vmatpush1.msra.mxu0 0.0
    %521 = vmatprep.subr.mxu0 0.0
    %522 = vmatpush1.msra.mxu0 0.0
    %523 = vmatprep.subr.mxu0 0.0
    %524 = vmatpush1.msra.mxu0 0.0
    %525 = vmatprep.subr.mxu0 0.0
    %526 = vmatpush1.msra.mxu0 0.0
    %527 = vmatprep.subr.mxu0 0.0
    %528 = vmatpush1.msra.mxu0 0.0
    %529 = vmatprep.mubr.f32.mxu0 0.0
    %530 = vmatmul.mubr.f32.gmra.mrb[0].mxu0 0.0
    %v531 = vpop.f32.mrb[0].mxu0
    %v532 = vadd.f32 0.0, %v531
    %v533 = vpop.f32.mrb[0].mxu0
    %v534 = vadd.f32 0.0, %v533
    %535 = vdwg.mxu0
    %536 = vmatprep.subr.mxu0 %v397
    %537 = vmatpush1.msra.mxu0 %v396
    %538 = vmatprep.subr.mxu0 %v401
    %539 = vmatpush1.msra.mxu0 %v400
    %540 = vmatprep.subr.mxu0 %v405
    %541 = vmatpush1.msra.mxu0 %v404
    %542 = vmatprep.subr.mxu0 %v409
    %543 = vmatpush1.msra.mxu0 %v408
    %544 = vmatprep.subr.mxu0 %v413
    %545 = vmatpush1.msra.mxu0 %v412
    %546 = vmatprep.subr.mxu0 %v417
    %547 = vmatpush1.msra.mxu0 %v416
    %548 = vmatprep.subr.mxu0 %v421
    %549 = vmatpush1.msra.mxu0 %v420
    %550 = vmatprep.subr.mxu0 %v425
    %551 = vmatpush1.msra.mxu0 %v424
    %552 = vmatprep.subr.mxu0 %v429
    %553 = vmatpush1.msra.mxu0 %v428
    %554 = vmatprep.subr.mxu0 %v433
    %555 = vmatpush1.msra.mxu0 %v432
    %556 = vmatprep.subr.mxu0 %v437
    %557 = vmatpush1.msra.mxu0 %v436
    %558 = vmatprep.subr.mxu0 %v441
    %559 = vmatpush1.msra.mxu0 %v440
    %560 = vmatprep.subr.mxu0 %v445
    %561 = vmatpush1.msra.mxu0 %v444
    %562 = vmatprep.subr.mxu0 %v449
    %563 = vmatpush1.msra.mxu0 %v448
    %564 = vmatprep.subr.mxu0 %v453
    %565 = vmatpush1.msra.mxu0 %v452
    %566 = vmatprep.subr.mxu0 %v457
    %567 = vmatpush1.msra.mxu0 %v456
    %568 = vmatprep.subr.mxu0 0.0
    %569 = vmatpush1.msra.mxu0 0.0
    %570 = vmatprep.subr.mxu0 0.0
    %571 = vmatpush1.msra.mxu0 0.0
    %572 = vmatprep.subr.mxu0 0.0
    %573 = vmatpush1.msra.mxu0 0.0
    %574 = vmatprep.subr.mxu0 0.0
    %575 = vmatpush1.msra.mxu0 0.0
    %576 = vmatprep.subr.mxu0 0.0
    %577 = vmatpush1.msra.mxu0 0.0
    %578 = vmatprep.subr.mxu0 0.0
    %579 = vmatpush1.msra.mxu0 0.0
    %580 = vmatprep.subr.mxu0 0.0
    %581 = vmatpush1.msra.mxu0 0.0
    %582 = vmatprep.subr.mxu0 0.0
    %583 = vmatpush1.msra.mxu0 0.0
    %584 = vmatprep.subr.mxu0 0.0
    %585 = vmatpush1.msra.mxu0 0.0
    %586 = vmatprep.subr.mxu0 0.0
    %587 = vmatpush1.msra.mxu0 0.0
    %588 = vmatprep.subr.mxu0 0.0
    %589 = vmatpush1.msra.mxu0 0.0
    %590 = vmatprep.subr.mxu0 0.0
    %591 = vmatpush1.msra.mxu0 0.0
    %592 = vmatprep.subr.mxu0 0.0
    %593 = vmatpush1.msra.mxu0 0.0
    %594 = vmatprep.subr.mxu0 0.0
    %595 = vmatpush1.msra.mxu0 0.0
    %596 = vmatprep.subr.mxu0 0.0
    %597 = vmatpush1.msra.mxu0 0.0
    %598 = vmatprep.subr.mxu0 0.0
    %599 = vmatpush1.msra.mxu0 0.0
    %600 = vmatprep.mubr.f32.mxu0 0.0
    %601 = vmatmul.mubr.f32.gmra.mrb[0].mxu0 0.0
    %v602 = vpop.f32.mrb[0].mxu0
    %v603 = vadd.f32 0.0, %v602
    %v604 = vpop.f32.mrb[0].mxu0
    %v605 = vadd.f32 0.0, %v604
    %606 = vdwg.mxu0
    %v607 = vadd.f32 %v461, %v532
    %v608 = vadd.f32 %v462, %v534
    %v609 = vadd.f32 %v463, %v603
    %v610 = vadd.f32 %v464, %v605
    %v611 = vxor.u32 %v607, 2147483648
    %v612 = vxor.u32 %v608, 2147483648
    %v613 = vxor.u32 %v609, 2147483648
    %v614 = vmul.f32 %v611, 1.442695
    %v615 = vpow.pop %v614
    %v616 = vmul.f32 %v612, 1.442695
    %v617 = vpow.pop %v616
    %v618 = vmul.f32 %v613, 1.442695
    %v619 = vpow.pop %v618
    %v620 = vadd.f32 %v615, 1.0
    %v621 = vadd.f32 %v617, 1.0
    %v622 = vadd.f32 %v619, 1.0
    %v623 = vrcp.pop %v620
    %v624 = vmul.f32 1.0, %v623
    %v625 = vrcp.pop %v621
    %v626 = vmul.f32 1.0, %v625
    %v627 = vrcp.pop %v622
    %v628 = vmul.f32 1.0, %v627
    %v629 = vtanh.pop %v610
    %v630 = vmul.f32 %v626, 0.0
    %v631 = vmul.f32 %v624, %v629
    %v632 = vadd.f32 %v630, %v631
    %v633 = vtanh.pop %v632
    %v634 = vmul.f32 %v628, %v633
    %vm635 = vcmask 261120
    %636 = vst.msk [vmem:[#allocation3] sm:$0xff] %vm635, %v634
    %s637 = scalar_lea.vmem [#allocation3], 56
    %vm638 = vcmask 1047808
    %639 = vst.msk [vmem:[%s637] sm:$0xff] %vm638, %v634
    %s640 = smul.u32 1, 4
    %s641 = smul.addr %s640, 8
    %s642 = scalar_lea.vmem [#allocation2], %s641
    %v643 = vld [vmem:[%s642] sm:$0xff]
    %v644 = vld [vmem:[%s642 + $0x8] sm:$0xff]
    %v645 = vld [vmem:[%s642 + $0x10] sm:$0xff]
    %v646 = vld [vmem:[%s642 + $0x18] sm:$0xff]
    %647 = vmatprep.subr.mxu0 %v395
    %648 = vmatpush1.msra.mxu0 %v394
    %649 = vmatprep.subr.mxu0 %v399
    %650 = vmatpush1.msra.mxu0 %v398
    %651 = vmatprep.subr.mxu0 %v403
    %652 = vmatpush1.msra.mxu0 %v402
    %653 = vmatprep.subr.mxu0 %v407
    %654 = vmatpush1.msra.mxu0 %v406
    %655 = vmatprep.subr.mxu0 %v411
    %656 = vmatpush1.msra.mxu0 %v410
    %657 = vmatprep.subr.mxu0 %v415
    %658 = vmatpush1.msra.mxu0 %v414
    %659 = vmatprep.subr.mxu0 %v419
    %660 = vmatpush1.msra.mxu0 %v418
    %661 = vmatprep.subr.mxu0 %v423
    %662 = vmatpush1.msra.mxu0 %v422
    %663 = vmatprep.subr.mxu0 %v427
    %664 = vmatpush1.msra.mxu0 %v426
    %665 = vmatprep.subr.mxu0 %v431
    %666 = vmatpush1.msra.mxu0 %v430
    %667 = vmatprep.subr.mxu0 %v435
    %668 = vmatpush1.msra.mxu0 %v434
    %669 = vmatprep.subr.mxu0 %v439
    %670 = vmatpush1.msra.mxu0 %v438
    %671 = vmatprep.subr.mxu0 %v443
    %672 = vmatpush1.msra.mxu0 %v442
    %673 = vmatprep.subr.mxu0 %v447
    %674 = vmatpush1.msra.mxu0 %v446
    %675 = vmatprep.subr.mxu0 %v451
    %676 = vmatpush1.msra.mxu0 %v450
    %677 = vmatprep.subr.mxu0 %v455
    %678 = vmatpush1.msra.mxu0 %v454
    %679 = vmatprep.subr.mxu0 0.0
    %680 = vmatpush1.msra.mxu0 0.0
    %681 = vmatprep.subr.mxu0 0.0
    %682 = vmatpush1.msra.mxu0 0.0
    %683 = vmatprep.subr.mxu0 0.0
    %684 = vmatpush1.msra.mxu0 0.0
    %685 = vmatprep.subr.mxu0 0.0
    %686 = vmatpush1.msra.mxu0 0.0
    %687 = vmatprep.subr.mxu0 0.0
    %688 = vmatpush1.msra.mxu0 0.0
    %689 = vmatprep.subr.mxu0 0.0
    %690 = vmatpush1.msra.mxu0 0.0
    %691 = vmatprep.subr.mxu0 0.0
    %692 = vmatpush1.msra.mxu0 0.0
    %693 = vmatprep.subr.mxu0 0.0
    %694 = vmatpush1.msra.mxu0 0.0
    %695 = vmatprep.subr.mxu0 0.0
    %696 = vmatpush1.msra.mxu0 0.0
    %697 = vmatprep.subr.mxu0 0.0
    %698 = vmatpush1.msra.mxu0 0.0
    %699 = vmatprep.subr.mxu0 0.0
    %700 = vmatpush1.msra.mxu0 0.0
    %701 = vmatprep.subr.mxu0 0.0
    %702 = vmatpush1.msra.mxu0 0.0
    %703 = vmatprep.subr.mxu0 0.0
    %704 = vmatpush1.msra.mxu0 0.0
    %705 = vmatprep.subr.mxu0 0.0
    %706 = vmatpush1.msra.mxu0 0.0
    %707 = vmatprep.subr.mxu0 0.0
    %708 = vmatpush1.msra.mxu0 0.0
    %709 = vmatprep.subr.mxu0 0.0
    %710 = vmatpush1.msra.mxu0 0.0
    %711 = vmatprep.mubr.f32.mxu0 0.0
    %712 = vmatmul.mubr.f32.gmra.mrb[0].mxu0 %v634
    %v713 = vpop.f32.mrb[0].mxu0
    %v714 = vadd.f32 0.0, %v713
    %v715 = vpop.f32.mrb[0].mxu0
    %v716 = vadd.f32 0.0, %v715
    %717 = vdwg.mxu0
    %718 = vmatprep.subr.mxu0 %v397
    %719 = vmatpush1.msra.mxu0 %v396
    %720 = vmatprep.subr.mxu0 %v401
    %721 = vmatpush1.msra.mxu0 %v400
    %722 = vmatprep.subr.mxu0 %v405
    %723 = vmatpush1.msra.mxu0 %v404
    %724 = vmatprep.subr.mxu0 %v409
    %725 = vmatpush1.msra.mxu0 %v408
    %726 = vmatprep.subr.mxu0 %v413
    %727 = vmatpush1.msra.mxu0 %v412
    %728 = vmatprep.subr.mxu0 %v417
    %729 = vmatpush1.msra.mxu0 %v416
    %730 = vmatprep.subr.mxu0 %v421
    %731 = vmatpush1.msra.mxu0 %v420
    %732 = vmatprep.subr.mxu0 %v425
    %733 = vmatpush1.msra.mxu0 %v424
    %734 = vmatprep.subr.mxu0 %v429
    %735 = vmatpush1.msra.mxu0 %v428
    %736 = vmatprep.subr.mxu0 %v433
    %737 = vmatpush1.msra.mxu0 %v432
    %738 = vmatprep.subr.mxu0 %v437
    %739 = vmatpush1.msra.mxu0 %v436
    %740 = vmatprep.subr.mxu0 %v441
    %741 = vmatpush1.msra.mxu0 %v440
    %742 = vmatprep.subr.mxu0 %v445
    %743 = vmatpush1.msra.mxu0 %v444
    %744 = vmatprep.subr.mxu0 %v449
    %745 = vmatpush1.msra.mxu0 %v448
    %746 = vmatprep.subr.mxu0 %v453
    %747 = vmatpush1.msra.mxu0 %v452
    %748 = vmatprep.subr.mxu0 %v457
    %749 = vmatpush1.msra.mxu0 %v456
    %750 = vmatprep.subr.mxu0 0.0
    %751 = vmatpush1.msra.mxu0 0.0
    %752 = vmatprep.subr.mxu0 0.0
    %753 = vmatpush1.msra.mxu0 0.0
    %754 = vmatprep.subr.mxu0 0.0
    %755 = vmatpush1.msra.mxu0 0.0
    %756 = vmatprep.subr.mxu0 0.0
    %757 = vmatpush1.msra.mxu0 0.0
    %758 = vmatprep.subr.mxu0 0.0
    %759 = vmatpush1.msra.mxu0 0.0
    %760 = vmatprep.subr.mxu0 0.0
    %761 = vmatpush1.msra.mxu0 0.0
    %762 = vmatprep.subr.mxu0 0.0
    %763 = vmatpush1.msra.mxu0 0.0
    %764 = vmatprep.subr.mxu0 0.0
    %765 = vmatpush1.msra.mxu0 0.0
    %766 = vmatprep.subr.mxu0 0.0
    %767 = vmatpush1.msra.mxu0 0.0
    %768 = vmatprep.subr.mxu0 0.0
    %769 = vmatpush1.msra.mxu0 0.0
    %770 = vmatprep.subr.mxu0 0.0
    %771 = vmatpush1.msra.mxu0 0.0
    %772 = vmatprep.subr.mxu0 0.0
    %773 = vmatpush1.msra.mxu0 0.0
    %774 = vmatprep.subr.mxu0 0.0
    %775 = vmatpush1.msra.mxu0 0.0
    %776 = vmatprep.subr.mxu0 0.0
    %777 = vmatpush1.msra.mxu0 0.0
    %778 = vmatprep.subr.mxu0 0.0
    %779 = vmatpush1.msra.mxu0 0.0
    %780 = vmatprep.subr.mxu0 0.0
    %781 = vmatpush1.msra.mxu0 0.0
    %782 = vmatprep.mubr.f32.mxu0 0.0
    %783 = vmatmul.mubr.f32.gmra.mrb[0].mxu0 %v634
    %v784 = vpop.f32.mrb[0].mxu0
    %v785 = vadd.f32 0.0, %v784
    %v786 = vpop.f32.mrb[0].mxu0
    %v787 = vadd.f32 0.0, %v786
    %788 = vdwg.mxu0
    %v789 = vadd.f32 %v643, %v714
    %v790 = vadd.f32 %v644, %v716
    %v791 = vadd.f32 %v645, %v785
    %v792 = vadd.f32 %v646, %v787
    %v793 = vxor.u32 %v789, 2147483648
    %v794 = vxor.u32 %v790, 2147483648
    %v795 = vxor.u32 %v791, 2147483648
    %v796 = vmul.f32 %v793, 1.442695
    %v797 = vpow.pop %v796
    %v798 = vmul.f32 %v794, 1.442695
    %v799 = vpow.pop %v798
    %v800 = vmul.f32 %v795, 1.442695
    %v801 = vpow.pop %v800
    %v802 = vadd.f32 %v797, 1.0
    %v803 = vadd.f32 %v799, 1.0
    %v804 = vadd.f32 %v801, 1.0
    %v805 = vrcp.pop %v802
    %v806 = vmul.f32 1.0, %v805
    %v807 = vrcp.pop %v803
    %v808 = vmul.f32 1.0, %v807
    %v809 = vrcp.pop %v804
    %v810 = vmul.f32 1.0, %v809
    %v811 = vtanh.pop %v792
    %v812 = vmul.f32 %v808, %v632
    %v813 = vmul.f32 %v806, %v811
    %v814 = vadd.f32 %v812, %v813
    %v815 = vtanh.pop %v814
    %v816 = vmul.f32 %v810, %v815
    %s817 = scalar_lea.vmem [#allocation3], 8
    %818 = vst.msk [vmem:[%s817] sm:$0xff] %vm635, %v816
    %s819 = scalar_lea.vmem [#allocation3], 48
    %820 = vst.msk [vmem:[%s819] sm:$0xff] %vm638, %v816
    %s821 = smul.u32 2, 4
    %s822 = smul.addr %s821, 8
    %s823 = scalar_lea.vmem [#allocation2], %s822
    %v824 = vld [vmem:[%s823] sm:$0xff]
    %v825 = vld [vmem:[%s823 + $0x8] sm:$0xff]
    %v826 = vld [vmem:[%s823 + $0x10] sm:$0xff]
    %v827 = vld [vmem:[%s823 + $0x18] sm:$0xff]
    %828 = vmatprep.subr.mxu0 %v395
    %829 = vmatpush1.msra.mxu0 %v394
    %830 = vmatprep.subr.mxu0 %v399
    %831 = vmatpush1.msra.mxu0 %v398
    %832 = vmatprep.subr.mxu0 %v403
    %833 = vmatpush1.msra.mxu0 %v402
    %834 = vmatprep.subr.mxu0 %v407
    %835 = vmatpush1.msra.mxu0 %v406
    %836 = vmatprep.subr.mxu0 %v411
    %837 = vmatpush1.msra.mxu0 %v410
    %838 = vmatprep.subr.mxu0 %v415
    %839 = vmatpush1.msra.mxu0 %v414
    %840 = vmatprep.subr.mxu0 %v419
    %841 = vmatpush1.msra.mxu0 %v418
    %842 = vmatprep.subr.mxu0 %v423
    %843 = vmatpush1.msra.mxu0 %v422
    %844 = vmatprep.subr.mxu0 %v427
    %845 = vmatpush1.msra.mxu0 %v426
    %846 = vmatprep.subr.mxu0 %v431
    %847 = vmatpush1.msra.mxu0 %v430
    %848 = vmatprep.subr.mxu0 %v435
    %849 = vmatpush1.msra.mxu0 %v434
    %850 = vmatprep.subr.mxu0 %v439
    %851 = vmatpush1.msra.mxu0 %v438
    %852 = vmatprep.subr.mxu0 %v443
    %853 = vmatpush1.msra.mxu0 %v442
    %854 = vmatprep.subr.mxu0 %v447
    %855 = vmatpush1.msra.mxu0 %v446
    %856 = vmatprep.subr.mxu0 %v451
    %857 = vmatpush1.msra.mxu0 %v450
    %858 = vmatprep.subr.mxu0 %v455
    %859 = vmatpush1.msra.mxu0 %v454
    %860 = vmatprep.subr.mxu0 0.0
    %861 = vmatpush1.msra.mxu0 0.0
    %862 = vmatprep.subr.mxu0 0.0
    %863 = vmatpush1.msra.mxu0 0.0
    %864 = vmatprep.subr.mxu0 0.0
    %865 = vmatpush1.msra.mxu0 0.0
    %866 = vmatprep.subr.mxu0 0.0
    %867 = vmatpush1.msra.mxu0 0.0
    %868 = vmatprep.subr.mxu0 0.0
    %869 = vmatpush1.msra.mxu0 0.0
    %870 = vmatprep.subr.mxu0 0.0
    %871 = vmatpush1.msra.mxu0 0.0
    %872 = vmatprep.subr.mxu0 0.0
    %873 = vmatpush1.msra.mxu0 0.0
    %874 = vmatprep.subr.mxu0 0.0
    %875 = vmatpush1.msra.mxu0 0.0
    %876 = vmatprep.subr.mxu0 0.0
    %877 = vmatpush1.msra.mxu0 0.0
    %878 = vmatprep.subr.mxu0 0.0
    %879 = vmatpush1.msra.mxu0 0.0
    %880 = vmatprep.subr.mxu0 0.0
    %881 = vmatpush1.msra.mxu0 0.0
    %882 = vmatprep.subr.mxu0 0.0
    %883 = vmatpush1.msra.mxu0 0.0
    %884 = vmatprep.subr.mxu0 0.0
    %885 = vmatpush1.msra.mxu0 0.0
    %886 = vmatprep.subr.mxu0 0.0
    %887 = vmatpush1.msra.mxu0 0.0
    %888 = vmatprep.subr.mxu0 0.0
    %889 = vmatpush1.msra.mxu0 0.0
    %890 = vmatprep.subr.mxu0 0.0
    %891 = vmatpush1.msra.mxu0 0.0
    %892 = vmatprep.mubr.f32.mxu0 0.0
    %893 = vmatmul.mubr.f32.gmra.mrb[0].mxu0 %v816
    %v894 = vpop.f32.mrb[0].mxu0
    %v895 = vadd.f32 0.0, %v894
    %v896 = vpop.f32.mrb[0].mxu0
    %v897 = vadd.f32 0.0, %v896
    %898 = vdwg.mxu0
    %899 = vmatprep.subr.mxu0 %v397
    %900 = vmatpush1.msra.mxu0 %v396
    %901 = vmatprep.subr.mxu0 %v401
    %902 = vmatpush1.msra.mxu0 %v400
    %903 = vmatprep.subr.mxu0 %v405
    %904 = vmatpush1.msra.mxu0 %v404
    %905 = vmatprep.subr.mxu0 %v409
    %906 = vmatpush1.msra.mxu0 %v408
    %907 = vmatprep.subr.mxu0 %v413
    %908 = vmatpush1.msra.mxu0 %v412
    %909 = vmatprep.subr.mxu0 %v417
    %910 = vmatpush1.msra.mxu0 %v416
    %911 = vmatprep.subr.mxu0 %v421
    %912 = vmatpush1.msra.mxu0 %v420
    %913 = vmatprep.subr.mxu0 %v425
    %914 = vmatpush1.msra.mxu0 %v424
    %915 = vmatprep.subr.mxu0 %v429
    %916 = vmatpush1.msra.mxu0 %v428
    %917 = vmatprep.subr.mxu0 %v433
    %918 = vmatpush1.msra.mxu0 %v432
    %919 = vmatprep.subr.mxu0 %v437
    %920 = vmatpush1.msra.mxu0 %v436
    %921 = vmatprep.subr.mxu0 %v441
    %922 = vmatpush1.msra.mxu0 %v440
    %923 = vmatprep.subr.mxu0 %v445
    %924 = vmatpush1.msra.mxu0 %v444
    %925 = vmatprep.subr.mxu0 %v449
    %926 = vmatpush1.msra.mxu0 %v448
    %927 = vmatprep.subr.mxu0 %v453
    %928 = vmatpush1.msra.mxu0 %v452
    %929 = vmatprep.subr.mxu0 %v457
    %930 = vmatpush1.msra.mxu0 %v456
    %931 = vmatprep.subr.mxu0 0.0
    %932 = vmatpush1.msra.mxu0 0.0
    %933 = vmatprep.subr.mxu0 0.0
    %934 = vmatpush1.msra.mxu0 0.0
    %935 = vmatprep.subr.mxu0 0.0
    %936 = vmatpush1.msra.mxu0 0.0
    %937 = vmatprep.subr.mxu0 0.0
    %938 = vmatpush1.msra.mxu0 0.0
    %939 = vmatprep.subr.mxu0 0.0
    %940 = vmatpush1.msra.mxu0 0.0
    %941 = vmatprep.subr.mxu0 0.0
    %942 = vmatpush1.msra.mxu0 0.0
    %943 = vmatprep.subr.mxu0 0.0
    %944 = vmatpush1.msra.mxu0 0.0
    %945 = vmatprep.subr.mxu0 0.0
    %946 = vmatpush1.msra.mxu0 0.0
    %947 = vmatprep.subr.mxu0 0.0
    %948 = vmatpush1.msra.mxu0 0.0
    %949 = vmatprep.subr.mxu0 0.0
    %950 = vmatpush1.msra.mxu0 0.0
    %951 = vmatprep.subr.mxu0 0.0
    %952 = vmatpush1.msra.mxu0 0.0
    %953 = vmatprep.subr.mxu0 0.0
    %954 = vmatpush1.msra.mxu0 0.0
    %955 = vmatprep.subr.mxu0 0.0
    %956 = vmatpush1.msra.mxu0 0.0
    %957 = vmatprep.subr.mxu0 0.0
    %958 = vmatpush1.msra.mxu0 0.0
    %959 = vmatprep.subr.mxu0 0.0
    %960 = vmatpush1.msra.mxu0 0.0
    %961 = vmatprep.subr.mxu0 0.0
    %962 = vmatpush1.msra.mxu0 0.0
    %963 = vmatprep.mubr.f32.mxu0 0.0
    %964 = vmatmul.mubr.f32.gmra.mrb[0].mxu0 %v816
    %v965 = vpop.f32.mrb[0].mxu0
    %v966 = vadd.f32 0.0, %v965
    %v967 = vpop.f32.mrb[0].mxu0
    %v968 = vadd.f32 0.0, %v967
    %969 = vdwg.mxu0
    %v970 = vadd.f32 %v824, %v895
    %v971 = vadd.f32 %v825, %v897
    %v972 = vadd.f32 %v826, %v966
    %v973 = vadd.f32 %v827, %v968
    %v974 = vxor.u32 %v970, 2147483648
    %v975 = vxor.u32 %v971, 2147483648
    %v976 = vxor.u32 %v972, 2147483648
    %v977 = vmul.f32 %v974, 1.442695
    %v978 = vpow.pop %v977
    %v979 = vmul.f32 %v975, 1.442695
    %v980 = vpow.pop %v979
    %v981 = vmul.f32 %v976, 1.442695
    %v982 = vpow.pop %v981
    %v983 = vadd.f32 %v978, 1.0
    %v984 = vadd.f32 %v980, 1.0
    %v985 = vadd.f32 %v982, 1.0
    %v986 = vrcp.pop %v983
    %v987 = vmul.f32 1.0, %v986
    %v988 = vrcp.pop %v984
    %v989 = vmul.f32 1.0, %v988
    %v990 = vrcp.pop %v985
    %v991 = vmul.f32 1.0, %v990
    %v992 = vtanh.pop %v973
    %v993 = vmul.f32 %v989, %v814
    %v994 = vmul.f32 %v987, %v992
    %v995 = vadd.f32 %v993, %v994
    %v996 = vtanh.pop %v995
    %v997 = vmul.f32 %v991, %v996
    %s998 = scalar_lea.vmem [#allocation3], 16
    %999 = vst.msk [vmem:[%s998] sm:$0xff] %vm635, %v997
    %s1000 = scalar_lea.vmem [#allocation3], 40
    %1001 = vst.msk [vmem:[%s1000] sm:$0xff] %vm638, %v997
    %s1002 = smul.u32 3, 4
    %s1003 = smul.addr %s1002, 8
    %s1004 = scalar_lea.vmem [#allocation2], %s1003
    %v1005 = vld [vmem:[%s1004] sm:$0xff]
    %v1006 = vld [vmem:[%s1004 + $0x8] sm:$0xff]
    %v1007 = vld [vmem:[%s1004 + $0x10] sm:$0xff]
    %v1008 = vld [vmem:[%s1004 + $0x18] sm:$0xff]
    %1009 = vmatprep.subr.mxu0 %v395
    %1010 = vmatpush1.msra.mxu0 %v394
    %1011 = vmatprep.subr.mxu0 %v399
    %1012 = vmatpush1.msra.mxu0 %v398
    %1013 = vmatprep.subr.mxu0 %v403
    %1014 = vmatpush1.msra.mxu0 %v402
    %1015 = vmatprep.subr.mxu0 %v407
    %1016 = vmatpush1.msra.mxu0 %v406
    %1017 = vmatprep.subr.mxu0 %v411
    %1018 = vmatpush1.msra.mxu0 %v410
    %1019 = vmatprep.subr.mxu0 %v415
    %1020 = vmatpush1.msra.mxu0 %v414
    %1021 = vmatprep.subr.mxu0 %v419
    %1022 = vmatpush1.msra.mxu0 %v418
    %1023 = vmatprep.subr.mxu0 %v423
    %1024 = vmatpush1.msra.mxu0 %v422
    %1025 = vmatprep.subr.mxu0 %v427
    %1026 = vmatpush1.msra.mxu0 %v426
    %1027 = vmatprep.subr.mxu0 %v431
    %1028 = vmatpush1.msra.mxu0 %v430
    %1029 = vmatprep.subr.mxu0 %v435
    %1030 = vmatpush1.msra.mxu0 %v434
    %1031 = vmatprep.subr.mxu0 %v439
    %1032 = vmatpush1.msra.mxu0 %v438
    %1033 = vmatprep.subr.mxu0 %v443
    %1034 = vmatpush1.msra.mxu0 %v442
    %1035 = vmatprep.subr.mxu0 %v447
    %1036 = vmatpush1.msra.mxu0 %v446
    %1037 = vmatprep.subr.mxu0 %v451
    %1038 = vmatpush1.msra.mxu0 %v450
    %1039 = vmatprep.subr.mxu0 %v455
    %1040 = vmatpush1.msra.mxu0 %v454
    %1041 = vmatprep.subr.mxu0 0.0
    %1042 = vmatpush1.msra.mxu0 0.0
    %1043 = vmatprep.subr.mxu0 0.0
    %1044 = vmatpush1.msra.mxu0 0.0
    %1045 = vmatprep.subr.mxu0 0.0
    %1046 = vmatpush1.msra.mxu0 0.0
    %1047 = vmatprep.subr.mxu0 0.0
    %1048 = vmatpush1.msra.mxu0 0.0
    %1049 = vmatprep.subr.mxu0 0.0
    %1050 = vmatpush1.msra.mxu0 0.0
    %1051 = vmatprep.subr.mxu0 0.0
    %1052 = vmatpush1.msra.mxu0 0.0
    %1053 = vmatprep.subr.mxu0 0.0
    %1054 = vmatpush1.msra.mxu0 0.0
    %1055 = vmatprep.subr.mxu0 0.0
    %1056 = vmatpush1.msra.mxu0 0.0
    %1057 = vmatprep.subr.mxu0 0.0
    %1058 = vmatpush1.msra.mxu0 0.0
    %1059 = vmatprep.subr.mxu0 0.0
    %1060 = vmatpush1.msra.mxu0 0.0
    %1061 = vmatprep.subr.mxu0 0.0
    %1062 = vmatpush1.msra.mxu0 0.0
    %1063 = vmatprep.subr.mxu0 0.0
    %1064 = vmatpush1.msra.mxu0 0.0
    %1065 = vmatprep.subr.mxu0 0.0
    %1066 = vmatpush1.msra.mxu0 0.0
    %1067 = vmatprep.subr.mxu0 0.0
    %1068 = vmatpush1.msra.mxu0 0.0
    %1069 = vmatprep.subr.mxu0 0.0
    %1070 = vmatpush1.msra.mxu0 0.0
    %1071 = vmatprep.subr.mxu0 0.0
    %1072 = vmatpush1.msra.mxu0 0.0
    %1073 = vmatprep.mubr.f32.mxu0 0.0
    %1074 = vmatmul.mubr.f32.gmra.mrb[0].mxu0 %v997
    %v1075 = vpop.f32.mrb[0].mxu0
    %v1076 = vadd.f32 0.0, %v1075
    %v1077 = vpop.f32.mrb[0].mxu0
    %v1078 = vadd.f32 0.0, %v1077
    %1079 = vdwg.mxu0
    %1080 = vmatprep.subr.mxu0 %v397
    %1081 = vmatpush1.msra.mxu0 %v396
    %1082 = vmatprep.subr.mxu0 %v401
    %1083 = vmatpush1.msra.mxu0 %v400
    %1084 = vmatprep.subr.mxu0 %v405
    %1085 = vmatpush1.msra.mxu0 %v404
    %1086 = vmatprep.subr.mxu0 %v409
    %1087 = vmatpush1.msra.mxu0 %v408
    %1088 = vmatprep.subr.mxu0 %v413
    %1089 = vmatpush1.msra.mxu0 %v412
    %1090 = vmatprep.subr.mxu0 %v417
    %1091 = vmatpush1.msra.mxu0 %v416
    %1092 = vmatprep.subr.mxu0 %v421
    %1093 = vmatpush1.msra.mxu0 %v420
    %1094 = vmatprep.subr.mxu0 %v425
    %1095 = vmatpush1.msra.mxu0 %v424
    %1096 = vmatprep.subr.mxu0 %v429
    %1097 = vmatpush1.msra.mxu0 %v428
    %1098 = vmatprep.subr.mxu0 %v433
    %1099 = vmatpush1.msra.mxu0 %v432
    %1100 = vmatprep.subr.mxu0 %v437
    %1101 = vmatpush1.msra.mxu0 %v436
    %1102 = vmatprep.subr.mxu0 %v441
    %1103 = vmatpush1.msra.mxu0 %v440
    %1104 = vmatprep.subr.mxu0 %v445
    %1105 = vmatpush1.msra.mxu0 %v444
    %1106 = vmatprep.subr.mxu0 %v449
    %1107 = vmatpush1.msra.mxu0 %v448
    %1108 = vmatprep.subr.mxu0 %v453
    %1109 = vmatpush1.msra.mxu0 %v452
    %1110 = vmatprep.subr.mxu0 %v457
    %1111 = vmatpush1.msra.mxu0 %v456
    %1112 = vmatprep.subr.mxu0 0.0
    %1113 = vmatpush1.msra.mxu0 0.0
    %1114 = vmatprep.subr.mxu0 0.0
    %1115 = vmatpush1.msra.mxu0 0.0
    %1116 = vmatprep.subr.mxu0 0.0
    %1117 = vmatpush1.msra.mxu0 0.0
    %1118 = vmatprep.subr.mxu0 0.0
    %1119 = vmatpush1.msra.mxu0 0.0
    %1120 = vmatprep.subr.mxu0 0.0
    %1121 = vmatpush1.msra.mxu0 0.0
    %1122 = vmatprep.subr.mxu0 0.0
    %1123 = vmatpush1.msra.mxu0 0.0
    %1124 = vmatprep.subr.mxu0 0.0
    %1125 = vmatpush1.msra.mxu0 0.0
    %1126 = vmatprep.subr.mxu0 0.0
    %1127 = vmatpush1.msra.mxu0 0.0
    %1128 = vmatprep.subr.mxu0 0.0
    %1129 = vmatpush1.msra.mxu0 0.0
    %1130 = vmatprep.subr.mxu0 0.0
    %1131 = vmatpush1.msra.mxu0 0.0
    %1132 = vmatprep.subr.mxu0 0.0
    %1133 = vmatpush1.msra.mxu0 0.0
    %1134 = vmatprep.subr.mxu0 0.0
    %1135 = vmatpush1.msra.mxu0 0.0
    %1136 = vmatprep.subr.mxu0 0.0
    %1137 = vmatpush1.msra.mxu0 0.0
    %1138 = vmatprep.subr.mxu0 0.0
    %1139 = vmatpush1.msra.mxu0 0.0
    %1140 = vmatprep.subr.mxu0 0.0
    %1141 = vmatpush1.msra.mxu0 0.0
    %1142 = vmatprep.subr.mxu0 0.0
    %1143 = vmatpush1.msra.mxu0 0.0
    %1144 = vmatprep.mubr.f32.mxu0 0.0
    %1145 = vmatmul.mubr.f32.gmra.mrb[0].mxu0 %v997
    %v1146 = vpop.f32.mrb[0].mxu0
    %v1147 = vadd.f32 0.0, %v1146
    %v1148 = vpop.f32.mrb[0].mxu0
    %v1149 = vadd.f32 0.0, %v1148
    %1150 = vdwg.mxu0
    %v1151 = vadd.f32 %v1005, %v1076
    %v1152 = vadd.f32 %v1006, %v1078
    %v1153 = vadd.f32 %v1007, %v1147
    %v1154 = vadd.f32 %v1008, %v1149
    %v1155 = vxor.u32 %v1151, 2147483648
    %v1156 = vxor.u32 %v1152, 2147483648
    %v1157 = vxor.u32 %v1153, 2147483648
    %v1158 = vmul.f32 %v1155, 1.442695
    %v1159 = vpow.pop %v1158
    %v1160 = vmul.f32 %v1156, 1.442695
    %v1161 = vpow.pop %v1160
    %v1162 = vmul.f32 %v1157, 1.442695
    %v1163 = vpow.pop %v1162
    %v1164 = vadd.f32 %v1159, 1.0
    %v1165 = vadd.f32 %v1161, 1.0
    %v1166 = vadd.f32 %v1163, 1.0
    %v1167 = vrcp.pop %v1164
    %v1168 = vmul.f32 1.0, %v1167
    %v1169 = vrcp.pop %v1165
    %v1170 = vmul.f32 1.0, %v1169
    %v1171 = vrcp.pop %v1166
    %v1172 = vmul.f32 1.0, %v1171
    %v1173 = vtanh.pop %v1154
    %v1174 = vmul.f32 %v1170, %v995
    %v1175 = vmul.f32 %v1168, %v1173
    %v1176 = vadd.f32 %v1174, %v1175
    %v1177 = vtanh.pop %v1176
    %v1178 = vmul.f32 %v1172, %v1177
    %s1179 = scalar_lea.vmem [#allocation3], 24
    %1180 = vst.msk [vmem:[%s1179] sm:$0xff] %vm635, %v1178
    %s1181 = scalar_lea.vmem [#allocation3], 32
    %1182 = vst.msk [vmem:[%s1181] sm:$0xff] %vm638, %v1178
    %s1183 = smul.u32 4, 4
    %s1184 = smul.addr %s1183, 8
    %s1185 = scalar_lea.vmem [#allocation2], %s1184
    %v1186 = vld [vmem:[%s1185] sm:$0xff]
    %v1187 = vld [vmem:[%s1185 + $0x8] sm:$0xff]
    %v1188 = vld [vmem:[%s1185 + $0x10] sm:$0xff]
    %v1189 = vld [vmem:[%s1185 + $0x18] sm:$0xff]
    %1190 = vmatprep.subr.mxu0 %v395
    %1191 = vmatpush1.msra.mxu0 %v394
    %1192 = vmatprep.subr.mxu0 %v399
    %1193 = vmatpush1.msra.mxu0 %v398
    %1194 = vmatprep.subr.mxu0 %v403
    %1195 = vmatpush1.msra.mxu0 %v402
    %1196 = vmatprep.subr.mxu0 %v407
    %1197 = vmatpush1.msra.mxu0 %v406
    %1198 = vmatprep.subr.mxu0 %v411
    %1199 = vmatpush1.msra.mxu0 %v410
    %1200 = vmatprep.subr.mxu0 %v415
    %1201 = vmatpush1.msra.mxu0 %v414
    %1202 = vmatprep.subr.mxu0 %v419
    %1203 = vmatpush1.msra.mxu0 %v418
    %1204 = vmatprep.subr.mxu0 %v423
    %1205 = vmatpush1.msra.mxu0 %v422
    %1206 = vmatprep.subr.mxu0 %v427
    %1207 = vmatpush1.msra.mxu0 %v426
    %1208 = vmatprep.subr.mxu0 %v431
    %1209 = vmatpush1.msra.mxu0 %v430
    %1210 = vmatprep.subr.mxu0 %v435
    %1211 = vmatpush1.msra.mxu0 %v434
    %1212 = vmatprep.subr.mxu0 %v439
    %1213 = vmatpush1.msra.mxu0 %v438
    %1214 = vmatprep.subr.mxu0 %v443
    %1215 = vmatpush1.msra.mxu0 %v442
    %1216 = vmatprep.subr.mxu0 %v447
    %1217 = vmatpush1.msra.mxu0 %v446
    %1218 = vmatprep.subr.mxu0 %v451
    %1219 = vmatpush1.msra.mxu0 %v450
    %1220 = vmatprep.subr.mxu0 %v455
    %1221 = vmatpush1.msra.mxu0 %v454
    %1222 = vmatprep.subr.mxu0 0.0
    %1223 = vmatpush1.msra.mxu0 0.0
    %1224 = vmatprep.subr.mxu0 0.0
    %1225 = vmatpush1.msra.mxu0 0.0
    %1226 = vmatprep.subr.mxu0 0.0
    %1227 = vmatpush1.msra.mxu0 0.0
    %1228 = vmatprep.subr.mxu0 0.0
    %1229 = vmatpush1.msra.mxu0 0.0
    %1230 = vmatprep.subr.mxu0 0.0
    %1231 = vmatpush1.msra.mxu0 0.0
    %1232 = vmatprep.subr.mxu0 0.0
    %1233 = vmatpush1.msra.mxu0 0.0
    %1234 = vmatprep.subr.mxu0 0.0
    %1235 = vmatpush1.msra.mxu0 0.0
    %1236 = vmatprep.subr.mxu0 0.0
    %1237 = vmatpush1.msra.mxu0 0.0
    %1238 = vmatprep.subr.mxu0 0.0
    %1239 = vmatpush1.msra.mxu0 0.0
    %1240 = vmatprep.subr.mxu0 0.0
    %1241 = vmatpush1.msra.mxu0 0.0
    %1242 = vmatprep.subr.mxu0 0.0
    %1243 = vmatpush1.msra.mxu0 0.0
    %1244 = vmatprep.subr.mxu0 0.0
    %1245 = vmatpush1.msra.mxu0 0.0
    %1246 = vmatprep.subr.mxu0 0.0
    %1247 = vmatpush1.msra.mxu0 0.0
    %1248 = vmatprep.subr.mxu0 0.0
    %1249 = vmatpush1.msra.mxu0 0.0
    %1250 = vmatprep.subr.mxu0 0.0
    %1251 = vmatpush1.msra.mxu0 0.0
    %1252 = vmatprep.subr.mxu0 0.0
    %1253 = vmatpush1.msra.mxu0 0.0
    %1254 = vmatprep.mubr.f32.mxu0 0.0
    %1255 = vmatmul.mubr.f32.gmra.mrb[0].mxu0 %v1178
    %v1256 = vpop.f32.mrb[0].mxu0
    %v1257 = vadd.f32 0.0, %v1256
    %v1258 = vpop.f32.mrb[0].mxu0
    %v1259 = vadd.f32 0.0, %v1258
    %1260 = vdwg.mxu0
    %1261 = vmatprep.subr.mxu0 %v397
    %1262 = vmatpush1.msra.mxu0 %v396
    %1263 = vmatprep.subr.mxu0 %v401
    %1264 = vmatpush1.msra.mxu0 %v400
    %1265 = vmatprep.subr.mxu0 %v405
    %1266 = vmatpush1.msra.mxu0 %v404
    %1267 = vmatprep.subr.mxu0 %v409
    %1268 = vmatpush1.msra.mxu0 %v408
    %1269 = vmatprep.subr.mxu0 %v413
    %1270 = vmatpush1.msra.mxu0 %v412
    %1271 = vmatprep.subr.mxu0 %v417
    %1272 = vmatpush1.msra.mxu0 %v416
    %1273 = vmatprep.subr.mxu0 %v421
    %1274 = vmatpush1.msra.mxu0 %v420
    %1275 = vmatprep.subr.mxu0 %v425
    %1276 = vmatpush1.msra.mxu0 %v424
    %1277 = vmatprep.subr.mxu0 %v429
    %1278 = vmatpush1.msra.mxu0 %v428
    %1279 = vmatprep.subr.mxu0 %v433
    %1280 = vmatpush1.msra.mxu0 %v432
    %1281 = vmatprep.subr.mxu0 %v437
    %1282 = vmatpush1.msra.mxu0 %v436
    %1283 = vmatprep.subr.mxu0 %v441
    %1284 = vmatpush1.msra.mxu0 %v440
    %1285 = vmatprep.subr.mxu0 %v445
    %1286 = vmatpush1.msra.mxu0 %v444
    %1287 = vmatprep.subr.mxu0 %v449
    %1288 = vmatpush1.msra.mxu0 %v448
    %1289 = vmatprep.subr.mxu0 %v453
    %1290 = vmatpush1.msra.mxu0 %v452
    %1291 = vmatprep.subr.mxu0 %v457
    %1292 = vmatpush1.msra.mxu0 %v456
    %1293 = vmatprep.subr.mxu0 0.0
    %1294 = vmatpush1.msra.mxu0 0.0
    %1295 = vmatprep.subr.mxu0 0.0
    %1296 = vmatpush1.msra.mxu0 0.0
    %1297 = vmatprep.subr.mxu0 0.0
    %1298 = vmatpush1.msra.mxu0 0.0
    %1299 = vmatprep.subr.mxu0 0.0
    %1300 = vmatpush1.msra.mxu0 0.0
    %1301 = vmatprep.subr.mxu0 0.0
    %1302 = vmatpush1.msra.mxu0 0.0
    %1303 = vmatprep.subr.mxu0 0.0
    %1304 = vmatpush1.msra.mxu0 0.0
    %1305 = vmatprep.subr.mxu0 0.0
    %1306 = vmatpush1.msra.mxu0 0.0
    %1307 = vmatprep.subr.mxu0 0.0
    %1308 = vmatpush1.msra.mxu0 0.0
    %1309 = vmatprep.subr.mxu0 0.0
    %1310 = vmatpush1.msra.mxu0 0.0
    %1311 = vmatprep.subr.mxu0 0.0
    %1312 = vmatpush1.msra.mxu0 0.0
    %1313 = vmatprep.subr.mxu0 0.0
    %1314 = vmatpush1.msra.mxu0 0.0
    %1315 = vmatprep.subr.mxu0 0.0
    %1316 = vmatpush1.msra.mxu0 0.0
    %1317 = vmatprep.subr.mxu0 0.0
    %1318 = vmatpush1.msra.mxu0 0.0
    %1319 = vmatprep.subr.mxu0 0.0
    %1320 = vmatpush1.msra.mxu0 0.0
    %1321 = vmatprep.subr.mxu0 0.0
    %1322 = vmatpush1.msra.mxu0 0.0
    %1323 = vmatprep.subr.mxu0 0.0
    %1324 = vmatpush1.msra.mxu0 0.0
    %1325 = vmatprep.mubr.f32.mxu0 0.0
    %1326 = vmatmul.mubr.f32.gmra.mrb[0].mxu0 %v1178
    %v1327 = vpop.f32.mrb[0].mxu0
    %v1328 = vadd.f32 0.0, %v1327
    %v1329 = vpop.f32.mrb[0].mxu0
    %v1330 = vadd.f32 0.0, %v1329
    %1331 = vdwg.mxu0
    %v1332 = vadd.f32 %v1186, %v1257
    %v1333 = vadd.f32 %v1187, %v1259
    %v1334 = vadd.f32 %v1188, %v1328
    %v1335 = vadd.f32 %v1189, %v1330
    %v1336 = vxor.u32 %v1332, 2147483648
    %v1337 = vxor.u32 %v1333, 2147483648
    %v1338 = vxor.u32 %v1334, 2147483648
    %v1339 = vmul.f32 %v1336, 1.442695
    %v1340 = vpow.pop %v1339
    %v1341 = vmul.f32 %v1337, 1.442695
    %v1342 = vpow.pop %v1341
    %v1343 = vmul.f32 %v1338, 1.442695
    %v1344 = vpow.pop %v1343
    %v1345 = vadd.f32 %v1340, 1.0
    %v1346 = vadd.f32 %v1342, 1.0
    %v1347 = vadd.f32 %v1344, 1.0
    %v1348 = vrcp.pop %v1345
    %v1349 = vmul.f32 1.0, %v1348
    %v1350 = vrcp.pop %v1346
    %v1351 = vmul.f32 1.0, %v1350
    %v1352 = vrcp.pop %v1347
    %v1353 = vmul.f32 1.0, %v1352
    %v1354 = vtanh.pop %v1335
    %v1355 = vmul.f32 %v1351, %v1176
    %v1356 = vmul.f32 %v1349, %v1354
    %v1357 = vadd.f32 %v1355, %v1356
    %v1358 = vtanh.pop %v1357
    %v1359 = vmul.f32 %v1353, %v1358
    %1360 = vst.msk [vmem:[%s1181] sm:$0xff] %vm635, %v1359
    %1361 = vst.msk [vmem:[%s1179] sm:$0xff] %vm638, %v1359
    %s1362 = smul.u32 5, 4
    %s1363 = smul.addr %s1362, 8
    %s1364 = scalar_lea.vmem [#allocation2], %s1363
    %v1365 = vld [vmem:[%s1364] sm:$0xff]
    %v1366 = vld [vmem:[%s1364 + $0x8] sm:$0xff]
    %v1367 = vld [vmem:[%s1364 + $0x10] sm:$0xff]
    %v1368 = vld [vmem:[%s1364 + $0x18] sm:$0xff]
    %1369 = vmatprep.subr.mxu0 %v395
    %1370 = vmatpush1.msra.mxu0 %v394
    %1371 = vmatprep.subr.mxu0 %v399
    %1372 = vmatpush1.msra.mxu0 %v398
    %1373 = vmatprep.subr.mxu0 %v403
    %1374 = vmatpush1.msra.mxu0 %v402
    %1375 = vmatprep.subr.mxu0 %v407
    %1376 = vmatpush1.msra.mxu0 %v406
    %1377 = vmatprep.subr.mxu0 %v411
    %1378 = vmatpush1.msra.mxu0 %v410
    %1379 = vmatprep.subr.mxu0 %v415
    %1380 = vmatpush1.msra.mxu0 %v414
    %1381 = vmatprep.subr.mxu0 %v419
    %1382 = vmatpush1.msra.mxu0 %v418
    %1383 = vmatprep.subr.mxu0 %v423
    %1384 = vmatpush1.msra.mxu0 %v422
    %1385 = vmatprep.subr.mxu0 %v427
    %1386 = vmatpush1.msra.mxu0 %v426
    %1387 = vmatprep.subr.mxu0 %v431
    %1388 = vmatpush1.msra.mxu0 %v430
    %1389 = vmatprep.subr.mxu0 %v435
    %1390 = vmatpush1.msra.mxu0 %v434
    %1391 = vmatprep.subr.mxu0 %v439
    %1392 = vmatpush1.msra.mxu0 %v438
    %1393 = vmatprep.subr.mxu0 %v443
    %1394 = vmatpush1.msra.mxu0 %v442
    %1395 = vmatprep.subr.mxu0 %v447
    %1396 = vmatpush1.msra.mxu0 %v446
    %1397 = vmatprep.subr.mxu0 %v451
    %1398 = vmatpush1.msra.mxu0 %v450
    %1399 = vmatprep.subr.mxu0 %v455
    %1400 = vmatpush1.msra.mxu0 %v454
    %1401 = vmatprep.subr.mxu0 0.0
    %1402 = vmatpush1.msra.mxu0 0.0
    %1403 = vmatprep.subr.mxu0 0.0
    %1404 = vmatpush1.msra.mxu0 0.0
    %1405 = vmatprep.subr.mxu0 0.0
    %1406 = vmatpush1.msra.mxu0 0.0
    %1407 = vmatprep.subr.mxu0 0.0
    %1408 = vmatpush1.msra.mxu0 0.0
    %1409 = vmatprep.subr.mxu0 0.0
    %1410 = vmatpush1.msra.mxu0 0.0
    %1411 = vmatprep.subr.mxu0 0.0
    %1412 = vmatpush1.msra.mxu0 0.0
    %1413 = vmatprep.subr.mxu0 0.0
    %1414 = vmatpush1.msra.mxu0 0.0
    %1415 = vmatprep.subr.mxu0 0.0
    %1416 = vmatpush1.msra.mxu0 0.0
    %1417 = vmatprep.subr.mxu0 0.0
    %1418 = vmatpush1.msra.mxu0 0.0
    %1419 = vmatprep.subr.mxu0 0.0
    %1420 = vmatpush1.msra.mxu0 0.0
    %1421 = vmatprep.subr.mxu0 0.0
    %1422 = vmatpush1.msra.mxu0 0.0
    %1423 = vmatprep.subr.mxu0 0.0
    %1424 = vmatpush1.msra.mxu0 0.0
    %1425 = vmatprep.subr.mxu0 0.0
    %1426 = vmatpush1.msra.mxu0 0.0
    %1427 = vmatprep.subr.mxu0 0.0
    %1428 = vmatpush1.msra.mxu0 0.0
    %1429 = vmatprep.subr.mxu0 0.0
    %1430 = vmatpush1.msra.mxu0 0.0
    %1431 = vmatprep.subr.mxu0 0.0
    %1432 = vmatpush1.msra.mxu0 0.0
    %1433 = vmatprep.mubr.f32.mxu0 0.0
    %1434 = vmatmul.mubr.f32.gmra.mrb[0].mxu0 %v1359
    %v1435 = vpop.f32.mrb[0].mxu0
    %v1436 = vadd.f32 0.0, %v1435
    %v1437 = vpop.f32.mrb[0].mxu0
    %v1438 = vadd.f32 0.0, %v1437
    %1439 = vdwg.mxu0
    %1440 = vmatprep.subr.mxu0 %v397
    %1441 = vmatpush1.msra.mxu0 %v396
    %1442 = vmatprep.subr.mxu0 %v401
    %1443 = vmatpush1.msra.mxu0 %v400
    %1444 = vmatprep.subr.mxu0 %v405
    %1445 = vmatpush1.msra.mxu0 %v404
    %1446 = vmatprep.subr.mxu0 %v409
    %1447 = vmatpush1.msra.mxu0 %v408
    %1448 = vmatprep.subr.mxu0 %v413
    %1449 = vmatpush1.msra.mxu0 %v412
    %1450 = vmatprep.subr.mxu0 %v417
    %1451 = vmatpush1.msra.mxu0 %v416
    %1452 = vmatprep.subr.mxu0 %v421
    %1453 = vmatpush1.msra.mxu0 %v420
    %1454 = vmatprep.subr.mxu0 %v425
    %1455 = vmatpush1.msra.mxu0 %v424
    %1456 = vmatprep.subr.mxu0 %v429
    %1457 = vmatpush1.msra.mxu0 %v428
    %1458 = vmatprep.subr.mxu0 %v433
    %1459 = vmatpush1.msra.mxu0 %v432
    %1460 = vmatprep.subr.mxu0 %v437
    %1461 = vmatpush1.msra.mxu0 %v436
    %1462 = vmatprep.subr.mxu0 %v441
    %1463 = vmatpush1.msra.mxu0 %v440
    %1464 = vmatprep.subr.mxu0 %v445
    %1465 = vmatpush1.msra.mxu0 %v444
    %1466 = vmatprep.subr.mxu0 %v449
    %1467 = vmatpush1.msra.mxu0 %v448
    %1468 = vmatprep.subr.mxu0 %v453
    %1469 = vmatpush1.msra.mxu0 %v452
    %1470 = vmatprep.subr.mxu0 %v457
    %1471 = vmatpush1.msra.mxu0 %v456
    %1472 = vmatprep.subr.mxu0 0.0
    %1473 = vmatpush1.msra.mxu0 0.0
    %1474 = vmatprep.subr.mxu0 0.0
    %1475 = vmatpush1.msra.mxu0 0.0
    %1476 = vmatprep.subr.mxu0 0.0
    %1477 = vmatpush1.msra.mxu0 0.0
    %1478 = vmatprep.subr.mxu0 0.0
    %1479 = vmatpush1.msra.mxu0 0.0
    %1480 = vmatprep.subr.mxu0 0.0
    %1481 = vmatpush1.msra.mxu0 0.0
    %1482 = vmatprep.subr.mxu0 0.0
    %1483 = vmatpush1.msra.mxu0 0.0
    %1484 = vmatprep.subr.mxu0 0.0
    %1485 = vmatpush1.msra.mxu0 0.0
    %1486 = vmatprep.subr.mxu0 0.0
    %1487 = vmatpush1.msra.mxu0 0.0
    %1488 = vmatprep.subr.mxu0 0.0
    %1489 = vmatpush1.msra.mxu0 0.0
    %1490 = vmatprep.subr.mxu0 0.0
    %1491 = vmatpush1.msra.mxu0 0.0
    %1492 = vmatprep.subr.mxu0 0.0
    %1493 = vmatpush1.msra.mxu0 0.0
    %1494 = vmatprep.subr.mxu0 0.0
    %1495 = vmatpush1.msra.mxu0 0.0
    %1496 = vmatprep.subr.mxu0 0.0
    %1497 = vmatpush1.msra.mxu0 0.0
    %1498 = vmatprep.subr.mxu0 0.0
    %1499 = vmatpush1.msra.mxu0 0.0
    %1500 = vmatprep.subr.mxu0 0.0
    %1501 = vmatpush1.msra.mxu0 0.0
    %1502 = vmatprep.subr.mxu0 0.0
    %1503 = vmatpush1.msra.mxu0 0.0
    %1504 = vmatprep.mubr.f32.mxu0 0.0
    %1505 = vmatmul.mubr.f32.gmra.mrb[0].mxu0 %v1359
    %v1506 = vpop.f32.mrb[0].mxu0
    %v1507 = vadd.f32 0.0, %v1506
    %v1508 = vpop.f32.mrb[0].mxu0
    %v1509 = vadd.f32 0.0, %v1508
    %1510 = vdwg.mxu0
    %v1511 = vadd.f32 %v1365, %v1436
    %v1512 = vadd.f32 %v1366, %v1438
    %v1513 = vadd.f32 %v1367, %v1507
    %v1514 = vadd.f32 %v1368, %v1509
    %v1515 = vxor.u32 %v1511, 2147483648
    %v1516 = vxor.u32 %v1512, 2147483648
    %v1517 = vxor.u32 %v1513, 2147483648
    %v1518 = vmul.f32 %v1515, 1.442695
    %v1519 = vpow.pop %v1518
    %v1520 = vmul.f32 %v1516, 1.442695
    %v1521 = vpow.pop %v1520
    %v1522 = vmul.f32 %v1517, 1.442695
    %v1523 = vpow.pop %v1522
    %v1524 = vadd.f32 %v1519, 1.0
    %v1525 = vadd.f32 %v1521, 1.0
    %v1526 = vadd.f32 %v1523, 1.0
    %v1527 = vrcp.pop %v1524
    %v1528 = vmul.f32 1.0, %v1527
    %v1529 = vrcp.pop %v1525
    %v1530 = vmul.f32 1.0, %v1529
    %v1531 = vrcp.pop %v1526
    %v1532 = vmul.f32 1.0, %v1531
    %v1533 = vtanh.pop %v1514
    %v1534 = vmul.f32 %v1530, %v1357
    %v1535 = vmul.f32 %v1528, %v1533
    %v1536 = vadd.f32 %v1534, %v1535
    %v1537 = vtanh.pop %v1536
    %v1538 = vmul.f32 %v1532, %v1537
    %1539 = vst.msk [vmem:[%s1000] sm:$0xff] %vm635, %v1538
    %1540 = vst.msk [vmem:[%s998] sm:$0xff] %vm638, %v1538
    %s1541 = smul.u32 6, 4
    %s1542 = smul.addr %s1541, 8
    %s1543 = scalar_lea.vmem [#allocation2], %s1542
    %v1544 = vld [vmem:[%s1543] sm:$0xff]
    %v1545 = vld [vmem:[%s1543 + $0x8] sm:$0xff]
    %v1546 = vld [vmem:[%s1543 + $0x10] sm:$0xff]
    %v1547 = vld [vmem:[%s1543 + $0x18] sm:$0xff]
    %1548 = vmatprep.subr.mxu0 %v395
    %1549 = vmatpush1.msra.mxu0 %v394
    %1550 = vmatprep.subr.mxu0 %v399
    %1551 = vmatpush1.msra.mxu0 %v398
    %1552 = vmatprep.subr.mxu0 %v403
    %1553 = vmatpush1.msra.mxu0 %v402
    %1554 = vmatprep.subr.mxu0 %v407
    %1555 = vmatpush1.msra.mxu0 %v406
    %1556 = vmatprep.subr.mxu0 %v411
    %1557 = vmatpush1.msra.mxu0 %v410
    %1558 = vmatprep.subr.mxu0 %v415
    %1559 = vmatpush1.msra.mxu0 %v414
    %1560 = vmatprep.subr.mxu0 %v419
    %1561 = vmatpush1.msra.mxu0 %v418
    %1562 = vmatprep.subr.mxu0 %v423
    %1563 = vmatpush1.msra.mxu0 %v422
    %1564 = vmatprep.subr.mxu0 %v427
    %1565 = vmatpush1.msra.mxu0 %v426
    %1566 = vmatprep.subr.mxu0 %v431
    %1567 = vmatpush1.msra.mxu0 %v430
    %1568 = vmatprep.subr.mxu0 %v435
    %1569 = vmatpush1.msra.mxu0 %v434
    %1570 = vmatprep.subr.mxu0 %v439
    %1571 = vmatpush1.msra.mxu0 %v438
    %1572 = vmatprep.subr.mxu0 %v443
    %1573 = vmatpush1.msra.mxu0 %v442
    %1574 = vmatprep.subr.mxu0 %v447
    %1575 = vmatpush1.msra.mxu0 %v446
    %1576 = vmatprep.subr.mxu0 %v451
    %1577 = vmatpush1.msra.mxu0 %v450
    %1578 = vmatprep.subr.mxu0 %v455
    %1579 = vmatpush1.msra.mxu0 %v454
    %1580 = vmatprep.subr.mxu0 0.0
    %1581 = vmatpush1.msra.mxu0 0.0
    %1582 = vmatprep.subr.mxu0 0.0
    %1583 = vmatpush1.msra.mxu0 0.0
    %1584 = vmatprep.subr.mxu0 0.0
    %1585 = vmatpush1.msra.mxu0 0.0
    %1586 = vmatprep.subr.mxu0 0.0
    %1587 = vmatpush1.msra.mxu0 0.0
    %1588 = vmatprep.subr.mxu0 0.0
    %1589 = vmatpush1.msra.mxu0 0.0
    %1590 = vmatprep.subr.mxu0 0.0
    %1591 = vmatpush1.msra.mxu0 0.0
    %1592 = vmatprep.subr.mxu0 0.0
    %1593 = vmatpush1.msra.mxu0 0.0
    %1594 = vmatprep.subr.mxu0 0.0
    %1595 = vmatpush1.msra.mxu0 0.0
    %1596 = vmatprep.subr.mxu0 0.0
    %1597 = vmatpush1.msra.mxu0 0.0
    %1598 = vmatprep.subr.mxu0 0.0
    %1599 = vmatpush1.msra.mxu0 0.0
    %1600 = vmatprep.subr.mxu0 0.0
    %1601 = vmatpush1.msra.mxu0 0.0
    %1602 = vmatprep.subr.mxu0 0.0
    %1603 = vmatpush1.msra.mxu0 0.0
    %1604 = vmatprep.subr.mxu0 0.0
    %1605 = vmatpush1.msra.mxu0 0.0
    %1606 = vmatprep.subr.mxu0 0.0
    %1607 = vmatpush1.msra.mxu0 0.0
    %1608 = vmatprep.subr.mxu0 0.0
    %1609 = vmatpush1.msra.mxu0 0.0
    %1610 = vmatprep.subr.mxu0 0.0
    %1611 = vmatpush1.msra.mxu0 0.0
    %1612 = vmatprep.mubr.f32.mxu0 0.0
    %1613 = vmatmul.mubr.f32.gmra.mrb[0].mxu0 %v1538
    %v1614 = vpop.f32.mrb[0].mxu0
    %v1615 = vadd.f32 0.0, %v1614
    %v1616 = vpop.f32.mrb[0].mxu0
    %v1617 = vadd.f32 0.0, %v1616
    %1618 = vdwg.mxu0
    %1619 = vmatprep.subr.mxu0 %v397
    %1620 = vmatpush1.msra.mxu0 %v396
    %1621 = vmatprep.subr.mxu0 %v401
    %1622 = vmatpush1.msra.mxu0 %v400
    %1623 = vmatprep.subr.mxu0 %v405
    %1624 = vmatpush1.msra.mxu0 %v404
    %1625 = vmatprep.subr.mxu0 %v409
    %1626 = vmatpush1.msra.mxu0 %v408
    %1627 = vmatprep.subr.mxu0 %v413
    %1628 = vmatpush1.msra.mxu0 %v412
    %1629 = vmatprep.subr.mxu0 %v417
    %1630 = vmatpush1.msra.mxu0 %v416
    %1631 = vmatprep.subr.mxu0 %v421
    %1632 = vmatpush1.msra.mxu0 %v420
    %1633 = vmatprep.subr.mxu0 %v425
    %1634 = vmatpush1.msra.mxu0 %v424
    %1635 = vmatprep.subr.mxu0 %v429
    %1636 = vmatpush1.msra.mxu0 %v428
    %1637 = vmatprep.subr.mxu0 %v433
    %1638 = vmatpush1.msra.mxu0 %v432
    %1639 = vmatprep.subr.mxu0 %v437
    %1640 = vmatpush1.msra.mxu0 %v436
    %1641 = vmatprep.subr.mxu0 %v441
    %1642 = vmatpush1.msra.mxu0 %v440
    %1643 = vmatprep.subr.mxu0 %v445
    %1644 = vmatpush1.msra.mxu0 %v444
    %1645 = vmatprep.subr.mxu0 %v449
    %1646 = vmatpush1.msra.mxu0 %v448
    %1647 = vmatprep.subr.mxu0 %v453
    %1648 = vmatpush1.msra.mxu0 %v452
    %1649 = vmatprep.subr.mxu0 %v457
    %1650 = vmatpush1.msra.mxu0 %v456
    %1651 = vmatprep.subr.mxu0 0.0
    %1652 = vmatpush1.msra.mxu0 0.0
    %1653 = vmatprep.subr.mxu0 0.0
    %1654 = vmatpush1.msra.mxu0 0.0
    %1655 = vmatprep.subr.mxu0 0.0
    %1656 = vmatpush1.msra.mxu0 0.0
    %1657 = vmatprep.subr.mxu0 0.0
    %1658 = vmatpush1.msra.mxu0 0.0
    %1659 = vmatprep.subr.mxu0 0.0
    %1660 = vmatpush1.msra.mxu0 0.0
    %1661 = vmatprep.subr.mxu0 0.0
    %1662 = vmatpush1.msra.mxu0 0.0
    %1663 = vmatprep.subr.mxu0 0.0
    %1664 = vmatpush1.msra.mxu0 0.0
    %1665 = vmatprep.subr.mxu0 0.0
    %1666 = vmatpush1.msra.mxu0 0.0
    %1667 = vmatprep.subr.mxu0 0.0
    %1668 = vmatpush1.msra.mxu0 0.0
    %1669 = vmatprep.subr.mxu0 0.0
    %1670 = vmatpush1.msra.mxu0 0.0
    %1671 = vmatprep.subr.mxu0 0.0
    %1672 = vmatpush1.msra.mxu0 0.0
    %1673 = vmatprep.subr.mxu0 0.0
    %1674 = vmatpush1.msra.mxu0 0.0
    %1675 = vmatprep.subr.mxu0 0.0
    %1676 = vmatpush1.msra.mxu0 0.0
    %1677 = vmatprep.subr.mxu0 0.0
    %1678 = vmatpush1.msra.mxu0 0.0
    %1679 = vmatprep.subr.mxu0 0.0
    %1680 = vmatpush1.msra.mxu0 0.0
    %1681 = vmatprep.subr.mxu0 0.0
    %1682 = vmatpush1.msra.mxu0 0.0
    %1683 = vmatprep.mubr.f32.mxu0 0.0
    %1684 = vmatmul.mubr.f32.gmra.mrb[0].mxu0 %v1538
    %v1685 = vpop.f32.mrb[0].mxu0
    %v1686 = vadd.f32 0.0, %v1685
    %v1687 = vpop.f32.mrb[0].mxu0
    %v1688 = vadd.f32 0.0, %v1687
    %1689 = vdwg.mxu0
    %v1690 = vadd.f32 %v1544, %v1615
    %v1691 = vadd.f32 %v1545, %v1617
    %v1692 = vadd.f32 %v1546, %v1686
    %v1693 = vadd.f32 %v1547, %v1688
    %v1694 = vxor.u32 %v1690, 2147483648
    %v1695 = vxor.u32 %v1691, 2147483648
    %v1696 = vxor.u32 %v1692, 2147483648
    %v1697 = vmul.f32 %v1694, 1.442695
    %v1698 = vpow.pop %v1697
    %v1699 = vmul.f32 %v1695, 1.442695
    %v1700 = vpow.pop %v1699
    %v1701 = vmul.f32 %v1696, 1.442695
    %v1702 = vpow.pop %v1701
    %v1703 = vadd.f32 %v1698, 1.0
    %v1704 = vadd.f32 %v1700, 1.0
    %v1705 = vadd.f32 %v1702, 1.0
    %v1706 = vrcp.pop %v1703
    %v1707 = vmul.f32 1.0, %v1706
    %v1708 = vrcp.pop %v1704
    %v1709 = vmul.f32 1.0, %v1708
    %v1710 = vrcp.pop %v1705
    %v1711 = vmul.f32 1.0, %v1710
    %v1712 = vtanh.pop %v1693
    %v1713 = vmul.f32 %v1709, %v1536
    %v1714 = vmul.f32 %v1707, %v1712
    %v1715 = vadd.f32 %v1713, %v1714
    %v1716 = vtanh.pop %v1715
    %v1717 = vmul.f32 %v1711, %v1716
    %1718 = vst.msk [vmem:[%s819] sm:$0xff] %vm635, %v1717
    %1719 = vst.msk [vmem:[%s817] sm:$0xff] %vm638, %v1717
    %s1720 = smul.u32 7, 4
    %s1721 = smul.addr %s1720, 8
    %s1722 = scalar_lea.vmem [#allocation2], %s1721
    %v1723 = vld [vmem:[%s1722] sm:$0xff]
    %v1724 = vld [vmem:[%s1722 + $0x8] sm:$0xff]
    %v1725 = vld [vmem:[%s1722 + $0x10] sm:$0xff]
    %v1726 = vld [vmem:[%s1722 + $0x18] sm:$0xff]
    %1727 = vmatprep.subr.mxu0 %v395
    %1728 = vmatpush1.msra.mxu0 %v394
    %1729 = vmatprep.subr.mxu0 %v399
    %1730 = vmatpush1.msra.mxu0 %v398
    %1731 = vmatprep.subr.mxu0 %v403
    %1732 = vmatpush1.msra.mxu0 %v402
    %1733 = vmatprep.subr.mxu0 %v407
    %1734 = vmatpush1.msra.mxu0 %v406
    %1735 = vmatprep.subr.mxu0 %v411
    %1736 = vmatpush1.msra.mxu0 %v410
    %1737 = vmatprep.subr.mxu0 %v415
    %1738 = vmatpush1.msra.mxu0 %v414
    %1739 = vmatprep.subr.mxu0 %v419
    %1740 = vmatpush1.msra.mxu0 %v418
    %1741 = vmatprep.subr.mxu0 %v423
    %1742 = vmatpush1.msra.mxu0 %v422
    %1743 = vmatprep.subr.mxu0 %v427
    %1744 = vmatpush1.msra.mxu0 %v426
    %1745 = vmatprep.subr.mxu0 %v431
    %1746 = vmatpush1.msra.mxu0 %v430
    %1747 = vmatprep.subr.mxu0 %v435
    %1748 = vmatpush1.msra.mxu0 %v434
    %1749 = vmatprep.subr.mxu0 %v439
    %1750 = vmatpush1.msra.mxu0 %v438
    %1751 = vmatprep.subr.mxu0 %v443
    %1752 = vmatpush1.msra.mxu0 %v442
    %1753 = vmatprep.subr.mxu0 %v447
    %1754 = vmatpush1.msra.mxu0 %v446
    %1755 = vmatprep.subr.mxu0 %v451
    %1756 = vmatpush1.msra.mxu0 %v450
    %1757 = vmatprep.subr.mxu0 %v455
    %1758 = vmatpush1.msra.mxu0 %v454
    %1759 = vmatprep.subr.mxu0 0.0
    %1760 = vmatpush1.msra.mxu0 0.0
    %1761 = vmatprep.subr.mxu0 0.0
    %1762 = vmatpush1.msra.mxu0 0.0
    %1763 = vmatprep.subr.mxu0 0.0
    %1764 = vmatpush1.msra.mxu0 0.0
    %1765 = vmatprep.subr.mxu0 0.0
    %1766 = vmatpush1.msra.mxu0 0.0
    %1767 = vmatprep.subr.mxu0 0.0
    %1768 = vmatpush1.msra.mxu0 0.0
    %1769 = vmatprep.subr.mxu0 0.0
    %1770 = vmatpush1.msra.mxu0 0.0
    %1771 = vmatprep.subr.mxu0 0.0
    %1772 = vmatpush1.msra.mxu0 0.0
    %1773 = vmatprep.subr.mxu0 0.0
    %1774 = vmatpush1.msra.mxu0 0.0
    %1775 = vmatprep.subr.mxu0 0.0
    %1776 = vmatpush1.msra.mxu0 0.0
    %1777 = vmatprep.subr.mxu0 0.0
    %1778 = vmatpush1.msra.mxu0 0.0
    %1779 = vmatprep.subr.mxu0 0.0
    %1780 = vmatpush1.msra.mxu0 0.0
    %1781 = vmatprep.subr.mxu0 0.0
    %1782 = vmatpush1.msra.mxu0 0.0
    %1783 = vmatprep.subr.mxu0 0.0
    %1784 = vmatpush1.msra.mxu0 0.0
    %1785 = vmatprep.subr.mxu0 0.0
    %1786 = vmatpush1.msra.mxu0 0.0
    %1787 = vmatprep.subr.mxu0 0.0
    %1788 = vmatpush1.msra.mxu0 0.0
    %1789 = vmatprep.subr.mxu0 0.0
    %1790 = vmatpush1.msra.mxu0 0.0
    %1791 = vmatprep.mubr.f32.mxu0 0.0
    %1792 = vmatmul.mubr.f32.gmra.mrb[0].mxu0 %v1717
    %v1793 = vpop.f32.mrb[0].mxu0
    %v1794 = vadd.f32 0.0, %v1793
    %v1795 = vpop.f32.mrb[0].mxu0
    %v1796 = vadd.f32 0.0, %v1795
    %1797 = vdwg.mxu0
    %1798 = vmatprep.subr.mxu0 %v397
    %1799 = vmatpush1.msra.mxu0 %v396
    %1800 = vmatprep.subr.mxu0 %v401
    %1801 = vmatpush1.msra.mxu0 %v400
    %1802 = vmatprep.subr.mxu0 %v405
    %1803 = vmatpush1.msra.mxu0 %v404
    %1804 = vmatprep.subr.mxu0 %v409
    %1805 = vmatpush1.msra.mxu0 %v408
    %1806 = vmatprep.subr.mxu0 %v413
    %1807 = vmatpush1.msra.mxu0 %v412
    %1808 = vmatprep.subr.mxu0 %v417
    %1809 = vmatpush1.msra.mxu0 %v416
    %1810 = vmatprep.subr.mxu0 %v421
    %1811 = vmatpush1.msra.mxu0 %v420
    %1812 = vmatprep.subr.mxu0 %v425
    %1813 = vmatpush1.msra.mxu0 %v424
    %1814 = vmatprep.subr.mxu0 %v429
    %1815 = vmatpush1.msra.mxu0 %v428
    %1816 = vmatprep.subr.mxu0 %v433
    %1817 = vmatpush1.msra.mxu0 %v432
    %1818 = vmatprep.subr.mxu0 %v437
    %1819 = vmatpush1.msra.mxu0 %v436
    %1820 = vmatprep.subr.mxu0 %v441
    %1821 = vmatpush1.msra.mxu0 %v440
    %1822 = vmatprep.subr.mxu0 %v445
    %1823 = vmatpush1.msra.mxu0 %v444
    %1824 = vmatprep.subr.mxu0 %v449
    %1825 = vmatpush1.msra.mxu0 %v448
    %1826 = vmatprep.subr.mxu0 %v453
    %1827 = vmatpush1.msra.mxu0 %v452
    %1828 = vmatprep.subr.mxu0 %v457
    %1829 = vmatpush1.msra.mxu0 %v456
    %1830 = vmatprep.subr.mxu0 0.0
    %1831 = vmatpush1.msra.mxu0 0.0
    %1832 = vmatprep.subr.mxu0 0.0
    %1833 = vmatpush1.msra.mxu0 0.0
    %1834 = vmatprep.subr.mxu0 0.0
    %1835 = vmatpush1.msra.mxu0 0.0
    %1836 = vmatprep.subr.mxu0 0.0
    %1837 = vmatpush1.msra.mxu0 0.0
    %1838 = vmatprep.subr.mxu0 0.0
    %1839 = vmatpush1.msra.mxu0 0.0
    %1840 = vmatprep.subr.mxu0 0.0
    %1841 = vmatpush1.msra.mxu0 0.0
    %1842 = vmatprep.subr.mxu0 0.0
    %1843 = vmatpush1.msra.mxu0 0.0
    %1844 = vmatprep.subr.mxu0 0.0
    %1845 = vmatpush1.msra.mxu0 0.0
    %1846 = vmatprep.subr.mxu0 0.0
    %1847 = vmatpush1.msra.mxu0 0.0
    %1848 = vmatprep.subr.mxu0 0.0
    %1849 = vmatpush1.msra.mxu0 0.0
    %1850 = vmatprep.subr.mxu0 0.0
    %1851 = vmatpush1.msra.mxu0 0.0
    %1852 = vmatprep.subr.mxu0 0.0
    %1853 = vmatpush1.msra.mxu0 0.0
    %1854 = vmatprep.subr.mxu0 0.0
    %1855 = vmatpush1.msra.mxu0 0.0
    %1856 = vmatprep.subr.mxu0 0.0
    %1857 = vmatpush1.msra.mxu0 0.0
    %1858 = vmatprep.subr.mxu0 0.0
    %1859 = vmatpush1.msra.mxu0 0.0
    %1860 = vmatprep.subr.mxu0 0.0
    %1861 = vmatpush1.msra.mxu0 0.0
    %1862 = vmatprep.mubr.f32.mxu0 0.0
    %1863 = vmatmul.mubr.f32.gmra.mrb[0].mxu0 %v1717
    %v1864 = vpop.f32.mrb[0].mxu0
    %v1865 = vadd.f32 0.0, %v1864
    %v1866 = vpop.f32.mrb[0].mxu0
    %v1867 = vadd.f32 0.0, %v1866
    %1868 = vdwg.mxu0
    %v1869 = vadd.f32 %v1723, %v1794
    %v1870 = vadd.f32 %v1724, %v1796
    %v1871 = vadd.f32 %v1725, %v1865
    %v1872 = vadd.f32 %v1726, %v1867
    %v1873 = vxor.u32 %v1869, 2147483648
    %v1874 = vxor.u32 %v1870, 2147483648
    %v1875 = vxor.u32 %v1871, 2147483648
    %v1876 = vmul.f32 %v1873, 1.442695
    %v1877 = vpow.pop %v1876
    %v1878 = vmul.f32 %v1874, 1.442695
    %v1879 = vpow.pop %v1878
    %v1880 = vmul.f32 %v1875, 1.442695
    %v1881 = vpow.pop %v1880
    %v1882 = vadd.f32 %v1877, 1.0
    %v1883 = vadd.f32 %v1879, 1.0
    %v1884 = vadd.f32 %v1881, 1.0
    %v1885 = vrcp.pop %v1882
    %v1886 = vmul.f32 1.0, %v1885
    %v1887 = vrcp.pop %v1883
    %v1888 = vmul.f32 1.0, %v1887
    %v1889 = vrcp.pop %v1884
    %v1890 = vmul.f32 1.0, %v1889
    %v1891 = vtanh.pop %v1872
    %v1892 = vmul.f32 %v1888, %v1715
    %v1893 = vmul.f32 %v1886, %v1891
    %v1894 = vadd.f32 %v1892, %v1893
    %v1895 = vtanh.pop %v1894
    %v1896 = vmul.f32 %v1890, %v1895
    %1897 = vst.msk [vmem:[%s637] sm:$0xff] %vm635, %v1896
    %1898 = vst.msk [vmem:[#allocation3] sm:$0xff] %vm638, %v1896
    %v1899 = vld [vmem:[#allocation3] sm:$0xff]
    %v1900 = vld [vmem:[#allocation3 + $0x8] sm:$0xff]
    %v1901 = vld [vmem:[#allocation3 + $0x10] sm:$0xff]
    %v1902 = vld [vmem:[#allocation3 + $0x18] sm:$0xff]
    %v1903 = vld [vmem:[#allocation3 + $0x20] sm:$0xff]
    %v1904 = vld [vmem:[#allocation3 + $0x28] sm:$0xff]
    %v1905 = vld [vmem:[#allocation3 + $0x30] sm:$0xff]
    %v1906 = vld [vmem:[#allocation3 + $0x38] sm:$0xff]
    %v1907 = vmul.f32 %v1899, %v1896
    %v1908 = vmul.f32 %v1900, %v1896
    %v1909 = vmul.f32 %v1901, %v1896
    %v1910 = vmul.f32 %v1902, %v1896
    %v1911 = vmul.f32 %v1903, %v1896
    %v1912 = vmul.f32 %v1904, %v1896
    %v1913 = vmul.f32 %v1905, %v1896
    %v1914 = vmul.f32 %v1906, %v1896
    %1915 = vadd.xlane.f32.xlu0 %v1907
    %v1916 = vpop.xlane.xlu0 %1915
    %1917 = vadd.xlane.f32.xlu0 %v1908
    %v1918 = vpop.xlane.xlu0 %1917
    %1919 = vadd.xlane.f32.xlu0 %v1909
    %v1920 = vpop.xlane.xlu0 %1919
    %1921 = vadd.xlane.f32.xlu0 %v1910
    %v1922 = vpop.xlane.xlu0 %1921
    %1923 = vadd.xlane.f32.xlu0 %v1911
    %v1924 = vpop.xlane.xlu0 %1923
    %1925 = vadd.xlane.f32.xlu0 %v1912
    %v1926 = vpop.xlane.xlu0 %1925
    %1927 = vadd.xlane.f32.xlu0 %v1913
    %v1928 = vpop.xlane.xlu0 %1927
    %1929 = vadd.xlane.f32.xlu0 %v1914
    %v1930 = vpop.xlane.xlu0 %1929
    %v1931 = vmax.f32 %v1916, %v1924
    %v1932 = vmax.f32 %v1918, %v1926
    %v1933 = vmax.f32 %v1920, %v1928
    %v1934 = vmax.f32 %v1922, %v1930
    %v1935 = vmax.f32 %v1931, %v1932
    %v1936 = vmax.f32 %v1933, %v1934
    %v1937 = vmax.f32 %v1935, %v1936
    %v1938 = vsub.f32 %v1916, %v1937
    %v1939 = vsub.f32 %v1918, %v1937
    %v1940 = vsub.f32 %v1920, %v1937
    %v1941 = vsub.f32 %v1922, %v1937
    %v1942 = vsub.f32 %v1924, %v1937
    %v1943 = vsub.f32 %v1926, %v1937
    %v1944 = vsub.f32 %v1928, %v1937
    %v1945 = vsub.f32 %v1930, %v1937
    %v1946 = vmul.f32 %v1938, 1.442695
    %v1947 = vpow.pop %v1946
    %v1948 = vmul.f32 %v1939, 1.442695
    %v1949 = vpow.pop %v1948
    %v1950 = vmul.f32 %v1940, 1.442695
    %v1951 = vpow.pop %v1950
    %v1952 = vmul.f32 %v1941, 1.442695
    %v1953 = vpow.pop %v1952
    %v1954 = vmul.f32 %v1942, 1.442695
    %v1955 = vpow.pop %v1954
    %v1956 = vmul.f32 %v1943, 1.442695
    %v1957 = vpow.pop %v1956
    %v1958 = vmul.f32 %v1944, 1.442695
    %v1959 = vpow.pop %v1958
    %v1960 = vmul.f32 %v1945, 1.442695
    %v1961 = vpow.pop %v1960
    %v1962 = vadd.f32 %v1947, %v1949
    %v1963 = vadd.f32 %v1962, %v1951
    %v1964 = vadd.f32 %v1963, %v1953
    %v1965 = vadd.f32 %v1964, %v1955
    %v1966 = vadd.f32 %v1965, %v1957
    %v1967 = vadd.f32 %v1966, %v1959
    %v1968 = vadd.f32 %v1967, %v1961
    %v1969 = vrcp.pop %v1968
    %v1970 = vmul.f32 %v1947, %v1969
    %v1971 = vmul.f32 %v1949, %v1969
    %v1972 = vmul.f32 %v1951, %v1969
    %v1973 = vmul.f32 %v1953, %v1969
    %v1974 = vmul.f32 %v1955, %v1969
    %v1975 = vmul.f32 %v1957, %v1969
    %v1976 = vmul.f32 %v1959, %v1969
    %v1977 = vmul.f32 %v1961, %v1969
    %v1978 = vmul.f32 %v1899, %v1970
    %v1979 = vmul.f32 %v1900, %v1971
    %v1980 = vmul.f32 %v1901, %v1972
    %v1981 = vmul.f32 %v1902, %v1973
    %v1982 = vmul.f32 %v1903, %v1974
    %v1983 = vmul.f32 %v1904, %v1975
    %v1984 = vmul.f32 %v1905, %v1976
    %v1985 = vmul.f32 %v1906, %v1977
    %v1986 = vadd.f32 %v1978, %v1979
    %v1987 = vadd.f32 %v1986, %v1980
    %v1988 = vadd.f32 %v1987, %v1981
    %v1989 = vadd.f32 %v1988, %v1982
    %v1990 = vadd.f32 %v1989, %v1983
    %v1991 = vadd.f32 %v1990, %v1984
    %v1992 = vadd.f32 %v1991, %v1985
    %1993 = vst [vmem:[#allocation6] sm:$0xff] %v1992
    %v1994 = vld [vmem:[%s1] sm:$0xff]
    %v1995 = vld [vmem:[%s5] sm:$0xff]
    %v1996 = vld [vmem:[%s5 + $0x8] sm:$0xff]
    %v1997 = vld [vmem:[%s5 + $0x10] sm:$0xff]
    %v1998 = vld [vmem:[%s5 + $0x18] sm:$0xff]
    %v1999 = vld [vmem:[%s5 + $0x20] sm:$0xff]
    %v2000 = vld [vmem:[%s5 + $0x28] sm:$0xff]
    %v2001 = vld [vmem:[%s5 + $0x30] sm:$0xff]
    %v2002 = vld [vmem:[%s5 + $0x38] sm:$0xff]
    %v2003 = vld [vmem:[%s5 + $0x40] sm:$0xff]
    %v2004 = vld [vmem:[%s5 + $0x48] sm:$0xff]
    %v2005 = vld [vmem:[%s5 + $0x50] sm:$0xf]
    %v2006 = vld [vmem:[%s6] sm:$0x1]
    %v2008 = vlaneseq
    %v2009 = vshrl.u32 %v2008, 7
    %v2010 = vsub.s32 0, %v2009
    %v2011 = vrot.slane %v2006, %v2010
    %vm2013 = vcmask 687104
    %v2015 = vsel %vm2013, %v1994, 0
    %vm2017 = vcmask 1043456
    %v2019 = vsel %vm2017, %v2005, 0
    %2021 = vmatprep.subr.mxu0 0.0
    %2022 = vmatpush1.msra.mxu0 %v1995
    %2023 = vmatprep.subr.mxu0 0.0
    %2024 = vmatpush1.msra.mxu0 %v1996
    %2025 = vmatprep.subr.mxu0 0.0
    %2026 = vmatpush1.msra.mxu0 %v1997
    %2027 = vmatprep.subr.mxu0 0.0
    %2028 = vmatpush1.msra.mxu0 %v1998
    %2029 = vmatprep.subr.mxu0 0.0
    %2030 = vmatpush1.msra.mxu0 %v1999
    %2031 = vmatprep.subr.mxu0 0.0
    %2032 = vmatpush1.msra.mxu0 %v2000
    %2033 = vmatprep.subr.mxu0 0.0
    %2034 = vmatpush1.msra.mxu0 %v2001
    %2035 = vmatprep.subr.mxu0 0.0
    %2036 = vmatpush1.msra.mxu0 %v2002
    %2037 = vmatprep.subr.mxu0 0.0
    %2038 = vmatpush1.msra.mxu0 %v2003
    %2039 = vmatprep.subr.mxu0 0.0
    %2040 = vmatpush1.msra.mxu0 %v2004
    %2041 = vmatprep.subr.mxu0 0.0
    %2042 = vmatpush1.msra.mxu0 %v2019
    %2043 = vmatprep.subr.mxu0 0.0
    %2044 = vmatpush1.msra.mxu0 0.0
    %2045 = vmatprep.subr.mxu0 0.0
    %2046 = vmatpush1.msra.mxu0 0.0
    %2047 = vmatprep.subr.mxu0 0.0
    %2048 = vmatpush1.msra.mxu0 0.0
    %2049 = vmatprep.subr.mxu0 0.0
    %2050 = vmatpush1.msra.mxu0 0.0
    %2051 = vmatprep.subr.mxu0 0.0
    %2052 = vmatpush1.msra.mxu0 0.0
    %2053 = vmatprep.subr.mxu0 0.0
    %2054 = vmatpush1.msra.mxu0 0.0
    %2055 = vmatprep.subr.mxu0 0.0
    %2056 = vmatpush1.msra.mxu0 0.0
    %2057 = vmatprep.subr.mxu0 0.0
    %2058 = vmatpush1.msra.mxu0 0.0
    %2059 = vmatprep.subr.mxu0 0.0
    %2060 = vmatpush1.msra.mxu0 0.0
    %2061 = vmatprep.subr.mxu0 0.0
    %2062 = vmatpush1.msra.mxu0 0.0
    %2063 = vmatprep.subr.mxu0 0.0
    %2064 = vmatpush1.msra.mxu0 0.0
    %2065 = vmatprep.subr.mxu0 0.0
    %2066 = vmatpush1.msra.mxu0 0.0
    %2067 = vmatprep.subr.mxu0 0.0
    %2068 = vmatpush1.msra.mxu0 0.0
    %2069 = vmatprep.subr.mxu0 0.0
    %2070 = vmatpush1.msra.mxu0 0.0
    %2071 = vmatprep.subr.mxu0 0.0
    %2072 = vmatpush1.msra.mxu0 0.0
    %2073 = vmatprep.subr.mxu0 0.0
    %2074 = vmatpush1.msra.mxu0 0.0
    %2075 = vmatprep.subr.mxu0 0.0
    %2076 = vmatpush1.msra.mxu0 0.0
    %2077 = vmatprep.subr.mxu0 0.0
    %2078 = vmatpush1.msra.mxu0 0.0
    %2079 = vmatprep.subr.mxu0 0.0
    %2080 = vmatpush1.msra.mxu0 0.0
    %2081 = vmatprep.subr.mxu0 0.0
    %2082 = vmatpush1.msra.mxu0 0.0
    %2083 = vmatprep.subr.mxu0 0.0
    %2084 = vmatpush1.msra.mxu0 0.0
    %2085 = vmatprep.mubr.f32.mxu0 0.0
    %2086 = vmatmul.mubr.f32.gmra.mrb[0].mxu0 %v2015
    %v2087 = vpop.f32.mrb[0].mxu0
    %v2088 = vadd.f32 %v2011, %v2087
    %v2089 = vpop.f32.mrb[0].mxu0
    %2090 = vdwg.mxu0
    %v2091 = vmax.f32 %v2088, 0.0
    %v2092 = vld [vmem:[%s7] sm:$0xff]
    %v2093 = vld [vmem:[%s7 + $0x8] sm:$0xff]
    %v2094 = vld [vmem:[%s7 + $0x10] sm:$0xff]
    %v2095 = vld [vmem:[%s7 + $0x18] sm:$0xff]
    %v2096 = vld [vmem:[%s7 + $0x20] sm:$0xff]
    %v2097 = vld [vmem:[%s7 + $0x28] sm:$0xff]
    %v2098 = vld [vmem:[%s7 + $0x30] sm:$0xff]
    %v2099 = vld [vmem:[%s7 + $0x38] sm:$0xff]
    %v2100 = vld [vmem:[%s7 + $0x40] sm:$0xff]
    %v2101 = vld [vmem:[%s7 + $0x48] sm:$0xff]
    %v2102 = vld [vmem:[%s7 + $0x50] sm:$0xff]
    %v2103 = vld [vmem:[%s7 + $0x58] sm:$0xff]
    %v2104 = vld [vmem:[%s7 + $0x60] sm:$0xff]
    %v2105 = vld [vmem:[%s7 + $0x68] sm:$0xff]
    %v2106 = vld [vmem:[%s7 + $0x70] sm:$0xff]
    %v2107 = vld [vmem:[%s7 + $0x78] sm:$0xff]
    %v2108 = vld [vmem:[%s7 + $0x80] sm:$0xff]
    %v2109 = vld [vmem:[%s7 + $0x88] sm:$0xff]
    %v2110 = vld [vmem:[%s7 + $0x90] sm:$0xff]
    %v2111 = vld [vmem:[%s7 + $0x98] sm:$0xff]
    %v2112 = vld [vmem:[%s7 + $0xa0] sm:$0xff]
    %v2113 = vld [vmem:[%s7 + $0xa8] sm:$0xff]
    %v2114 = vld [vmem:[%s7 + $0xb0] sm:$0xff]
    %v2115 = vld [vmem:[%s7 + $0xb8] sm:$0xff]
    %v2116 = vld [vmem:[%s7 + $0xc0] sm:$0xff]
    %v2117 = vld [vmem:[%s7 + $0xc8] sm:$0xff]
    %v2118 = vld [vmem:[%s7 + $0xd0] sm:$0xff]
    %v2119 = vld [vmem:[%s7 + $0xd8] sm:$0xff]
    %v2120 = vld [vmem:[%s7 + $0xe0] sm:$0xff]
    %v2121 = vld [vmem:[%s7 + $0xe8] sm:$0xff]
    %v2122 = vld [vmem:[%s7 + $0xf0] sm:$0xff]
    %v2123 = vld [vmem:[%s7 + $0xf8] sm:$0xff]
    %v2124 = vld [vmem:[%s8] sm:$0x1]
    %v2126 = vlaneseq
    %v2127 = vshrl.u32 %v2126, 7
    %v2128 = vsub.s32 0, %v2127
    %v2129 = vrot.slane %v2124, %v2128
    %2131 = vmatprep.subr.mxu0 0.0
    %2132 = vmatpush1.msra.mxu0 %v2092
    %2133 = vmatprep.subr.mxu0 0.0
    %2134 = vmatpush1.msra.mxu0 %v2093
    %2135 = vmatprep.subr.mxu0 0.0
    %2136 = vmatpush1.msra.mxu0 %v2094
    %2137 = vmatprep.subr.mxu0 0.0
    %2138 = vmatpush1.msra.mxu0 %v2095
    %2139 = vmatprep.subr.mxu0 0.0
    %2140 = vmatpush1.msra.mxu0 %v2096
    %2141 = vmatprep.subr.mxu0 0.0
    %2142 = vmatpush1.msra.mxu0 %v2097
    %2143 = vmatprep.subr.mxu0 0.0
    %2144 = vmatpush1.msra.mxu0 %v2098
    %2145 = vmatprep.subr.mxu0 0.0
    %2146 = vmatpush1.msra.mxu0 %v2099
    %2147 = vmatprep.subr.mxu0 0.0
    %2148 = vmatpush1.msra.mxu0 %v2100
    %2149 = vmatprep.subr.mxu0 0.0
    %2150 = vmatpush1.msra.mxu0 %v2101
    %2151 = vmatprep.subr.mxu0 0.0
    %2152 = vmatpush1.msra.mxu0 %v2102
    %2153 = vmatprep.subr.mxu0 0.0
    %2154 = vmatpush1.msra.mxu0 %v2103
    %2155 = vmatprep.subr.mxu0 0.0
    %2156 = vmatpush1.msra.mxu0 %v2104
    %2157 = vmatprep.subr.mxu0 0.0
    %2158 = vmatpush1.msra.mxu0 %v2105
    %2159 = vmatprep.subr.mxu0 0.0
    %2160 = vmatpush1.msra.mxu0 %v2106
    %2161 = vmatprep.subr.mxu0 0.0
    %2162 = vmatpush1.msra.mxu0 %v2107
    %2163 = vmatprep.subr.mxu0 0.0
    %2164 = vmatpush1.msra.mxu0 %v2108
    %2165 = vmatprep.subr.mxu0 0.0
    %2166 = vmatpush1.msra.mxu0 %v2109
    %2167 = vmatprep.subr.mxu0 0.0
    %2168 = vmatpush1.msra.mxu0 %v2110
    %2169 = vmatprep.subr.mxu0 0.0
    %2170 = vmatpush1.msra.mxu0 %v2111
    %2171 = vmatprep.subr.mxu0 0.0
    %2172 = vmatpush1.msra.mxu0 %v2112
    %2173 = vmatprep.subr.mxu0 0.0
    %2174 = vmatpush1.msra.mxu0 %v2113
    %2175 = vmatprep.subr.mxu0 0.0
    %2176 = vmatpush1.msra.mxu0 %v2114
    %2177 = vmatprep.subr.mxu0 0.0
    %2178 = vmatpush1.msra.mxu0 %v2115
    %2179 = vmatprep.subr.mxu0 0.0
    %2180 = vmatpush1.msra.mxu0 %v2116
    %2181 = vmatprep.subr.mxu0 0.0
    %2182 = vmatpush1.msra.mxu0 %v2117
    %2183 = vmatprep.subr.mxu0 0.0
    %2184 = vmatpush1.msra.mxu0 %v2118
    %2185 = vmatprep.subr.mxu0 0.0
    %2186 = vmatpush1.msra.mxu0 %v2119
    %2187 = vmatprep.subr.mxu0 0.0
    %2188 = vmatpush1.msra.mxu0 %v2120
    %2189 = vmatprep.subr.mxu0 0.0
    %2190 = vmatpush1.msra.mxu0 %v2121
    %2191 = vmatprep.subr.mxu0 0.0
    %2192 = vmatpush1.msra.mxu0 %v2122
    %2193 = vmatprep.subr.mxu0 0.0
    %2194 = vmatpush1.msra.mxu0 %v2123
    %2195 = vmatprep.mubr.f32.mxu0 %v2091
    %2196 = vmatmul.mubr.f32.gmra.mrb[0].mxu0 %v1992
    %v2197 = vpop.f32.mrb[0].mxu0
    %v2198 = vadd.f32 %v2129, %v2197
    %v2199 = vpop.f32.mrb[0].mxu0
    %2200 = vdwg.mxu0
    %v2201 = vmax.f32 %v2198, 0.0
    %v2202 = vld [vmem:[%s9] sm:$0xff]
    %v2203 = vld [vmem:[%s9 + $0x8] sm:$0xff]
    %v2204 = vld [vmem:[%s9 + $0x10] sm:$0xff]
    %v2205 = vld [vmem:[%s9 + $0x18] sm:$0xff]
    %v2206 = vld [vmem:[%s9 + $0x20] sm:$0xff]
    %v2207 = vld [vmem:[%s9 + $0x28] sm:$0xff]
    %v2208 = vld [vmem:[%s9 + $0x30] sm:$0xff]
    %v2209 = vld [vmem:[%s9 + $0x38] sm:$0xff]
    %v2210 = vld [vmem:[%s9 + $0x40] sm:$0xff]
    %v2211 = vld [vmem:[%s9 + $0x48] sm:$0xff]
    %v2212 = vld [vmem:[%s9 + $0x50] sm:$0xff]
    %v2213 = vld [vmem:[%s9 + $0x58] sm:$0xff]
    %v2214 = vld [vmem:[%s9 + $0x60] sm:$0xf]
    %v2215 = vld [vmem:[%s10] sm:$0x1]
    %v2217 = vlaneseq
    %v2218 = vshrl.u32 %v2217, 7
    %v2219 = vsub.s32 0, %v2218
    %v2220 = vrot.slane %v2215, %v2219
    %vm2222 = vcmask 818176
    %v2224 = vsel %vm2222, %v2201, 0
    %v2227 = vsel %vm2017, %v2214, 0
    %2229 = vmatprep.subr.mxu0 0.0
    %2230 = vmatpush1.msra.mxu0 %v2202
    %2231 = vmatprep.subr.mxu0 0.0
    %2232 = vmatpush1.msra.mxu0 %v2203
    %2233 = vmatprep.subr.mxu0 0.0
    %2234 = vmatpush1.msra.mxu0 %v2204
    %2235 = vmatprep.subr.mxu0 0.0
    %2236 = vmatpush1.msra.mxu0 %v2205
    %2237 = vmatprep.subr.mxu0 0.0
    %2238 = vmatpush1.msra.mxu0 %v2206
    %2239 = vmatprep.subr.mxu0 0.0
    %2240 = vmatpush1.msra.mxu0 %v2207
    %2241 = vmatprep.subr.mxu0 0.0
    %2242 = vmatpush1.msra.mxu0 %v2208
    %2243 = vmatprep.subr.mxu0 0.0
    %2244 = vmatpush1.msra.mxu0 %v2209
    %2245 = vmatprep.subr.mxu0 0.0
    %2246 = vmatpush1.msra.mxu0 %v2210
    %2247 = vmatprep.subr.mxu0 0.0
    %2248 = vmatpush1.msra.mxu0 %v2211
    %2249 = vmatprep.subr.mxu0 0.0
    %2250 = vmatpush1.msra.mxu0 %v2212
    %2251 = vmatprep.subr.mxu0 0.0
    %2252 = vmatpush1.msra.mxu0 %v2213
    %2253 = vmatprep.subr.mxu0 0.0
    %2254 = vmatpush1.msra.mxu0 %v2227
    %2255 = vmatprep.subr.mxu0 0.0
    %2256 = vmatpush1.msra.mxu0 0.0
    %2257 = vmatprep.subr.mxu0 0.0
    %2258 = vmatpush1.msra.mxu0 0.0
    %2259 = vmatprep.subr.mxu0 0.0
    %2260 = vmatpush1.msra.mxu0 0.0
    %2261 = vmatprep.subr.mxu0 0.0
    %2262 = vmatpush1.msra.mxu0 0.0
    %2263 = vmatprep.subr.mxu0 0.0
    %2264 = vmatpush1.msra.mxu0 0.0
    %2265 = vmatprep.subr.mxu0 0.0
    %2266 = vmatpush1.msra.mxu0 0.0
    %2267 = vmatprep.subr.mxu0 0.0
    %2268 = vmatpush1.msra.mxu0 0.0
    %2269 = vmatprep.subr.mxu0 0.0
    %2270 = vmatpush1.msra.mxu0 0.0
    %2271 = vmatprep.subr.mxu0 0.0
    %2272 = vmatpush1.msra.mxu0 0.0
    %2273 = vmatprep.subr.mxu0 0.0
    %2274 = vmatpush1.msra.mxu0 0.0
    %2275 = vmatprep.subr.mxu0 0.0
    %2276 = vmatpush1.msra.mxu0 0.0
    %2277 = vmatprep.subr.mxu0 0.0
    %2278 = vmatpush1.msra.mxu0 0.0
    %2279 = vmatprep.subr.mxu0 0.0
    %2280 = vmatpush1.msra.mxu0 0.0
    %2281 = vmatprep.subr.mxu0 0.0
    %2282 = vmatpush1.msra.mxu0 0.0
    %2283 = vmatprep.subr.mxu0 0.0
    %2284 = vmatpush1.msra.mxu0 0.0
    %2285 = vmatprep.subr.mxu0 0.0
    %2286 = vmatpush1.msra.mxu0 0.0
    %2287 = vmatprep.subr.mxu0 0.0
    %2288 = vmatpush1.msra.mxu0 0.0
    %2289 = vmatprep.subr.mxu0 0.0
    %2290 = vmatpush1.msra.mxu0 0.0
    %2291 = vmatprep.subr.mxu0 0.0
    %2292 = vmatpush1.msra.mxu0 0.0
    %2293 = vmatprep.mubr.f32.mxu0 0.0
    %2294 = vmatmul.mubr.f32.gmra.mrb[0].mxu0 %v2224
    %v2295 = vpop.f32.mrb[0].mxu0
    %v2296 = vadd.f32 %v2220, %v2295
    %v2297 = vpop.f32.mrb[0].mxu0
    %2298 = vdwg.mxu0
    %vm2299 = vcmask 48128
    %v2300 = vsel %vm2299, %v2296, -inf
    %2301 = vmax.xlane.f32.xlu0 %v2300
    %v2302 = vpop.xlane.xlu0 %2301
    %v2303 = vsub.f32 %v2296, %v2302
    %v2304 = vmul.f32 %v2303, 1.442695
    %v2305 = vpow.pop %v2304
    %v2306 = vsel %vm2299, %v2305, 0.0
    %2307 = vadd.xlane.f32.xlu0 %v2306
    %v2308 = vpop.xlane.xlu0 %2307
    %v2309 = vrcp.pop %v2308
    %v2310 = vmul.f32 %v2305, %v2309
    %2311 = vst.msk [vmem:[#allocation4] sm:$0xff] %vm2299, %v2310
    // Predicated region
    $region46: #{hybrid_attention_lstm_forward.1} parent=1 // pred_check
      _
    $region47: #{hybrid_attention_lstm_forward.1} parent=1 // pred_check_branch
      %2313 = sbr.rel (0) target = $region49
    $region48: #{hybrid_attention_lstm_forward.1} parent=1 // pred_region
      %s2315 = ssub.s32 128, 128
      %2316 = vsyncadd [#allocation5], %s2315
      %s2318 = sshll.u32 [#allocation4], 4
      %s2319 = int_to_ptr.vmem [resolvable:$true] %s2318
      %2321 = dma.vmem_to_hbm [thread:$0]  %s2319, 128, %s11, [#allocation5]
    $region49: #{hybrid_attention_lstm_forward.1} parent=1 // pred_fallthru
      _
    // Predicated region
    $region50: #{hybrid_attention_lstm_forward.1} parent=1 // pred_check
      _
    $region51: #{hybrid_attention_lstm_forward.1} parent=1 // pred_check_branch
      %2323 = sbr.rel (0) target = $region53
    $region52: #{hybrid_attention_lstm_forward.1} parent=1 // pred_region
      %s2325 = ssub.s32 128, 128
      %2326 = vsyncadd [#allocation7], %s2325
      %s2328 = sshll.u32 [#allocation6], 4
      %s2329 = int_to_ptr.vmem [resolvable:$true] %s2328
      %2331 = dma.vmem_to_hbm [thread:$0]  %s2329, 128, %s12, [#allocation7]
    $region53: #{hybrid_attention_lstm_forward.1} parent=1 // pred_fallthru
      _
    // Predicated region
    $region54: #{hybrid_attention_lstm_forward.1} parent=1 // pred_check
      _
    $region55: #{hybrid_attention_lstm_forward.1} parent=1 // pred_check_branch
      %2333 = sbr.rel (0) target = $region57
    $region56: #{hybrid_attention_lstm_forward.1} parent=1 // pred_region
      %2334 = dma.done [#allocation5], 128
    $region57: #{hybrid_attention_lstm_forward.1} parent=1 // pred_fallthru
      _
    // Predicated region
    $region58: #{hybrid_attention_lstm_forward.1} parent=1 // pred_check
      _
    $region59: #{hybrid_attention_lstm_forward.1} parent=1 // pred_check_branch
      %2336 = sbr.rel (0) target = $region61
    $region60: #{hybrid_attention_lstm_forward.1} parent=1 // pred_region
      %2337 = dma.done [#allocation7], 128
    $region61: #{hybrid_attention_lstm_forward.1} parent=1 // pred_fallthru
      _
    %2338 = vsyncpa [#allocation5], 1
    %2339 = vsyncpa [#allocation7], 1

</llo_original>
